<compile_context>
chip_gen: v5e
topology: v5e:2x2
jax: 0.10.0
libtpu: 0.0.40
codegen_flags: <defaults>
</compile_context>

<pallas_src>
import functools
import numpy as np
import jax
import jax.numpy as jnp
from jax.experimental import pallas as pl
from jax.experimental.pallas import tpu as pltpu

# ----- model hyper-params (small, consistent with the module) -----
B = 2          # batch
S = 8          # target sequence length
S_E = 8        # encoder-output sequence length
D_MODEL = 32
HEADS = 4
D_K = D_MODEL // HEADS
D_FF = 512
EPS = 1e-6


# ---------------- in-kernel math helpers (traced inside the Pallas body) ----------------
def _layer_norm(x, alpha, bias):
    """alpha * (x - mean) / (std + eps) + bias, torch-style unbiased std, two-pass stats."""
    n = x.shape[-1]
    mean = jnp.sum(x, axis=-1, keepdims=True) * (1.0 / n)
    c = x - mean
    var = jnp.sum(c * c, axis=-1, keepdims=True) * (1.0 / (n - 1))   # unbiased (ddof=1)
    inv = pl.reciprocal(jnp.sqrt(var) + EPS, approx=False)           # EUP reciprocal
    return alpha * c * inv + bias


def _rep_over_heads(t2d, batch, seq):
    """(batch*seq, D) -> (HEADS*batch, seq, D); block n = h*batch + b holds batch b."""
    t3 = t2d.reshape(batch, seq, D_MODEL)            # major-dim split (sublane aligned)
    return jnp.concatenate([t3] * HEADS, axis=0)     # major-axis replication, cheap


def _attention(x_rep, kv_rep, wq_t, wk_t, wv_t, wo, bq_full, batch, s_q, s_kv):
    """Per-(head, batch) batched attention; all matmuls are single-batch-dim einsums.

    x_rep:   (H*B, s_q, D)   query-side activations, replicated per head
    kv_rep:  (H*B, s_kv, D)  key/value-side activations, replicated per head
    wq_t/wk_t/wv_t: (H*B, D_K, D)  per-head projection weights (transposed)
    wo:      (H*B, D_K, D)   per-head slice of the output projection
    bq_full: (H*B, s_q, D_K) per-head query bias, pre-broadcast over s_q
    returns  (B*s_q, D)      sum over heads of per-head output projections (no bias)
    """
    scale = 1.0 / float(np.sqrt(D_K))
    qh = jnp.einsum("nsd,nkd->nsk", x_rep, wq_t,
                    preferred_element_type=jnp.float32) + bq_full     # (HB, s_q, D_K)
    kh = jnp.einsum("nsd,nkd->nsk", kv_rep, wk_t,
                    preferred_element_type=jnp.float32)               # (HB, s_kv, D_K)
    vh = jnp.einsum("nsd,nkd->nsk", kv_rep, wv_t,
                    preferred_element_type=jnp.float32)               # (HB, s_kv, D_K)

    s = jnp.einsum("nqd,nkd->nqk", qh, kh,
                   preferred_element_type=jnp.float32) * scale        # (HB, s_q, s_kv)
    s = s - jnp.max(s, axis=-1, keepdims=True)
    p = jnp.exp(s)
    p = p * pl.reciprocal(jnp.sum(p, axis=-1, keepdims=True), approx=False)
    o = jnp.einsum("nqk,nkd->nqd", p, vh,
                   preferred_element_type=jnp.float32)                # (HB, s_q, D_K)
    proj = jnp.einsum("nsk,nkd->nsd", o, wo,
                      preferred_element_type=jnp.float32)             # (HB, s_q, D)

    # sum per-head output projections within each batch (major-dim reshape + adds)
    proj4 = proj.reshape(HEADS, batch, s_q, D_MODEL)
    acc = proj4[0]
    for h in range(1, HEADS):
        acc = acc + proj4[h]
    return acc.reshape(batch * s_q, D_MODEL)


# ---------------- Pallas kernel: full decoder layer, whole batch, single invocation ------
def decoder_layer_kernel(x_ref, e_ref, pk_ref, bq_ref, hw_ref,
                         ff_w1_ref, ff_b1_ref, ff_w2_ref,
                         o_ref, *, batch, seq, seq_e):
    x = x_ref[...]          # (B*S, D)
    e = e_ref[...]          # (B*S_E, D)
    P = pk_ref[...]         # (16, D) packed small parameters
    hw = hw_ref[...]        # (8, H*B, D_K, D) per-head weights (a1 q,k,v,o ; a2 q,k,v,o)
    bq = bq_ref[...]        # (2, H*B, S, D_K) per-head query biases (pre-broadcast)

    n1a, n1b = P[0:1], P[1:2]
    n2a, n2b = P[2:3], P[3:4]
    n3a, n3b = P[4:5], P[5:6]
    a1_bout, a2_bout, ff_b2 = P[6:7], P[7:8], P[8:9]

    # ---- self-attention block ----
    x2 = _layer_norm(x, n1a, n1b)
    x2r = _rep_over_heads(x2, batch, seq)
    attn = _attention(x2r, x2r, hw[0], hw[1], hw[2], hw[3], bq[0], batch, seq, seq)
    x = x + attn + a1_bout                      # a1_bout = a1_bo + a1_bv @ a1_wo

    # ---- cross-attention block ----
    x2 = _layer_norm(x, n2a, n2b)
    x2r = _rep_over_heads(x2, batch, seq)
    er = _rep_over_heads(e, batch, seq_e)
    attn = _attention(x2r, er, hw[4], hw[5], hw[6], hw[7], bq[1], batch, seq, seq_e)
    x = x + attn + a2_bout                      # a2_bout = a2_bo + a2_bv @ a2_wo

    # ---- feed-forward block ----
    x2 = _layer_norm(x, n3a, n3b)
    h = jnp.maximum(jnp.dot(x2, ff_w1_ref[...], preferred_element_type=jnp.float32)
                    + ff_b1_ref[...], 0.0)
    x = x + jnp.dot(h, ff_w2_ref[...], preferred_element_type=jnp.float32) + ff_b2

    o_ref[...] = x.astype(o_ref.dtype)


def decoder_layer(x, e_outputs, params):
    """x: (B, S, D), e_outputs: (B, S_E, D), params: dict of weights (see init_params)."""
    Bn, Sn, Dn = x.shape
    _, Se, _ = e_outputs.shape
    H, dk = HEADS, D_K

    # token-flattened activation layout
    x2d = x.reshape(Bn * Sn, Dn)
    e2d = e_outputs.reshape(Bn * Se, Dn)

    # ---- wrapper-side (free, XLA) re-arrangement of weights into head-major stacks ----
    def wqkv_heads_t(w):                             # (D, D) -> (H*B, dk, D), transposed
        wt = jnp.transpose(w.reshape(Dn, H, dk), (1, 2, 0))      # [h, k, d] = w[d, h*dk+k]
        return jnp.repeat(wt, Bn, axis=0)                        # n = h*B + b -> head n//B

    def wo_heads(w):                                 # (D, D) -> (H*B, dk, D)
        return jnp.repeat(w.reshape(H, dk, Dn), Bn, axis=0)      # [.,k,m] = w[h*dk+k, m]

    def bq_heads(b):                                 # (1, D) -> (H*B, S, dk), pre-broadcast
        bh = jnp.broadcast_to(b.reshape(H, 1, dk), (H, Sn, dk))
        return jnp.repeat(bh, Bn, axis=0)

    head_w = jnp.stack([
        wqkv_heads_t(params["a1_wq"]), wqkv_heads_t(params["a1_wk"]),
        wqkv_heads_t(params["a1_wv"]), wo_heads(params["a1_wo"]),
        wqkv_heads_t(params["a2_wq"]), wqkv_heads_t(params["a2_wk"]),
        wqkv_heads_t(params["a2_wv"]), wo_heads(params["a2_wo"]),
    ])                                               # (8, H*B, dk, D)
    bq_pack = jnp.stack([bq_heads(params["a1_bq"]),
                         bq_heads(params["a2_bq"])])  # (2, H*B, S, dk)

    # K bias cancels exactly under softmax (row-constant in the scores); V bias folds
    # exactly into bv @ Wo because softmax rows sum to 1 -> fold with the output bias.
    a1_bout = params["a1_bo"] + params["a1_bv"] @ params["a1_wo"]
    a2_bout = params["a2_bo"] + params["a2_bv"] @ params["a2_wo"]

    # one packed array for all tiny (1, D) params -> one DMA
    zero = jnp.zeros((1, Dn), jnp.float32)
    packed_small = jnp.concatenate([
        params["n1_alpha"], params["n1_bias"],
        params["n2_alpha"], params["n2_bias"],
        params["n3_alpha"], params["n3_bias"],
        a1_bout, a2_bout, params["ff_b2"],
    ] + [zero] * 7, axis=0)                          # (16, D)

    vmem = pl.BlockSpec(memory_space=pltpu.MemorySpace.VMEM)
    kernel = functools.partial(decoder_layer_kernel, batch=Bn, seq=Sn, seq_e=Se)

    out2d = pl.pallas_call(
        kernel,
        out_shape=jax.ShapeDtypeStruct((Bn * Sn, Dn), jnp.float32),
        in_specs=[vmem] * 8,
        out_specs=vmem,
    )(x2d, e2d, packed_small, bq_pack, head_w,
      params["ff_w1"], params["ff_b1"], params["ff_w2"])

    return out2d.reshape(Bn, Sn, Dn)


# ---------------- pure-JAX reference (for correctness check) ----------------
def reference_decoder_layer(x, e, p):
    def ln(x, a, b):
        m = jnp.mean(x, -1, keepdims=True)
        c = x - m
        std = jnp.sqrt(jnp.sum(c * c, -1, keepdims=True) / (x.shape[-1] - 1))
        return a[0] * c / (std + EPS) + b[0]

    def mha(q_in, k_in, v_in, wq, bq, wk, bk, wv, bv, wo, bo):
        q = q_in @ wq + bq[0]
        k = k_in @ wk + bk[0]
        v = v_in @ wv + bv[0]
        def split(t):
            return jnp.moveaxis(t.reshape(t.shape[0], t.shape[1], HEADS, D_K), 2, 1)
        qh, kh, vh = split(q), split(k), split(v)
        s = jnp.einsum("bhqd,bhkd->bhqk", qh, kh) / np.sqrt(D_K)
        pr = jax.nn.softmax(s, axis=-1)
        o = jnp.einsum("bhqk,bhkd->bhqd", pr, vh)
        o = jnp.moveaxis(o, 1, 2).reshape(q.shape[0], q.shape[1], D_MODEL)
        return o @ wo + bo[0]

    x2 = ln(x, p["n1_alpha"], p["n1_bias"])
    x = x + mha(x2, x2, x2, p["a1_wq"], p["a1_bq"], p["a1_wk"], p["a1_bk"],
                p["a1_wv"], p["a1_bv"], p["a1_wo"], p["a1_bo"])
    x2 = ln(x, p["n2_alpha"], p["n2_bias"])
    x = x + mha(x2, e, e, p["a2_wq"], p["a2_bq"], p["a2_wk"], p["a2_bk"],
                p["a2_wv"], p["a2_bv"], p["a2_wo"], p["a2_bo"])
    x2 = ln(x, p["n3_alpha"], p["n3_bias"])
    h = jnp.maximum(x2 @ p["ff_w1"] + p["ff_b1"][0], 0.0)
    x = x + (h @ p["ff_w2"] + p["ff_b2"][0])
    return x


# ---------------- deterministic parameter init (all biases nonzero to exercise them) ----
def init_params(key):
    ks = iter(jax.random.split(key, 64))

    def lin(fan_in, fan_out):
        # weight pre-transposed to (in, out); bias stored as (1, out)
        w = jax.random.normal(next(ks), (fan_in, fan_out), jnp.float32) * (1.0 / np.sqrt(fan_in))
        b = jax.random.normal(next(ks), (1, fan_out), jnp.float32) * 0.05
        return w, b

    p = {}
    for i in (1, 2, 3):
        p[f"n{i}_alpha"] = (jnp.ones((1, D_MODEL), jnp.float32)
                            + 0.1 * jax.random.normal(next(ks), (1, D_MODEL), jnp.float32))
        p[f"n{i}_bias"] = 0.1 * jax.random.normal(next(ks), (1, D_MODEL), jnp.float32)
    for a in ("a1", "a2"):
        for name in ("wq", "wk", "wv", "wo"):
            w, b = lin(D_MODEL, D_MODEL)
            p[f"{a}_{name}"] = w
            p[f"{a}_b{name[-1]}"] = b
    p["ff_w1"], p["ff_b1"] = lin(D_MODEL, D_FF)
    p["ff_w2"], p["ff_b2"] = lin(D_FF, D_MODEL)
    return p


if __name__ == "__main__":
    key = jax.random.PRNGKey(0)
    kx, ke, kp = jax.random.split(key, 3)
    x = jax.random.normal(kx, (B, S, D_MODEL), jnp.float32)
    e_outputs = jax.random.normal(ke, (B, S_E, D_MODEL), jnp.float32)
    params = init_params(kp)

    out = decoder_layer(x, e_outputs, params)
    out = jax.block_until_ready(out)

    ref = reference_decoder_layer(x, e_outputs, params)
    np.testing.assert_allclose(np.asarray(out), np.asarray(ref), rtol=1e-4, atol=1e-4)

    print("KERNEL_OK")
</pallas_src>

<mosaic_0001>
module attributes {stable_mosaic.version = 11 : i64} {
  func.func @decoder_layer_kernel(%arg0: memref<16x32xf32, #tpu.memory_space<vmem>>, %arg1: memref<16x32xf32, #tpu.memory_space<vmem>>, %arg2: memref<16x32xf32, #tpu.memory_space<vmem>>, %arg3: memref<2x8x8x8xf32, #tpu.memory_space<vmem>>, %arg4: memref<8x8x8x32xf32, #tpu.memory_space<vmem>>, %arg5: memref<32x512xf32, #tpu.memory_space<vmem>>, %arg6: memref<1x512xf32, #tpu.memory_space<vmem>>, %arg7: memref<512x32xf32, #tpu.memory_space<vmem>>, %arg8: memref<16x32xf32, #tpu.memory_space<vmem>>) attributes {dimension_semantics = [], scalar_prefetch = 0 : i64, scratch_operands = 0 : i64, tpu.core_type = #tpu.core_type<tc>} {
    %c0 = arith.constant 0 : index
    %c0_0 = arith.constant 0 : index
    %0 = vector.load %arg0[%c0, %c0_0] : memref<16x32xf32, #tpu.memory_space<vmem>>, vector<16x32xf32>
    %c0_1 = arith.constant 0 : index
    %c0_2 = arith.constant 0 : index
    %1 = vector.load %arg1[%c0_1, %c0_2] : memref<16x32xf32, #tpu.memory_space<vmem>>, vector<16x32xf32>
    %c0_3 = arith.constant 0 : index
    %c0_4 = arith.constant 0 : index
    %2 = vector.load %arg2[%c0_3, %c0_4] : memref<16x32xf32, #tpu.memory_space<vmem>>, vector<16x32xf32>
    %c0_5 = arith.constant 0 : index
    %c0_6 = arith.constant 0 : index
    %c0_7 = arith.constant 0 : index
    %c0_8 = arith.constant 0 : index
    %3 = vector.load %arg4[%c0_5, %c0_6, %c0_7, %c0_8] : memref<8x8x8x32xf32, #tpu.memory_space<vmem>>, vector<8x8x8x32xf32>
    %c0_9 = arith.constant 0 : index
    %c0_10 = arith.constant 0 : index
    %c0_11 = arith.constant 0 : index
    %c0_12 = arith.constant 0 : index
    %4 = vector.load %arg3[%c0_9, %c0_10, %c0_11, %c0_12] : memref<2x8x8x8xf32, #tpu.memory_space<vmem>>, vector<2x8x8x8xf32>
    %5 = vector.extract_strided_slice %2 {offsets = [0, 0], sizes = [1, 32], strides = [1, 1]} : vector<16x32xf32> to vector<1x32xf32>
    %6 = vector.extract_strided_slice %2 {offsets = [1, 0], sizes = [1, 32], strides = [1, 1]} : vector<16x32xf32> to vector<1x32xf32>
    %7 = vector.extract_strided_slice %2 {offsets = [2, 0], sizes = [1, 32], strides = [1, 1]} : vector<16x32xf32> to vector<1x32xf32>
    %8 = vector.extract_strided_slice %2 {offsets = [3, 0], sizes = [1, 32], strides = [1, 1]} : vector<16x32xf32> to vector<1x32xf32>
    %9 = vector.extract_strided_slice %2 {offsets = [4, 0], sizes = [1, 32], strides = [1, 1]} : vector<16x32xf32> to vector<1x32xf32>
    %10 = vector.extract_strided_slice %2 {offsets = [5, 0], sizes = [1, 32], strides = [1, 1]} : vector<16x32xf32> to vector<1x32xf32>
    %11 = vector.extract_strided_slice %2 {offsets = [6, 0], sizes = [1, 32], strides = [1, 1]} : vector<16x32xf32> to vector<1x32xf32>
    %12 = vector.extract_strided_slice %2 {offsets = [7, 0], sizes = [1, 32], strides = [1, 1]} : vector<16x32xf32> to vector<1x32xf32>
    %13 = vector.extract_strided_slice %2 {offsets = [8, 0], sizes = [1, 32], strides = [1, 1]} : vector<16x32xf32> to vector<1x32xf32>
    %cst = arith.constant dense<0.000000e+00> : vector<16xf32>
    %14 = vector.multi_reduction <add>, %0, %cst [1] : vector<16x32xf32> to vector<16xf32>
    %15 = vector.shape_cast %14 : vector<16xf32> to vector<16x1xf32>
    %cst_13 = arith.constant 3.125000e-02 : f32
    %16 = vector.broadcast %cst_13 : f32 to vector<16x1xf32>
    %17 = arith.mulf %15, %16 : vector<16x1xf32>
    %18 = vector.broadcast %17 : vector<16x1xf32> to vector<16x32xf32>
    %19 = arith.subf %0, %18 : vector<16x32xf32>
    %20 = arith.mulf %19, %19 : vector<16x32xf32>
    %cst_14 = arith.constant dense<0.000000e+00> : vector<16xf32>
    %21 = vector.multi_reduction <add>, %20, %cst_14 [1] : vector<16x32xf32> to vector<16xf32>
    %22 = vector.shape_cast %21 : vector<16xf32> to vector<16x1xf32>
    %cst_15 = arith.constant 0.0322580636 : f32
    %23 = vector.broadcast %cst_15 : f32 to vector<16x1xf32>
    %24 = arith.mulf %22, %23 : vector<16x1xf32>
    %25 = math.sqrt %24 : vector<16x1xf32>
    %cst_16 = arith.constant 9.99999997E-7 : f32
    %26 = vector.broadcast %cst_16 : f32 to vector<16x1xf32>
    %27 = arith.addf %25, %26 : vector<16x1xf32>
    %28 = tpu.reciprocal %27 : vector<16x1xf32> -> vector<16x1xf32>
    %29 = vector.broadcast %5 : vector<1x32xf32> to vector<16x32xf32>
    %30 = arith.mulf %29, %19 : vector<16x32xf32>
    %31 = vector.broadcast %28 : vector<16x1xf32> to vector<16x32xf32>
    %32 = arith.mulf %30, %31 : vector<16x32xf32>
    %33 = vector.broadcast %6 : vector<1x32xf32> to vector<16x32xf32>
    %34 = arith.addf %32, %33 : vector<16x32xf32>
    %35 = vector.shape_cast %34 : vector<16x32xf32> to vector<2x8x32xf32>
    %36 = tpu.concatenate %35, %35, %35, %35 in 0 : vector<2x8x32xf32>, vector<2x8x32xf32>, vector<2x8x32xf32>, vector<2x8x32xf32> -> vector<8x8x32xf32>
    %37 = vector.extract_strided_slice %3 {offsets = [0, 0, 0, 0], sizes = [1, 8, 8, 32], strides = [1, 1, 1, 1]} : vector<8x8x8x32xf32> to vector<1x8x8x32xf32>
    %38 = vector.shape_cast %37 : vector<1x8x8x32xf32> to vector<8x8x32xf32>
    %39 = vector.extract_strided_slice %3 {offsets = [1, 0, 0, 0], sizes = [1, 8, 8, 32], strides = [1, 1, 1, 1]} : vector<8x8x8x32xf32> to vector<1x8x8x32xf32>
    %40 = vector.shape_cast %39 : vector<1x8x8x32xf32> to vector<8x8x32xf32>
    %41 = vector.extract_strided_slice %3 {offsets = [2, 0, 0, 0], sizes = [1, 8, 8, 32], strides = [1, 1, 1, 1]} : vector<8x8x8x32xf32> to vector<1x8x8x32xf32>
    %42 = vector.shape_cast %41 : vector<1x8x8x32xf32> to vector<8x8x32xf32>
    %43 = vector.extract_strided_slice %3 {offsets = [3, 0, 0, 0], sizes = [1, 8, 8, 32], strides = [1, 1, 1, 1]} : vector<8x8x8x32xf32> to vector<1x8x8x32xf32>
    %44 = vector.shape_cast %43 : vector<1x8x8x32xf32> to vector<8x8x32xf32>
    %45 = vector.extract_strided_slice %4 {offsets = [0, 0, 0, 0], sizes = [1, 8, 8, 8], strides = [1, 1, 1, 1]} : vector<2x8x8x8xf32> to vector<1x8x8x8xf32>
    %46 = vector.shape_cast %45 : vector<1x8x8x8xf32> to vector<8x8x8xf32>
    "tpu.trace_start"() <{level = 10 : i32, message = "nsd,nkd->nsk"}> : () -> ()
    %cst_17 = arith.constant dense<0.000000e+00> : vector<8x8x8xf32>
    %47 = tpu.matmul %36, %38, %cst_17 {dimension_numbers = #tpu.dot_dimension_numbers<[2], [2], [1], [1], [0, 0, 0, 1, 1, 1], [0], [0]>} : vector<8x8x32xf32>, vector<8x8x32xf32>, vector<8x8x8xf32> -> vector<8x8x8xf32>
    "tpu.trace_stop"() : () -> ()
    %48 = arith.addf %47, %46 : vector<8x8x8xf32>
    "tpu.trace_start"() <{level = 10 : i32, message = "nsd,nkd->nsk"}> : () -> ()
    %cst_18 = arith.constant dense<0.000000e+00> : vector<8x8x8xf32>
    %49 = tpu.matmul %36, %40, %cst_18 {dimension_numbers = #tpu.dot_dimension_numbers<[2], [2], [1], [1], [0, 0, 0, 1, 1, 1], [0], [0]>} : vector<8x8x32xf32>, vector<8x8x32xf32>, vector<8x8x8xf32> -> vector<8x8x8xf32>
    %cst_19 = arith.constant dense<0.000000e+00> : vector<8x8x8xf32>
    %50 = tpu.matmul %36, %42, %cst_19 {dimension_numbers = #tpu.dot_dimension_numbers<[2], [2], [1], [1], [0, 0, 0, 1, 1, 1], [0], [0]>} : vector<8x8x32xf32>, vector<8x8x32xf32>, vector<8x8x8xf32> -> vector<8x8x8xf32>
    "tpu.trace_stop"() : () -> ()
    "tpu.trace_start"() <{level = 10 : i32, message = "nqd,nkd->nqk"}> : () -> ()
    %cst_20 = arith.constant dense<0.000000e+00> : vector<8x8x8xf32>
    %51 = tpu.matmul %48, %49, %cst_20 {dimension_numbers = #tpu.dot_dimension_numbers<[2], [2], [1], [1], [0, 0, 0, 1, 1, 1], [0], [0]>} : vector<8x8x8xf32>, vector<8x8x8xf32>, vector<8x8x8xf32> -> vector<8x8x8xf32>
    "tpu.trace_stop"() : () -> ()
    %cst_21 = arith.constant 0.353553385 : f32
    %52 = vector.broadcast %cst_21 : f32 to vector<8x8x8xf32>
    %53 = arith.mulf %51, %52 : vector<8x8x8xf32>
    %cst_22 = arith.constant dense<0xFF800000> : vector<8x8xf32>
    %54 = vector.multi_reduction <maximumf>, %53, %cst_22 [2] : vector<8x8x8xf32> to vector<8x8xf32>
    %55 = vector.shape_cast %54 : vector<8x8xf32> to vector<8x8x1xf32>
    %56 = vector.broadcast %55 : vector<8x8x1xf32> to vector<8x8x8xf32>
    %57 = arith.subf %53, %56 : vector<8x8x8xf32>
    %58 = math.exp %57 : vector<8x8x8xf32>
    %cst_23 = arith.constant dense<0.000000e+00> : vector<8x8xf32>
    %59 = vector.multi_reduction <add>, %58, %cst_23 [2] : vector<8x8x8xf32> to vector<8x8xf32>
    %60 = vector.shape_cast %59 : vector<8x8xf32> to vector<8x8x1xf32>
    %61 = tpu.reciprocal %60 : vector<8x8x1xf32> -> vector<8x8x1xf32>
    %62 = vector.broadcast %61 : vector<8x8x1xf32> to vector<8x8x8xf32>
    %63 = arith.mulf %58, %62 : vector<8x8x8xf32>
    "tpu.trace_start"() <{level = 10 : i32, message = "nqk,nkd->nqd"}> : () -> ()
    %cst_24 = arith.constant dense<0.000000e+00> : vector<8x8x8xf32>
    %64 = tpu.matmul %63, %50, %cst_24 {dimension_numbers = #tpu.dot_dimension_numbers<[2], [1], [1], [2], [0, 0, 0, 1, 1, 2], [0], [0]>} : vector<8x8x8xf32>, vector<8x8x8xf32>, vector<8x8x8xf32> -> vector<8x8x8xf32>
    "tpu.trace_stop"() : () -> ()
    "tpu.trace_start"() <{level = 10 : i32, message = "nsk,nkd->nsd"}> : () -> ()
    %cst_25 = arith.constant dense<0.000000e+00> : vector<8x8x32xf32>
    %65 = tpu.matmul %64, %44, %cst_25 {dimension_numbers = #tpu.dot_dimension_numbers<[2], [1], [1], [2], [0, 0, 0, 1, 1, 2], [0], [0]>} : vector<8x8x8xf32>, vector<8x8x32xf32>, vector<8x8x32xf32> -> vector<8x8x32xf32>
    "tpu.trace_stop"() : () -> ()
    %66 = vector.shape_cast %65 : vector<8x8x32xf32> to vector<4x2x8x32xf32>
    %67 = vector.extract_strided_slice %66 {offsets = [0, 0, 0, 0], sizes = [1, 2, 8, 32], strides = [1, 1, 1, 1]} : vector<4x2x8x32xf32> to vector<1x2x8x32xf32>
    %68 = vector.shape_cast %67 : vector<1x2x8x32xf32> to vector<2x8x32xf32>
    %69 = vector.extract_strided_slice %66 {offsets = [1, 0, 0, 0], sizes = [1, 2, 8, 32], strides = [1, 1, 1, 1]} : vector<4x2x8x32xf32> to vector<1x2x8x32xf32>
    %70 = vector.shape_cast %69 : vector<1x2x8x32xf32> to vector<2x8x32xf32>
    %71 = arith.addf %68, %70 : vector<2x8x32xf32>
    %72 = vector.extract_strided_slice %66 {offsets = [2, 0, 0, 0], sizes = [1, 2, 8, 32], strides = [1, 1, 1, 1]} : vector<4x2x8x32xf32> to vector<1x2x8x32xf32>
    %73 = vector.shape_cast %72 : vector<1x2x8x32xf32> to vector<2x8x32xf32>
    %74 = arith.addf %71, %73 : vector<2x8x32xf32>
    %75 = vector.extract_strided_slice %66 {offsets = [3, 0, 0, 0], sizes = [1, 2, 8, 32], strides = [1, 1, 1, 1]} : vector<4x2x8x32xf32> to vector<1x2x8x32xf32>
    %76 = vector.shape_cast %75 : vector<1x2x8x32xf32> to vector<2x8x32xf32>
    %77 = arith.addf %74, %76 : vector<2x8x32xf32>
    %78 = vector.shape_cast %77 : vector<2x8x32xf32> to vector<16x32xf32>
    %79 = arith.addf %0, %78 : vector<16x32xf32>
    %80 = vector.broadcast %11 : vector<1x32xf32> to vector<16x32xf32>
    %81 = arith.addf %79, %80 : vector<16x32xf32>
    %cst_26 = arith.constant dense<0.000000e+00> : vector<16xf32>
    %82 = vector.multi_reduction <add>, %81, %cst_26 [1] : vector<16x32xf32> to vector<16xf32>
    %83 = vector.shape_cast %82 : vector<16xf32> to vector<16x1xf32>
    %cst_27 = arith.constant 3.125000e-02 : f32
    %84 = vector.broadcast %cst_27 : f32 to vector<16x1xf32>
    %85 = arith.mulf %83, %84 : vector<16x1xf32>
    %86 = vector.broadcast %85 : vector<16x1xf32> to vector<16x32xf32>
    %87 = arith.subf %81, %86 : vector<16x32xf32>
    %88 = arith.mulf %87, %87 : vector<16x32xf32>
    %cst_28 = arith.constant dense<0.000000e+00> : vector<16xf32>
    %89 = vector.multi_reduction <add>, %88, %cst_28 [1] : vector<16x32xf32> to vector<16xf32>
    %90 = vector.shape_cast %89 : vector<16xf32> to vector<16x1xf32>
    %cst_29 = arith.constant 0.0322580636 : f32
    %91 = vector.broadcast %cst_29 : f32 to vector<16x1xf32>
    %92 = arith.mulf %90, %91 : vector<16x1xf32>
    %93 = math.sqrt %92 : vector<16x1xf32>
    %cst_30 = arith.constant 9.99999997E-7 : f32
    %94 = vector.broadcast %cst_30 : f32 to vector<16x1xf32>
    %95 = arith.addf %93, %94 : vector<16x1xf32>
    %96 = tpu.reciprocal %95 : vector<16x1xf32> -> vector<16x1xf32>
    %97 = vector.broadcast %7 : vector<1x32xf32> to vector<16x32xf32>
    %98 = arith.mulf %97, %87 : vector<16x32xf32>
    %99 = vector.broadcast %96 : vector<16x1xf32> to vector<16x32xf32>
    %100 = arith.mulf %98, %99 : vector<16x32xf32>
    %101 = vector.broadcast %8 : vector<1x32xf32> to vector<16x32xf32>
    %102 = arith.addf %100, %101 : vector<16x32xf32>
    %103 = vector.shape_cast %102 : vector<16x32xf32> to vector<2x8x32xf32>
    %104 = tpu.concatenate %103, %103, %103, %103 in 0 : vector<2x8x32xf32>, vector<2x8x32xf32>, vector<2x8x32xf32>, vector<2x8x32xf32> -> vector<8x8x32xf32>
    %105 = vector.shape_cast %1 : vector<16x32xf32> to vector<2x8x32xf32>
    %106 = tpu.concatenate %105, %105, %105, %105 in 0 : vector<2x8x32xf32>, vector<2x8x32xf32>, vector<2x8x32xf32>, vector<2x8x32xf32> -> vector<8x8x32xf32>
    %107 = vector.extract_strided_slice %3 {offsets = [4, 0, 0, 0], sizes = [1, 8, 8, 32], strides = [1, 1, 1, 1]} : vector<8x8x8x32xf32> to vector<1x8x8x32xf32>
    %108 = vector.shape_cast %107 : vector<1x8x8x32xf32> to vector<8x8x32xf32>
    %109 = vector.extract_strided_slice %3 {offsets = [5, 0, 0, 0], sizes = [1, 8, 8, 32], strides = [1, 1, 1, 1]} : vector<8x8x8x32xf32> to vector<1x8x8x32xf32>
    %110 = vector.shape_cast %109 : vector<1x8x8x32xf32> to vector<8x8x32xf32>
    %111 = vector.extract_strided_slice %3 {offsets = [6, 0, 0, 0], sizes = [1, 8, 8, 32], strides = [1, 1, 1, 1]} : vector<8x8x8x32xf32> to vector<1x8x8x32xf32>
    %112 = vector.shape_cast %111 : vector<1x8x8x32xf32> to vector<8x8x32xf32>
    %113 = vector.extract_strided_slice %3 {offsets = [7, 0, 0, 0], sizes = [1, 8, 8, 32], strides = [1, 1, 1, 1]} : vector<8x8x8x32xf32> to vector<1x8x8x32xf32>
    %114 = vector.shape_cast %113 : vector<1x8x8x32xf32> to vector<8x8x32xf32>
    %115 = vector.extract_strided_slice %4 {offsets = [1, 0, 0, 0], sizes = [1, 8, 8, 8], strides = [1, 1, 1, 1]} : vector<2x8x8x8xf32> to vector<1x8x8x8xf32>
    %116 = vector.shape_cast %115 : vector<1x8x8x8xf32> to vector<8x8x8xf32>
    "tpu.trace_start"() <{level = 10 : i32, message = "nsd,nkd->nsk"}> : () -> ()
    %cst_31 = arith.constant dense<0.000000e+00> : vector<8x8x8xf32>
    %117 = tpu.matmul %104, %108, %cst_31 {dimension_numbers = #tpu.dot_dimension_numbers<[2], [2], [1], [1], [0, 0, 0, 1, 1, 1], [0], [0]>} : vector<8x8x32xf32>, vector<8x8x32xf32>, vector<8x8x8xf32> -> vector<8x8x8xf32>
    "tpu.trace_stop"() : () -> ()
    %118 = arith.addf %117, %116 : vector<8x8x8xf32>
    "tpu.trace_start"() <{level = 10 : i32, message = "nsd,nkd->nsk"}> : () -> ()
    %cst_32 = arith.constant dense<0.000000e+00> : vector<8x8x8xf32>
    %119 = tpu.matmul %106, %110, %cst_32 {dimension_numbers = #tpu.dot_dimension_numbers<[2], [2], [1], [1], [0, 0, 0, 1, 1, 1], [0], [0]>} : vector<8x8x32xf32>, vector<8x8x32xf32>, vector<8x8x8xf32> -> vector<8x8x8xf32>
    %cst_33 = arith.constant dense<0.000000e+00> : vector<8x8x8xf32>
    %120 = tpu.matmul %106, %112, %cst_33 {dimension_numbers = #tpu.dot_dimension_numbers<[2], [2], [1], [1], [0, 0, 0, 1, 1, 1], [0], [0]>} : vector<8x8x32xf32>, vector<8x8x32xf32>, vector<8x8x8xf32> -> vector<8x8x8xf32>
    "tpu.trace_stop"() : () -> ()
    "tpu.trace_start"() <{level = 10 : i32, message = "nqd,nkd->nqk"}> : () -> ()
    %cst_34 = arith.constant dense<0.000000e+00> : vector<8x8x8xf32>
    %121 = tpu.matmul %118, %119, %cst_34 {dimension_numbers = #tpu.dot_dimension_numbers<[2], [2], [1], [1], [0, 0, 0, 1, 1, 1], [0], [0]>} : vector<8x8x8xf32>, vector<8x8x8xf32>, vector<8x8x8xf32> -> vector<8x8x8xf32>
    "tpu.trace_stop"() : () -> ()
    %cst_35 = arith.constant 0.353553385 : f32
    %122 = vector.broadcast %cst_35 : f32 to vector<8x8x8xf32>
    %123 = arith.mulf %121, %122 : vector<8x8x8xf32>
    %cst_36 = arith.constant dense<0xFF800000> : vector<8x8xf32>
    %124 = vector.multi_reduction <maximumf>, %123, %cst_36 [2] : vector<8x8x8xf32> to vector<8x8xf32>
    %125 = vector.shape_cast %124 : vector<8x8xf32> to vector<8x8x1xf32>
    %126 = vector.broadcast %125 : vector<8x8x1xf32> to vector<8x8x8xf32>
    %127 = arith.subf %123, %126 : vector<8x8x8xf32>
    %128 = math.exp %127 : vector<8x8x8xf32>
    %cst_37 = arith.constant dense<0.000000e+00> : vector<8x8xf32>
    %129 = vector.multi_reduction <add>, %128, %cst_37 [2] : vector<8x8x8xf32> to vector<8x8xf32>
    %130 = vector.shape_cast %129 : vector<8x8xf32> to vector<8x8x1xf32>
    %131 = tpu.reciprocal %130 : vector<8x8x1xf32> -> vector<8x8x1xf32>
    %132 = vector.broadcast %131 : vector<8x8x1xf32> to vector<8x8x8xf32>
    %133 = arith.mulf %128, %132 : vector<8x8x8xf32>
    "tpu.trace_start"() <{level = 10 : i32, message = "nqk,nkd->nqd"}> : () -> ()
    %cst_38 = arith.constant dense<0.000000e+00> : vector<8x8x8xf32>
    %134 = tpu.matmul %133, %120, %cst_38 {dimension_numbers = #tpu.dot_dimension_numbers<[2], [1], [1], [2], [0, 0, 0, 1, 1, 2], [0], [0]>} : vector<8x8x8xf32>, vector<8x8x8xf32>, vector<8x8x8xf32> -> vector<8x8x8xf32>
    "tpu.trace_stop"() : () -> ()
    "tpu.trace_start"() <{level = 10 : i32, message = "nsk,nkd->nsd"}> : () -> ()
    %cst_39 = arith.constant dense<0.000000e+00> : vector<8x8x32xf32>
    %135 = tpu.matmul %134, %114, %cst_39 {dimension_numbers = #tpu.dot_dimension_numbers<[2], [1], [1], [2], [0, 0, 0, 1, 1, 2], [0], [0]>} : vector<8x8x8xf32>, vector<8x8x32xf32>, vector<8x8x32xf32> -> vector<8x8x32xf32>
    "tpu.trace_stop"() : () -> ()
    %136 = vector.shape_cast %135 : vector<8x8x32xf32> to vector<4x2x8x32xf32>
    %137 = vector.extract_strided_slice %136 {offsets = [0, 0, 0, 0], sizes = [1, 2, 8, 32], strides = [1, 1, 1, 1]} : vector<4x2x8x32xf32> to vector<1x2x8x32xf32>
    %138 = vector.shape_cast %137 : vector<1x2x8x32xf32> to vector<2x8x32xf32>
    %139 = vector.extract_strided_slice %136 {offsets = [1, 0, 0, 0], sizes = [1, 2, 8, 32], strides = [1, 1, 1, 1]} : vector<4x2x8x32xf32> to vector<1x2x8x32xf32>
    %140 = vector.shape_cast %139 : vector<1x2x8x32xf32> to vector<2x8x32xf32>
    %141 = arith.addf %138, %140 : vector<2x8x32xf32>
    %142 = vector.extract_strided_slice %136 {offsets = [2, 0, 0, 0], sizes = [1, 2, 8, 32], strides = [1, 1, 1, 1]} : vector<4x2x8x32xf32> to vector<1x2x8x32xf32>
    %143 = vector.shape_cast %142 : vector<1x2x8x32xf32> to vector<2x8x32xf32>
    %144 = arith.addf %141, %143 : vector<2x8x32xf32>
    %145 = vector.extract_strided_slice %136 {offsets = [3, 0, 0, 0], sizes = [1, 2, 8, 32], strides = [1, 1, 1, 1]} : vector<4x2x8x32xf32> to vector<1x2x8x32xf32>
    %146 = vector.shape_cast %145 : vector<1x2x8x32xf32> to vector<2x8x32xf32>
    %147 = arith.addf %144, %146 : vector<2x8x32xf32>
    %148 = vector.shape_cast %147 : vector<2x8x32xf32> to vector<16x32xf32>
    %149 = arith.addf %81, %148 : vector<16x32xf32>
    %150 = vector.broadcast %12 : vector<1x32xf32> to vector<16x32xf32>
    %151 = arith.addf %149, %150 : vector<16x32xf32>
    %cst_40 = arith.constant dense<0.000000e+00> : vector<16xf32>
    %152 = vector.multi_reduction <add>, %151, %cst_40 [1] : vector<16x32xf32> to vector<16xf32>
    %153 = vector.shape_cast %152 : vector<16xf32> to vector<16x1xf32>
    %cst_41 = arith.constant 3.125000e-02 : f32
    %154 = vector.broadcast %cst_41 : f32 to vector<16x1xf32>
    %155 = arith.mulf %153, %154 : vector<16x1xf32>
    %156 = vector.broadcast %155 : vector<16x1xf32> to vector<16x32xf32>
    %157 = arith.subf %151, %156 : vector<16x32xf32>
    %158 = arith.mulf %157, %157 : vector<16x32xf32>
    %cst_42 = arith.constant dense<0.000000e+00> : vector<16xf32>
    %159 = vector.multi_reduction <add>, %158, %cst_42 [1] : vector<16x32xf32> to vector<16xf32>
    %160 = vector.shape_cast %159 : vector<16xf32> to vector<16x1xf32>
    %cst_43 = arith.constant 0.0322580636 : f32
    %161 = vector.broadcast %cst_43 : f32 to vector<16x1xf32>
    %162 = arith.mulf %160, %161 : vector<16x1xf32>
    %163 = math.sqrt %162 : vector<16x1xf32>
    %cst_44 = arith.constant 9.99999997E-7 : f32
    %164 = vector.broadcast %cst_44 : f32 to vector<16x1xf32>
    %165 = arith.addf %163, %164 : vector<16x1xf32>
    %166 = tpu.reciprocal %165 : vector<16x1xf32> -> vector<16x1xf32>
    %167 = vector.broadcast %9 : vector<1x32xf32> to vector<16x32xf32>
    %168 = arith.mulf %167, %157 : vector<16x32xf32>
    %169 = vector.broadcast %166 : vector<16x1xf32> to vector<16x32xf32>
    %170 = arith.mulf %168, %169 : vector<16x32xf32>
    %171 = vector.broadcast %10 : vector<1x32xf32> to vector<16x32xf32>
    %172 = arith.addf %170, %171 : vector<16x32xf32>
    %c0_45 = arith.constant 0 : index
    %c0_46 = arith.constant 0 : index
    %173 = vector.load %arg5[%c0_45, %c0_46] : memref<32x512xf32, #tpu.memory_space<vmem>>, vector<32x512xf32>
    %cst_47 = arith.constant dense<0.000000e+00> : vector<16x512xf32>
    %174 = tpu.matmul %172, %173, %cst_47 {dimension_numbers = #tpu.dot_dimension_numbers<[1], [0], [0], [1], [0, 0, 1, 1], [], []>} : vector<16x32xf32>, vector<32x512xf32>, vector<16x512xf32> -> vector<16x512xf32>
    %c0_48 = arith.constant 0 : index
    %c0_49 = arith.constant 0 : index
    %175 = vector.load %arg6[%c0_48, %c0_49] : memref<1x512xf32, #tpu.memory_space<vmem>>, vector<1x512xf32>
    %176 = vector.broadcast %175 : vector<1x512xf32> to vector<16x512xf32>
    %177 = arith.addf %174, %176 : vector<16x512xf32>
    %cst_50 = arith.constant 0.000000e+00 : f32
    %178 = vector.broadcast %cst_50 : f32 to vector<16x512xf32>
    %179 = arith.maximumf %177, %178 : vector<16x512xf32>
    %c0_51 = arith.constant 0 : index
    %c0_52 = arith.constant 0 : index
    %180 = vector.load %arg7[%c0_51, %c0_52] : memref<512x32xf32, #tpu.memory_space<vmem>>, vector<512x32xf32>
    %cst_53 = arith.constant dense<0.000000e+00> : vector<16x32xf32>
    %181 = tpu.matmul %179, %180, %cst_53 {dimension_numbers = #tpu.dot_dimension_numbers<[1], [0], [0], [1], [0, 0, 1, 1], [], []>} : vector<16x512xf32>, vector<512x32xf32>, vector<16x32xf32> -> vector<16x32xf32>
    %182 = arith.addf %151, %181 : vector<16x32xf32>
    %183 = vector.broadcast %13 : vector<1x32xf32> to vector<16x32xf32>
    %184 = arith.addf %182, %183 : vector<16x32xf32>
    %c0_54 = arith.constant 0 : index
    %c0_55 = arith.constant 0 : index
    %185 = vector.load %arg8[%c0_54, %c0_55] : memref<16x32xf32, #tpu.memory_space<vmem>>, vector<16x32xf32>
    tpu.vector_store %arg8[%c0_54, %c0_55], %184 {strides = array<i32>} : memref<16x32xf32, #tpu.memory_space<vmem>>, vector<16x32xf32>,
    return
  }
}

</mosaic_0001>

<llo_original>
// kernel: tpu_custom_call.1
$region0: #{tpu_custom_call.1}
  #allocation0 [shape = 'u32[]', space=smem, size = 0x4, offset = 0x4, fixed_abs, tag = 'smem constant byte address 0x4 - core index']
  #allocation1 [shape = 'u32[72,128]{1,0:T(1,128)}', space=vmem, size = 0x9000, scoped, tag = 'internal scratch']
  %s0 = inlined_call_operand.hbm [shape: f32[16,32], index: 0, kind: input, shape index: {}]
  %s1 = inlined_call_operand.hbm [shape: f32[16,32], index: 1, kind: input, shape index: {}]
  %s2 = inlined_call_operand.hbm [shape: f32[16,32], index: 2, kind: input, shape index: {}]
  %s3 = inlined_call_operand.vmem [shape: f32[2,8,8,8], index: 3, kind: input, shape index: {}]
  %s4 = inlined_call_operand.vmem [shape: f32[8,8,8,32], index: 4, kind: input, shape index: {}]
  %s5 = inlined_call_operand.hbm [shape: f32[32,512], index: 5, kind: input, shape index: {}]
  %s6 = inlined_call_operand.hbm [shape: f32[1,512], index: 6, kind: input, shape index: {}]
  %s7 = inlined_call_operand.vmem [shape: f32[512,32], index: 7, kind: input, shape index: {}]
  %s8 = inlined_call_operand.hbm [shape: f32[16,32], index: 8, kind: output, shape index: {}]
  %s9 = sld [smem:[#allocation0]]
  $region62: #{tpu_custom_call.1} parent=0
    _
  %s11 = ssub.s32 1, %s9
  %s12 = scalar_select 0, %s11, %s9
  $region1: #{tpu_custom_call.1} parent=0
    #allocation2 [shape = 'u8[8192]{0}', space=vmem, size = 0x2000, scoped, tag = 'input window, operand 0, single buffered']
    #allocation3 [shape = 's32[1]{0}', space=sflag, size = 0x4, scoped, tag = 'scoped memory for tpu_custom_call.1']
    #allocation4 [shape = 's32[1]{0}', space=sflag, size = 0x4, scoped, tag = 'scoped memory for tpu_custom_call.1']
    #allocation5 [shape = 'u8[8192]{0}', space=vmem, size = 0x2000, scoped, tag = 'input window, operand 1, single buffered']
    #allocation6 [shape = 's32[1]{0}', space=sflag, size = 0x4, scoped, tag = 'scoped memory for tpu_custom_call.1']
    #allocation7 [shape = 'u8[8192]{0}', space=vmem, size = 0x2000, scoped, tag = 'input window, operand 2, single buffered']
    #allocation8 [shape = 'u8[65536]{0}', space=vmem, size = 0x10000, scoped, tag = 'input window, operand 5, single buffered']
    #allocation9 [shape = 's32[1]{0}', space=sflag, size = 0x4, scoped, tag = 'scoped memory for tpu_custom_call.1']
    #allocation10 [shape = 'u8[2048]{0}', space=vmem, size = 0x800, scoped, tag = 'input window, operand 6, single buffered']
    #allocation11 [shape = 'u8[8192]{0}', space=vmem, size = 0x2000, scoped, tag = 'output window, operand 0, single buffered']
    %13 = vsyncpa [#allocation3], 0
    %14 = vsyncpa [#allocation6], 0
    %15 = vsyncpa [#allocation9], 0
    %16 = vsyncpa [#allocation4], 0
    // Predicated region
    $region2: #{tpu_custom_call.1} parent=1 // pred_check
      _
    $region3: #{tpu_custom_call.1} parent=1 // pred_check_branch
      %18 = sbr.rel (0) target = $region5
    $region4: #{tpu_custom_call.1} parent=1 // pred_region
      %20 = vsyncadd [#allocation3], 0
      %s21 = sshll.u32 %s0, 4
      %s22 = int_to_ptr.hbm [resolvable:$true] %s21
      %s23 = sshll.u32 [#allocation2], 4
      %s24 = int_to_ptr.vmem [resolvable:$true] %s23
      %29 = dma.hbm_to_vmem [thread:$0]  %s22, 256, %s24, [#allocation3], 128, 128, 8
    $region5: #{tpu_custom_call.1} parent=1 // pred_fallthru
      _
    // Predicated region
    $region6: #{tpu_custom_call.1} parent=1 // pred_check
      _
    $region7: #{tpu_custom_call.1} parent=1 // pred_check_branch
      %31 = sbr.rel (0) target = $region9
    $region8: #{tpu_custom_call.1} parent=1 // pred_region
      %33 = vsyncadd [#allocation6], 0
      %s34 = sshll.u32 %s1, 4
      %s35 = int_to_ptr.hbm [resolvable:$true] %s34
      %s36 = sshll.u32 [#allocation5], 4
      %s37 = int_to_ptr.vmem [resolvable:$true] %s36
      %42 = dma.hbm_to_vmem [thread:$0]  %s35, 256, %s37, [#allocation6], 128, 128, 8
    $region9: #{tpu_custom_call.1} parent=1 // pred_fallthru
      _
    // Predicated region
    $region10: #{tpu_custom_call.1} parent=1 // pred_check
      _
    $region11: #{tpu_custom_call.1} parent=1 // pred_check_branch
      %44 = sbr.rel (0) target = $region13
    $region12: #{tpu_custom_call.1} parent=1 // pred_region
      %46 = vsyncadd [#allocation6], 0
      %s47 = sshll.u32 %s2, 4
      %s48 = int_to_ptr.hbm [resolvable:$true] %s47
      %s49 = sshll.u32 [#allocation7], 4
      %s50 = int_to_ptr.vmem [resolvable:$true] %s49
      %55 = dma.hbm_to_vmem [thread:$0]  %s48, 256, %s50, [#allocation6], 128, 128, 8
    $region13: #{tpu_custom_call.1} parent=1 // pred_fallthru
      _
    // Predicated region
    $region14: #{tpu_custom_call.1} parent=1 // pred_check
      _
    $region15: #{tpu_custom_call.1} parent=1 // pred_check_branch
      %57 = sbr.rel (0) target = $region17
    $region16: #{tpu_custom_call.1} parent=1 // pred_region
      _
    $region17: #{tpu_custom_call.1} parent=1 // pred_fallthru
      _
    // Predicated region
    $region18: #{tpu_custom_call.1} parent=1 // pred_check
      _
    $region19: #{tpu_custom_call.1} parent=1 // pred_check_branch
      %59 = sbr.rel (0) target = $region21
    $region20: #{tpu_custom_call.1} parent=1 // pred_region
      _
    $region21: #{tpu_custom_call.1} parent=1 // pred_fallthru
      _
    // Predicated region
    $region22: #{tpu_custom_call.1} parent=1 // pred_check
      _
    $region23: #{tpu_custom_call.1} parent=1 // pred_check_branch
      %61 = sbr.rel (0) target = $region25
    $region24: #{tpu_custom_call.1} parent=1 // pred_region
      %63 = vsyncadd [#allocation9], 0
      %s64 = sshll.u32 %s5, 4
      %s65 = int_to_ptr.hbm [resolvable:$true] %s64
      %s66 = sshll.u32 [#allocation8], 4
      %s67 = int_to_ptr.vmem [resolvable:$true] %s66
      %72 = dma.hbm_to_vmem [thread:$0]  %s65, 2048, %s67, [#allocation9], 512, 512, 32
    $region25: #{tpu_custom_call.1} parent=1 // pred_fallthru
      _
    // Predicated region
    $region26: #{tpu_custom_call.1} parent=1 // pred_check
      _
    $region27: #{tpu_custom_call.1} parent=1 // pred_check_branch
      %74 = sbr.rel (0) target = $region29
    $region28: #{tpu_custom_call.1} parent=1 // pred_region
      %76 = vsyncadd [#allocation9], 0
      %s78 = sshll.u32 %s6, 4
      %s79 = int_to_ptr.hbm [resolvable:$true] %s78
      %s80 = sshll.u32 [#allocation10], 4
      %s81 = int_to_ptr.vmem [resolvable:$true] %s80
      %83 = dma.hbm_to_vmem [thread:$0]  %s79, 64, %s81, [#allocation9]
    $region29: #{tpu_custom_call.1} parent=1 // pred_fallthru
      _
    // Predicated region
    $region30: #{tpu_custom_call.1} parent=1 // pred_check
      _
    $region31: #{tpu_custom_call.1} parent=1 // pred_check_branch
      %85 = sbr.rel (0) target = $region33
    $region32: #{tpu_custom_call.1} parent=1 // pred_region
      _
    $region33: #{tpu_custom_call.1} parent=1 // pred_fallthru
      _
    // Predicated region
    $region34: #{tpu_custom_call.1} parent=1 // pred_check
      _
    $region35: #{tpu_custom_call.1} parent=1 // pred_check_branch
      %87 = sbr.rel (0) target = $region37
    $region36: #{tpu_custom_call.1} parent=1 // pred_region
      %89 = dma.done [#allocation3], 256
    $region37: #{tpu_custom_call.1} parent=1 // pred_fallthru
      _
    // Predicated region
    $region38: #{tpu_custom_call.1} parent=1 // pred_check
      _
    $region39: #{tpu_custom_call.1} parent=1 // pred_check_branch
      %91 = sbr.rel (0) target = $region41
    $region40: #{tpu_custom_call.1} parent=1 // pred_region
      %93 = dma.done [#allocation6], 256
    $region41: #{tpu_custom_call.1} parent=1 // pred_fallthru
      _
    // Predicated region
    $region42: #{tpu_custom_call.1} parent=1 // pred_check
      _
    $region43: #{tpu_custom_call.1} parent=1 // pred_check_branch
      %95 = sbr.rel (0) target = $region45
    $region44: #{tpu_custom_call.1} parent=1 // pred_region
      %97 = dma.done [#allocation6], 256
    $region45: #{tpu_custom_call.1} parent=1 // pred_fallthru
      _
    // Predicated region
    $region46: #{tpu_custom_call.1} parent=1 // pred_check
      _
    $region47: #{tpu_custom_call.1} parent=1 // pred_check_branch
      %99 = sbr.rel (0) target = $region49
    $region48: #{tpu_custom_call.1} parent=1 // pred_region
      %101 = dma.done [#allocation9], 2048
    $region49: #{tpu_custom_call.1} parent=1 // pred_fallthru
      _
    // Predicated region
    $region50: #{tpu_custom_call.1} parent=1 // pred_check
      _
    $region51: #{tpu_custom_call.1} parent=1 // pred_check_branch
      %103 = sbr.rel (0) target = $region53
    $region52: #{tpu_custom_call.1} parent=1 // pred_region
      %105 = dma.done [#allocation9], 64
    $region53: #{tpu_custom_call.1} parent=1 // pred_fallthru
      _
    %v106 = vld [vmem:[#allocation2] sm:$0xff]
    %v107 = vld [vmem:[#allocation2 + $0x8] sm:$0xff]
    %v108 = vld [vmem:[#allocation5] sm:$0xff]
    %v109 = vld [vmem:[#allocation5 + $0x8] sm:$0xff]
    %v110 = vld [vmem:[#allocation7] sm:$0xff]
    %v111 = vld [vmem:[#allocation7 + $0x8] sm:$0xff]
    %v112 = vld [vmem:[%s4] sm:$0xff]
    %v113 = vld [vmem:[%s4 + $0x8] sm:$0xff]
    %v114 = vld [vmem:[%s4 + $0x10] sm:$0xff]
    %v115 = vld [vmem:[%s4 + $0x18] sm:$0xff]
    %v116 = vld [vmem:[%s4 + $0x20] sm:$0xff]
    %v117 = vld [vmem:[%s4 + $0x28] sm:$0xff]
    %v118 = vld [vmem:[%s4 + $0x30] sm:$0xff]
    %v119 = vld [vmem:[%s4 + $0x38] sm:$0xff]
    %v120 = vld [vmem:[%s4 + $0x40] sm:$0xff]
    %v121 = vld [vmem:[%s4 + $0x48] sm:$0xff]
    %v122 = vld [vmem:[%s4 + $0x50] sm:$0xff]
    %v123 = vld [vmem:[%s4 + $0x58] sm:$0xff]
    %v124 = vld [vmem:[%s4 + $0x60] sm:$0xff]
    %v125 = vld [vmem:[%s4 + $0x68] sm:$0xff]
    %v126 = vld [vmem:[%s4 + $0x70] sm:$0xff]
    %v127 = vld [vmem:[%s4 + $0x78] sm:$0xff]
    %v128 = vld [vmem:[%s4 + $0x80] sm:$0xff]
    %v129 = vld [vmem:[%s4 + $0x88] sm:$0xff]
    %v130 = vld [vmem:[%s4 + $0x90] sm:$0xff]
    %v131 = vld [vmem:[%s4 + $0x98] sm:$0xff]
    %v132 = vld [vmem:[%s4 + $0xa0] sm:$0xff]
    %v133 = vld [vmem:[%s4 + $0xa8] sm:$0xff]
    %v134 = vld [vmem:[%s4 + $0xb0] sm:$0xff]
    %v135 = vld [vmem:[%s4 + $0xb8] sm:$0xff]
    %v136 = vld [vmem:[%s4 + $0xc0] sm:$0xff]
    %v137 = vld [vmem:[%s4 + $0xc8] sm:$0xff]
    %v138 = vld [vmem:[%s4 + $0xd0] sm:$0xff]
    %v139 = vld [vmem:[%s4 + $0xd8] sm:$0xff]
    %v140 = vld [vmem:[%s4 + $0xe0] sm:$0xff]
    %v141 = vld [vmem:[%s4 + $0xe8] sm:$0xff]
    %v142 = vld [vmem:[%s4 + $0xf0] sm:$0xff]
    %v143 = vld [vmem:[%s4 + $0xf8] sm:$0xff]
    %v144 = vld [vmem:[%s4 + $0x100] sm:$0xff]
    %v145 = vld [vmem:[%s4 + $0x108] sm:$0xff]
    %v146 = vld [vmem:[%s4 + $0x110] sm:$0xff]
    %v147 = vld [vmem:[%s4 + $0x118] sm:$0xff]
    %v148 = vld [vmem:[%s4 + $0x120] sm:$0xff]
    %v149 = vld [vmem:[%s4 + $0x128] sm:$0xff]
    %v150 = vld [vmem:[%s4 + $0x130] sm:$0xff]
    %v151 = vld [vmem:[%s4 + $0x138] sm:$0xff]
    %v152 = vld [vmem:[%s4 + $0x140] sm:$0xff]
    %v153 = vld [vmem:[%s4 + $0x148] sm:$0xff]
    %v154 = vld [vmem:[%s4 + $0x150] sm:$0xff]
    %v155 = vld [vmem:[%s4 + $0x158] sm:$0xff]
    %v156 = vld [vmem:[%s4 + $0x160] sm:$0xff]
    %v157 = vld [vmem:[%s4 + $0x168] sm:$0xff]
    %v158 = vld [vmem:[%s4 + $0x170] sm:$0xff]
    %v159 = vld [vmem:[%s4 + $0x178] sm:$0xff]
    %v160 = vld [vmem:[%s4 + $0x180] sm:$0xff]
    %v161 = vld [vmem:[%s4 + $0x188] sm:$0xff]
    %v162 = vld [vmem:[%s4 + $0x190] sm:$0xff]
    %v163 = vld [vmem:[%s4 + $0x198] sm:$0xff]
    %v164 = vld [vmem:[%s4 + $0x1a0] sm:$0xff]
    %v165 = vld [vmem:[%s4 + $0x1a8] sm:$0xff]
    %v166 = vld [vmem:[%s4 + $0x1b0] sm:$0xff]
    %v167 = vld [vmem:[%s4 + $0x1b8] sm:$0xff]
    %v168 = vld [vmem:[%s4 + $0x1c0] sm:$0xff]
    %v169 = vld [vmem:[%s4 + $0x1c8] sm:$0xff]
    %v170 = vld [vmem:[%s4 + $0x1d0] sm:$0xff]
    %v171 = vld [vmem:[%s4 + $0x1d8] sm:$0xff]
    %v172 = vld [vmem:[%s4 + $0x1e0] sm:$0xff]
    %v173 = vld [vmem:[%s4 + $0x1e8] sm:$0xff]
    %v174 = vld [vmem:[%s4 + $0x1f0] sm:$0xff]
    %v175 = vld [vmem:[%s4 + $0x1f8] sm:$0xff]
    %v176 = vld [vmem:[%s3] sm:$0xff]
    %v177 = vld [vmem:[%s3 + $0x8] sm:$0xff]
    %v178 = vld [vmem:[%s3 + $0x10] sm:$0xff]
    %v179 = vld [vmem:[%s3 + $0x18] sm:$0xff]
    %v180 = vld [vmem:[%s3 + $0x20] sm:$0xff]
    %v181 = vld [vmem:[%s3 + $0x28] sm:$0xff]
    %v182 = vld [vmem:[%s3 + $0x30] sm:$0xff]
    %v183 = vld [vmem:[%s3 + $0x38] sm:$0xff]
    %v184 = vld [vmem:[%s3 + $0x40] sm:$0xff]
    %v185 = vld [vmem:[%s3 + $0x48] sm:$0xff]
    %v186 = vld [vmem:[%s3 + $0x50] sm:$0xff]
    %v187 = vld [vmem:[%s3 + $0x58] sm:$0xff]
    %v188 = vld [vmem:[%s3 + $0x60] sm:$0xff]
    %v189 = vld [vmem:[%s3 + $0x68] sm:$0xff]
    %v190 = vld [vmem:[%s3 + $0x70] sm:$0xff]
    %v191 = vld [vmem:[%s3 + $0x78] sm:$0xff]
    %vm192 = vcmask 261120
    %v193 = vsel %vm192, %v106, 0.0
    %194 = vadd.xlane.f32.xlu0 %v193
    %v195 = vpop.xlane.xlu0 %194
    %v196 = vsel %vm192, %v107, 0.0
    %197 = vadd.xlane.f32.xlu0 %v196
    %v198 = vpop.xlane.xlu0 %197
    %v199 = vmul.f32 %v195, 0.03125
    %v200 = vmul.f32 %v198, 0.03125
    %v201 = vsub.f32 %v106, %v199
    %v202 = vsub.f32 %v107, %v200
    %v203 = vmul.f32 %v201, %v201
    %v204 = vmul.f32 %v202, %v202
    %v205 = vsel %vm192, %v203, 0.0
    %206 = vadd.xlane.f32.xlu0 %v205
    %v207 = vpop.xlane.xlu0 %206
    %v208 = vsel %vm192, %v204, 0.0
    %209 = vadd.xlane.f32.xlu0 %v208
    %v210 = vpop.xlane.xlu0 %209
    %v211 = vmul.f32 %v207, 0.032258064
    %v212 = vmul.f32 %v210, 0.032258064
    %v213 = vrsqrt.pop %v211
    %v214 = vmul.f32 %v213, %v211
    %v215 = vmul.f32 %v214, %v213
    %v216 = vmul.f32 0.5, %v215
    %v217 = vsub.f32 1.5, %v216
    %v218 = vmul.f32 %v213, %v217
    %v219 = vmul.f32 %v211, %v218
    %vm220 = vcmp.eq.f32.partialorder %v211, inf
    %v221 = vsel %vm220, %v211, %v219
    %vm222 = vcmp.eq.f32.partialorder %v211, 0.0
    %v223 = vand.u32 %v211, 2147483648
    %v224 = vsel %vm222, %v223, %v221
    %v225 = vrsqrt.pop %v212
    %v226 = vmul.f32 %v225, %v212
    %v227 = vmul.f32 %v226, %v225
    %v228 = vmul.f32 0.5, %v227
    %v229 = vsub.f32 1.5, %v228
    %v230 = vmul.f32 %v225, %v229
    %v231 = vmul.f32 %v212, %v230
    %vm232 = vcmp.eq.f32.partialorder %v212, inf
    %v233 = vsel %vm232, %v212, %v231
    %vm234 = vcmp.eq.f32.partialorder %v212, 0.0
    %v235 = vand.u32 %v212, 2147483648
    %v236 = vsel %vm234, %v235, %v233
    %v237 = vadd.f32 %v224, 1e-06
    %v238 = vadd.f32 %v236, 1e-06
    %v239 = vrcp.pop %v237
    %v240 = vmul.f32 %v237, %v239
    %v241 = vsub.f32 1.0, %v240
    %v242 = vmul.f32 %v239, %v241
    %v243 = vadd.f32 %v239, %v242
    %vm244 = vweird.f32 %v237
    %vm245 = vweird.f32 %v239
    %vm246 = vmor %vm244, %vm245
    %v247 = vsel %vm246, %v239, %v243
    %v248 = vand.u32 2147483647, %v237
    %vm249 = vcmp.eq.f32.partialorder %v248, 8.507059e+37
    %v250 = vand.u32 %v237, 2147483648
    %v251 = vor.u32 1.1754944e-38, %v250
    %v252 = vsel %vm249, %v251, %v247
    %v253 = vrcp.pop %v238
    %v254 = vmul.f32 %v238, %v253
    %v255 = vsub.f32 1.0, %v254
    %v256 = vmul.f32 %v253, %v255
    %v257 = vadd.f32 %v253, %v256
    %vm258 = vweird.f32 %v238
    %vm259 = vweird.f32 %v253
    %vm260 = vmor %vm258, %vm259
    %v261 = vsel %vm260, %v253, %v257
    %v262 = vand.u32 2147483647, %v238
    %vm263 = vcmp.eq.f32.partialorder %v262, 8.507059e+37
    %v264 = vand.u32 %v238, 2147483648
    %v265 = vor.u32 1.1754944e-38, %v264
    %v266 = vsel %vm263, %v265, %v261
    %v267 = vperm.slane %v110, 0
    %v268 = vmul.f32 %v267, %v201
    %v269 = vmul.f32 %v267, %v202
    %v270 = vmul.f32 %v268, %v252
    %v271 = vmul.f32 %v269, %v266
    %v272 = vperm.slane %v110, 1
    %v273 = vadd.f32 %v270, %v272
    %v274 = vadd.f32 %v271, %v272
    %v276 = vsel %vm192, %v273, 0
    %v279 = vsel %vm192, %v112, 0
    %281 = vmatpush.xpose.msra.mxu0 0.0
    %282 = vmatpush.xpose.msra.mxu0 0.0
    %283 = vmatpush.xpose.msra.mxu0 0.0
    %284 = vmatpush.xpose.msra.mxu0 0.0
    %285 = vmatpush.xpose.msra.mxu0 0.0
    %286 = vmatpush.xpose.msra.mxu0 0.0
    %287 = vmatpush.xpose.msra.mxu0 0.0
    %288 = vmatpush.xpose.msra.mxu0 0.0
    %289 = vmatpush.xpose.msra.mxu0 0.0
    %290 = vmatpush.xpose.msra.mxu0 0.0
    %291 = vmatpush.xpose.msra.mxu0 0.0
    %292 = vmatpush.xpose.msra.mxu0 0.0
    %293 = vmatpush.xpose.msra.mxu0 0.0
    %294 = vmatpush.xpose.msra.mxu0 0.0
    %295 = vmatpush.xpose.msra.mxu0 0.0
    %296 = vmatpush.xpose.msra.mxu0 %v279
    %297 = vmatmul.f32.gmra.mxu0 %v276
    %v298 = vpop.f32.mrf.mxu0
    %v299 = vadd.f32 %v176, %v298
    %300 = vdwg.mxu0
    %v302 = vsel %vm192, %v274, 0
    %v305 = vsel %vm192, %v113, 0
    %307 = vmatpush.xpose.msra.mxu0 0.0
    %308 = vmatpush.xpose.msra.mxu0 0.0
    %309 = vmatpush.xpose.msra.mxu0 0.0
    %310 = vmatpush.xpose.msra.mxu0 0.0
    %311 = vmatpush.xpose.msra.mxu0 0.0
    %312 = vmatpush.xpose.msra.mxu0 0.0
    %313 = vmatpush.xpose.msra.mxu0 0.0
    %314 = vmatpush.xpose.msra.mxu0 0.0
    %315 = vmatpush.xpose.msra.mxu0 0.0
    %316 = vmatpush.xpose.msra.mxu0 0.0
    %317 = vmatpush.xpose.msra.mxu0 0.0
    %318 = vmatpush.xpose.msra.mxu0 0.0
    %319 = vmatpush.xpose.msra.mxu0 0.0
    %320 = vmatpush.xpose.msra.mxu0 0.0
    %321 = vmatpush.xpose.msra.mxu0 0.0
    %322 = vmatpush.xpose.msra.mxu0 %v305
    %323 = vmatmul.f32.gmra.mxu0 %v302
    %v324 = vpop.f32.mrf.mxu0
    %v325 = vadd.f32 %v177, %v324
    %326 = vdwg.mxu0
    %v328 = vsel %vm192, %v114, 0
    %330 = vmatpush.xpose.msra.mxu0 0.0
    %331 = vmatpush.xpose.msra.mxu0 0.0
    %332 = vmatpush.xpose.msra.mxu0 0.0
    %333 = vmatpush.xpose.msra.mxu0 0.0
    %334 = vmatpush.xpose.msra.mxu0 0.0
    %335 = vmatpush.xpose.msra.mxu0 0.0
    %336 = vmatpush.xpose.msra.mxu0 0.0
    %337 = vmatpush.xpose.msra.mxu0 0.0
    %338 = vmatpush.xpose.msra.mxu0 0.0
    %339 = vmatpush.xpose.msra.mxu0 0.0
    %340 = vmatpush.xpose.msra.mxu0 0.0
    %341 = vmatpush.xpose.msra.mxu0 0.0
    %342 = vmatpush.xpose.msra.mxu0 0.0
    %343 = vmatpush.xpose.msra.mxu0 0.0
    %344 = vmatpush.xpose.msra.mxu0 0.0
    %345 = vmatpush.xpose.msra.mxu0 %v328
    %346 = vmatmul.f32.gmra.mxu0 %v276
    %v347 = vpop.f32.mrf.mxu0
    %v348 = vadd.f32 %v178, %v347
    %349 = vdwg.mxu0
    %v351 = vsel %vm192, %v115, 0
    %353 = vmatpush.xpose.msra.mxu0 0.0
    %354 = vmatpush.xpose.msra.mxu0 0.0
    %355 = vmatpush.xpose.msra.mxu0 0.0
    %356 = vmatpush.xpose.msra.mxu0 0.0
    %357 = vmatpush.xpose.msra.mxu0 0.0
    %358 = vmatpush.xpose.msra.mxu0 0.0
    %359 = vmatpush.xpose.msra.mxu0 0.0
    %360 = vmatpush.xpose.msra.mxu0 0.0
    %361 = vmatpush.xpose.msra.mxu0 0.0
    %362 = vmatpush.xpose.msra.mxu0 0.0
    %363 = vmatpush.xpose.msra.mxu0 0.0
    %364 = vmatpush.xpose.msra.mxu0 0.0
    %365 = vmatpush.xpose.msra.mxu0 0.0
    %366 = vmatpush.xpose.msra.mxu0 0.0
    %367 = vmatpush.xpose.msra.mxu0 0.0
    %368 = vmatpush.xpose.msra.mxu0 %v351
    %369 = vmatmul.f32.gmra.mxu0 %v302
    %v370 = vpop.f32.mrf.mxu0
    %v371 = vadd.f32 %v179, %v370
    %372 = vdwg.mxu0
    %v374 = vsel %vm192, %v116, 0
    %376 = vmatpush.xpose.msra.mxu0 0.0
    %377 = vmatpush.xpose.msra.mxu0 0.0
    %378 = vmatpush.xpose.msra.mxu0 0.0
    %379 = vmatpush.xpose.msra.mxu0 0.0
    %380 = vmatpush.xpose.msra.mxu0 0.0
    %381 = vmatpush.xpose.msra.mxu0 0.0
    %382 = vmatpush.xpose.msra.mxu0 0.0
    %383 = vmatpush.xpose.msra.mxu0 0.0
    %384 = vmatpush.xpose.msra.mxu0 0.0
    %385 = vmatpush.xpose.msra.mxu0 0.0
    %386 = vmatpush.xpose.msra.mxu0 0.0
    %387 = vmatpush.xpose.msra.mxu0 0.0
    %388 = vmatpush.xpose.msra.mxu0 0.0
    %389 = vmatpush.xpose.msra.mxu0 0.0
    %390 = vmatpush.xpose.msra.mxu0 0.0
    %391 = vmatpush.xpose.msra.mxu0 %v374
    %392 = vmatmul.f32.gmra.mxu0 %v276
    %v393 = vpop.f32.mrf.mxu0
    %v394 = vadd.f32 %v180, %v393
    %395 = vdwg.mxu0
    %v397 = vsel %vm192, %v117, 0
    %399 = vmatpush.xpose.msra.mxu0 0.0
    %400 = vmatpush.xpose.msra.mxu0 0.0
    %401 = vmatpush.xpose.msra.mxu0 0.0
    %402 = vmatpush.xpose.msra.mxu0 0.0
    %403 = vmatpush.xpose.msra.mxu0 0.0
    %404 = vmatpush.xpose.msra.mxu0 0.0
    %405 = vmatpush.xpose.msra.mxu0 0.0
    %406 = vmatpush.xpose.msra.mxu0 0.0
    %407 = vmatpush.xpose.msra.mxu0 0.0
    %408 = vmatpush.xpose.msra.mxu0 0.0
    %409 = vmatpush.xpose.msra.mxu0 0.0
    %410 = vmatpush.xpose.msra.mxu0 0.0
    %411 = vmatpush.xpose.msra.mxu0 0.0
    %412 = vmatpush.xpose.msra.mxu0 0.0
    %413 = vmatpush.xpose.msra.mxu0 0.0
    %414 = vmatpush.xpose.msra.mxu0 %v397
    %415 = vmatmul.f32.gmra.mxu0 %v302
    %v416 = vpop.f32.mrf.mxu0
    %v417 = vadd.f32 %v181, %v416
    %418 = vdwg.mxu0
    %v420 = vsel %vm192, %v118, 0
    %422 = vmatpush.xpose.msra.mxu0 0.0
    %423 = vmatpush.xpose.msra.mxu0 0.0
    %424 = vmatpush.xpose.msra.mxu0 0.0
    %425 = vmatpush.xpose.msra.mxu0 0.0
    %426 = vmatpush.xpose.msra.mxu0 0.0
    %427 = vmatpush.xpose.msra.mxu0 0.0
    %428 = vmatpush.xpose.msra.mxu0 0.0
    %429 = vmatpush.xpose.msra.mxu0 0.0
    %430 = vmatpush.xpose.msra.mxu0 0.0
    %431 = vmatpush.xpose.msra.mxu0 0.0
    %432 = vmatpush.xpose.msra.mxu0 0.0
    %433 = vmatpush.xpose.msra.mxu0 0.0
    %434 = vmatpush.xpose.msra.mxu0 0.0
    %435 = vmatpush.xpose.msra.mxu0 0.0
    %436 = vmatpush.xpose.msra.mxu0 0.0
    %437 = vmatpush.xpose.msra.mxu0 %v420
    %438 = vmatmul.f32.gmra.mxu0 %v276
    %v439 = vpop.f32.mrf.mxu0
    %v440 = vadd.f32 %v182, %v439
    %441 = vdwg.mxu0
    %v443 = vsel %vm192, %v119, 0
    %445 = vmatpush.xpose.msra.mxu0 0.0
    %446 = vmatpush.xpose.msra.mxu0 0.0
    %447 = vmatpush.xpose.msra.mxu0 0.0
    %448 = vmatpush.xpose.msra.mxu0 0.0
    %449 = vmatpush.xpose.msra.mxu0 0.0
    %450 = vmatpush.xpose.msra.mxu0 0.0
    %451 = vmatpush.xpose.msra.mxu0 0.0
    %452 = vmatpush.xpose.msra.mxu0 0.0
    %453 = vmatpush.xpose.msra.mxu0 0.0
    %454 = vmatpush.xpose.msra.mxu0 0.0
    %455 = vmatpush.xpose.msra.mxu0 0.0
    %456 = vmatpush.xpose.msra.mxu0 0.0
    %457 = vmatpush.xpose.msra.mxu0 0.0
    %458 = vmatpush.xpose.msra.mxu0 0.0
    %459 = vmatpush.xpose.msra.mxu0 0.0
    %460 = vmatpush.xpose.msra.mxu0 %v443
    %461 = vmatmul.f32.gmra.mxu0 %v302
    %v462 = vpop.f32.mrf.mxu0
    %v463 = vadd.f32 %v183, %v462
    %464 = vdwg.mxu0
    %v466 = vsel %vm192, %v120, 0
    %468 = vmatpush.xpose.msra.mxu0 0.0
    %469 = vmatpush.xpose.msra.mxu0 0.0
    %470 = vmatpush.xpose.msra.mxu0 0.0
    %471 = vmatpush.xpose.msra.mxu0 0.0
    %472 = vmatpush.xpose.msra.mxu0 0.0
    %473 = vmatpush.xpose.msra.mxu0 0.0
    %474 = vmatpush.xpose.msra.mxu0 0.0
    %475 = vmatpush.xpose.msra.mxu0 0.0
    %476 = vmatpush.xpose.msra.mxu0 0.0
    %477 = vmatpush.xpose.msra.mxu0 0.0
    %478 = vmatpush.xpose.msra.mxu0 0.0
    %479 = vmatpush.xpose.msra.mxu0 0.0
    %480 = vmatpush.xpose.msra.mxu0 0.0
    %481 = vmatpush.xpose.msra.mxu0 0.0
    %482 = vmatpush.xpose.msra.mxu0 0.0
    %483 = vmatpush.xpose.msra.mxu0 %v466
    %484 = vmatmul.f32.gmra.mxu0 %v276
    %v485 = vpop.f32.mrf.mxu0
    %v486 = vadd.f32 0.0, %v485
    %487 = vdwg.mxu0
    %v489 = vsel %vm192, %v121, 0
    %491 = vmatpush.xpose.msra.mxu0 0.0
    %492 = vmatpush.xpose.msra.mxu0 0.0
    %493 = vmatpush.xpose.msra.mxu0 0.0
    %494 = vmatpush.xpose.msra.mxu0 0.0
    %495 = vmatpush.xpose.msra.mxu0 0.0
    %496 = vmatpush.xpose.msra.mxu0 0.0
    %497 = vmatpush.xpose.msra.mxu0 0.0
    %498 = vmatpush.xpose.msra.mxu0 0.0
    %499 = vmatpush.xpose.msra.mxu0 0.0
    %500 = vmatpush.xpose.msra.mxu0 0.0
    %501 = vmatpush.xpose.msra.mxu0 0.0
    %502 = vmatpush.xpose.msra.mxu0 0.0
    %503 = vmatpush.xpose.msra.mxu0 0.0
    %504 = vmatpush.xpose.msra.mxu0 0.0
    %505 = vmatpush.xpose.msra.mxu0 0.0
    %506 = vmatpush.xpose.msra.mxu0 %v489
    %507 = vmatmul.f32.gmra.mxu0 %v302
    %v508 = vpop.f32.mrf.mxu0
    %v509 = vadd.f32 0.0, %v508
    %510 = vdwg.mxu0
    %v512 = vsel %vm192, %v122, 0
    %514 = vmatpush.xpose.msra.mxu0 0.0
    %515 = vmatpush.xpose.msra.mxu0 0.0
    %516 = vmatpush.xpose.msra.mxu0 0.0
    %517 = vmatpush.xpose.msra.mxu0 0.0
    %518 = vmatpush.xpose.msra.mxu0 0.0
    %519 = vmatpush.xpose.msra.mxu0 0.0
    %520 = vmatpush.xpose.msra.mxu0 0.0
    %521 = vmatpush.xpose.msra.mxu0 0.0
    %522 = vmatpush.xpose.msra.mxu0 0.0
    %523 = vmatpush.xpose.msra.mxu0 0.0
    %524 = vmatpush.xpose.msra.mxu0 0.0
    %525 = vmatpush.xpose.msra.mxu0 0.0
    %526 = vmatpush.xpose.msra.mxu0 0.0
    %527 = vmatpush.xpose.msra.mxu0 0.0
    %528 = vmatpush.xpose.msra.mxu0 0.0
    %529 = vmatpush.xpose.msra.mxu0 %v512
    %530 = vmatmul.f32.gmra.mxu0 %v276
    %v531 = vpop.f32.mrf.mxu0
    %v532 = vadd.f32 0.0, %v531
    %533 = vdwg.mxu0
    %v535 = vsel %vm192, %v123, 0
    %537 = vmatpush.xpose.msra.mxu0 0.0
    %538 = vmatpush.xpose.msra.mxu0 0.0
    %539 = vmatpush.xpose.msra.mxu0 0.0
    %540 = vmatpush.xpose.msra.mxu0 0.0
    %541 = vmatpush.xpose.msra.mxu0 0.0
    %542 = vmatpush.xpose.msra.mxu0 0.0
    %543 = vmatpush.xpose.msra.mxu0 0.0
    %544 = vmatpush.xpose.msra.mxu0 0.0
    %545 = vmatpush.xpose.msra.mxu0 0.0
    %546 = vmatpush.xpose.msra.mxu0 0.0
    %547 = vmatpush.xpose.msra.mxu0 0.0
    %548 = vmatpush.xpose.msra.mxu0 0.0
    %549 = vmatpush.xpose.msra.mxu0 0.0
    %550 = vmatpush.xpose.msra.mxu0 0.0
    %551 = vmatpush.xpose.msra.mxu0 0.0
    %552 = vmatpush.xpose.msra.mxu0 %v535
    %553 = vmatmul.f32.gmra.mxu0 %v302
    %v554 = vpop.f32.mrf.mxu0
    %v555 = vadd.f32 0.0, %v554
    %556 = vdwg.mxu0
    %v558 = vsel %vm192, %v124, 0
    %560 = vmatpush.xpose.msra.mxu0 0.0
    %561 = vmatpush.xpose.msra.mxu0 0.0
    %562 = vmatpush.xpose.msra.mxu0 0.0
    %563 = vmatpush.xpose.msra.mxu0 0.0
    %564 = vmatpush.xpose.msra.mxu0 0.0
    %565 = vmatpush.xpose.msra.mxu0 0.0
    %566 = vmatpush.xpose.msra.mxu0 0.0
    %567 = vmatpush.xpose.msra.mxu0 0.0
    %568 = vmatpush.xpose.msra.mxu0 0.0
    %569 = vmatpush.xpose.msra.mxu0 0.0
    %570 = vmatpush.xpose.msra.mxu0 0.0
    %571 = vmatpush.xpose.msra.mxu0 0.0
    %572 = vmatpush.xpose.msra.mxu0 0.0
    %573 = vmatpush.xpose.msra.mxu0 0.0
    %574 = vmatpush.xpose.msra.mxu0 0.0
    %575 = vmatpush.xpose.msra.mxu0 %v558
    %576 = vmatmul.f32.gmra.mxu0 %v276
    %v577 = vpop.f32.mrf.mxu0
    %v578 = vadd.f32 0.0, %v577
    %579 = vdwg.mxu0
    %v581 = vsel %vm192, %v125, 0
    %583 = vmatpush.xpose.msra.mxu0 0.0
    %584 = vmatpush.xpose.msra.mxu0 0.0
    %585 = vmatpush.xpose.msra.mxu0 0.0
    %586 = vmatpush.xpose.msra.mxu0 0.0
    %587 = vmatpush.xpose.msra.mxu0 0.0
    %588 = vmatpush.xpose.msra.mxu0 0.0
    %589 = vmatpush.xpose.msra.mxu0 0.0
    %590 = vmatpush.xpose.msra.mxu0 0.0
    %591 = vmatpush.xpose.msra.mxu0 0.0
    %592 = vmatpush.xpose.msra.mxu0 0.0
    %593 = vmatpush.xpose.msra.mxu0 0.0
    %594 = vmatpush.xpose.msra.mxu0 0.0
    %595 = vmatpush.xpose.msra.mxu0 0.0
    %596 = vmatpush.xpose.msra.mxu0 0.0
    %597 = vmatpush.xpose.msra.mxu0 0.0
    %598 = vmatpush.xpose.msra.mxu0 %v581
    %599 = vmatmul.f32.gmra.mxu0 %v302
    %v600 = vpop.f32.mrf.mxu0
    %v601 = vadd.f32 0.0, %v600
    %602 = vdwg.mxu0
    %v604 = vsel %vm192, %v126, 0
    %606 = vmatpush.xpose.msra.mxu0 0.0
    %607 = vmatpush.xpose.msra.mxu0 0.0
    %608 = vmatpush.xpose.msra.mxu0 0.0
    %609 = vmatpush.xpose.msra.mxu0 0.0
    %610 = vmatpush.xpose.msra.mxu0 0.0
    %611 = vmatpush.xpose.msra.mxu0 0.0
    %612 = vmatpush.xpose.msra.mxu0 0.0
    %613 = vmatpush.xpose.msra.mxu0 0.0
    %614 = vmatpush.xpose.msra.mxu0 0.0
    %615 = vmatpush.xpose.msra.mxu0 0.0
    %616 = vmatpush.xpose.msra.mxu0 0.0
    %617 = vmatpush.xpose.msra.mxu0 0.0
    %618 = vmatpush.xpose.msra.mxu0 0.0
    %619 = vmatpush.xpose.msra.mxu0 0.0
    %620 = vmatpush.xpose.msra.mxu0 0.0
    %621 = vmatpush.xpose.msra.mxu0 %v604
    %622 = vmatmul.f32.gmra.mxu0 %v276
    %v623 = vpop.f32.mrf.mxu0
    %v624 = vadd.f32 0.0, %v623
    %625 = vdwg.mxu0
    %v627 = vsel %vm192, %v127, 0
    %629 = vmatpush.xpose.msra.mxu0 0.0
    %630 = vmatpush.xpose.msra.mxu0 0.0
    %631 = vmatpush.xpose.msra.mxu0 0.0
    %632 = vmatpush.xpose.msra.mxu0 0.0
    %633 = vmatpush.xpose.msra.mxu0 0.0
    %634 = vmatpush.xpose.msra.mxu0 0.0
    %635 = vmatpush.xpose.msra.mxu0 0.0
    %636 = vmatpush.xpose.msra.mxu0 0.0
    %637 = vmatpush.xpose.msra.mxu0 0.0
    %638 = vmatpush.xpose.msra.mxu0 0.0
    %639 = vmatpush.xpose.msra.mxu0 0.0
    %640 = vmatpush.xpose.msra.mxu0 0.0
    %641 = vmatpush.xpose.msra.mxu0 0.0
    %642 = vmatpush.xpose.msra.mxu0 0.0
    %643 = vmatpush.xpose.msra.mxu0 0.0
    %644 = vmatpush.xpose.msra.mxu0 %v627
    %645 = vmatmul.f32.gmra.mxu0 %v302
    %v646 = vpop.f32.mrf.mxu0
    %v647 = vadd.f32 0.0, %v646
    %648 = vdwg.mxu0
    %v650 = vsel %vm192, %v128, 0
    %652 = vmatpush.xpose.msra.mxu0 0.0
    %653 = vmatpush.xpose.msra.mxu0 0.0
    %654 = vmatpush.xpose.msra.mxu0 0.0
    %655 = vmatpush.xpose.msra.mxu0 0.0
    %656 = vmatpush.xpose.msra.mxu0 0.0
    %657 = vmatpush.xpose.msra.mxu0 0.0
    %658 = vmatpush.xpose.msra.mxu0 0.0
    %659 = vmatpush.xpose.msra.mxu0 0.0
    %660 = vmatpush.xpose.msra.mxu0 0.0
    %661 = vmatpush.xpose.msra.mxu0 0.0
    %662 = vmatpush.xpose.msra.mxu0 0.0
    %663 = vmatpush.xpose.msra.mxu0 0.0
    %664 = vmatpush.xpose.msra.mxu0 0.0
    %665 = vmatpush.xpose.msra.mxu0 0.0
    %666 = vmatpush.xpose.msra.mxu0 0.0
    %667 = vmatpush.xpose.msra.mxu0 %v650
    %668 = vmatmul.f32.gmra.mxu0 %v276
    %v669 = vpop.f32.mrf.mxu0
    %v670 = vadd.f32 0.0, %v669
    %671 = vdwg.mxu0
    %v673 = vsel %vm192, %v129, 0
    %675 = vmatpush.xpose.msra.mxu0 0.0
    %676 = vmatpush.xpose.msra.mxu0 0.0
    %677 = vmatpush.xpose.msra.mxu0 0.0
    %678 = vmatpush.xpose.msra.mxu0 0.0
    %679 = vmatpush.xpose.msra.mxu0 0.0
    %680 = vmatpush.xpose.msra.mxu0 0.0
    %681 = vmatpush.xpose.msra.mxu0 0.0
    %682 = vmatpush.xpose.msra.mxu0 0.0
    %683 = vmatpush.xpose.msra.mxu0 0.0
    %684 = vmatpush.xpose.msra.mxu0 0.0
    %685 = vmatpush.xpose.msra.mxu0 0.0
    %686 = vmatpush.xpose.msra.mxu0 0.0
    %687 = vmatpush.xpose.msra.mxu0 0.0
    %688 = vmatpush.xpose.msra.mxu0 0.0
    %689 = vmatpush.xpose.msra.mxu0 0.0
    %690 = vmatpush.xpose.msra.mxu0 %v673
    %691 = vmatmul.f32.gmra.mxu0 %v302
    %v692 = vpop.f32.mrf.mxu0
    %v693 = vadd.f32 0.0, %v692
    %694 = vdwg.mxu0
    %v696 = vsel %vm192, %v130, 0
    %698 = vmatpush.xpose.msra.mxu0 0.0
    %699 = vmatpush.xpose.msra.mxu0 0.0
    %700 = vmatpush.xpose.msra.mxu0 0.0
    %701 = vmatpush.xpose.msra.mxu0 0.0
    %702 = vmatpush.xpose.msra.mxu0 0.0
    %703 = vmatpush.xpose.msra.mxu0 0.0
    %704 = vmatpush.xpose.msra.mxu0 0.0
    %705 = vmatpush.xpose.msra.mxu0 0.0
    %706 = vmatpush.xpose.msra.mxu0 0.0
    %707 = vmatpush.xpose.msra.mxu0 0.0
    %708 = vmatpush.xpose.msra.mxu0 0.0
    %709 = vmatpush.xpose.msra.mxu0 0.0
    %710 = vmatpush.xpose.msra.mxu0 0.0
    %711 = vmatpush.xpose.msra.mxu0 0.0
    %712 = vmatpush.xpose.msra.mxu0 0.0
    %713 = vmatpush.xpose.msra.mxu0 %v696
    %714 = vmatmul.f32.gmra.mxu0 %v276
    %v715 = vpop.f32.mrf.mxu0
    %v716 = vadd.f32 0.0, %v715
    %717 = vdwg.mxu0
    %v719 = vsel %vm192, %v131, 0
    %721 = vmatpush.xpose.msra.mxu0 0.0
    %722 = vmatpush.xpose.msra.mxu0 0.0
    %723 = vmatpush.xpose.msra.mxu0 0.0
    %724 = vmatpush.xpose.msra.mxu0 0.0
    %725 = vmatpush.xpose.msra.mxu0 0.0
    %726 = vmatpush.xpose.msra.mxu0 0.0
    %727 = vmatpush.xpose.msra.mxu0 0.0
    %728 = vmatpush.xpose.msra.mxu0 0.0
    %729 = vmatpush.xpose.msra.mxu0 0.0
    %730 = vmatpush.xpose.msra.mxu0 0.0
    %731 = vmatpush.xpose.msra.mxu0 0.0
    %732 = vmatpush.xpose.msra.mxu0 0.0
    %733 = vmatpush.xpose.msra.mxu0 0.0
    %734 = vmatpush.xpose.msra.mxu0 0.0
    %735 = vmatpush.xpose.msra.mxu0 0.0
    %736 = vmatpush.xpose.msra.mxu0 %v719
    %737 = vmatmul.f32.gmra.mxu0 %v302
    %v738 = vpop.f32.mrf.mxu0
    %v739 = vadd.f32 0.0, %v738
    %740 = vdwg.mxu0
    %v742 = vsel %vm192, %v132, 0
    %744 = vmatpush.xpose.msra.mxu0 0.0
    %745 = vmatpush.xpose.msra.mxu0 0.0
    %746 = vmatpush.xpose.msra.mxu0 0.0
    %747 = vmatpush.xpose.msra.mxu0 0.0
    %748 = vmatpush.xpose.msra.mxu0 0.0
    %749 = vmatpush.xpose.msra.mxu0 0.0
    %750 = vmatpush.xpose.msra.mxu0 0.0
    %751 = vmatpush.xpose.msra.mxu0 0.0
    %752 = vmatpush.xpose.msra.mxu0 0.0
    %753 = vmatpush.xpose.msra.mxu0 0.0
    %754 = vmatpush.xpose.msra.mxu0 0.0
    %755 = vmatpush.xpose.msra.mxu0 0.0
    %756 = vmatpush.xpose.msra.mxu0 0.0
    %757 = vmatpush.xpose.msra.mxu0 0.0
    %758 = vmatpush.xpose.msra.mxu0 0.0
    %759 = vmatpush.xpose.msra.mxu0 %v742
    %760 = vmatmul.f32.gmra.mxu0 %v276
    %v761 = vpop.f32.mrf.mxu0
    %v762 = vadd.f32 0.0, %v761
    %763 = vdwg.mxu0
    %v765 = vsel %vm192, %v133, 0
    %767 = vmatpush.xpose.msra.mxu0 0.0
    %768 = vmatpush.xpose.msra.mxu0 0.0
    %769 = vmatpush.xpose.msra.mxu0 0.0
    %770 = vmatpush.xpose.msra.mxu0 0.0
    %771 = vmatpush.xpose.msra.mxu0 0.0
    %772 = vmatpush.xpose.msra.mxu0 0.0
    %773 = vmatpush.xpose.msra.mxu0 0.0
    %774 = vmatpush.xpose.msra.mxu0 0.0
    %775 = vmatpush.xpose.msra.mxu0 0.0
    %776 = vmatpush.xpose.msra.mxu0 0.0
    %777 = vmatpush.xpose.msra.mxu0 0.0
    %778 = vmatpush.xpose.msra.mxu0 0.0
    %779 = vmatpush.xpose.msra.mxu0 0.0
    %780 = vmatpush.xpose.msra.mxu0 0.0
    %781 = vmatpush.xpose.msra.mxu0 0.0
    %782 = vmatpush.xpose.msra.mxu0 %v765
    %783 = vmatmul.f32.gmra.mxu0 %v302
    %v784 = vpop.f32.mrf.mxu0
    %v785 = vadd.f32 0.0, %v784
    %786 = vdwg.mxu0
    %v788 = vsel %vm192, %v134, 0
    %790 = vmatpush.xpose.msra.mxu0 0.0
    %791 = vmatpush.xpose.msra.mxu0 0.0
    %792 = vmatpush.xpose.msra.mxu0 0.0
    %793 = vmatpush.xpose.msra.mxu0 0.0
    %794 = vmatpush.xpose.msra.mxu0 0.0
    %795 = vmatpush.xpose.msra.mxu0 0.0
    %796 = vmatpush.xpose.msra.mxu0 0.0
    %797 = vmatpush.xpose.msra.mxu0 0.0
    %798 = vmatpush.xpose.msra.mxu0 0.0
    %799 = vmatpush.xpose.msra.mxu0 0.0
    %800 = vmatpush.xpose.msra.mxu0 0.0
    %801 = vmatpush.xpose.msra.mxu0 0.0
    %802 = vmatpush.xpose.msra.mxu0 0.0
    %803 = vmatpush.xpose.msra.mxu0 0.0
    %804 = vmatpush.xpose.msra.mxu0 0.0
    %805 = vmatpush.xpose.msra.mxu0 %v788
    %806 = vmatmul.f32.gmra.mxu0 %v276
    %v807 = vpop.f32.mrf.mxu0
    %v808 = vadd.f32 0.0, %v807
    %809 = vdwg.mxu0
    %v811 = vsel %vm192, %v135, 0
    %813 = vmatpush.xpose.msra.mxu0 0.0
    %814 = vmatpush.xpose.msra.mxu0 0.0
    %815 = vmatpush.xpose.msra.mxu0 0.0
    %816 = vmatpush.xpose.msra.mxu0 0.0
    %817 = vmatpush.xpose.msra.mxu0 0.0
    %818 = vmatpush.xpose.msra.mxu0 0.0
    %819 = vmatpush.xpose.msra.mxu0 0.0
    %820 = vmatpush.xpose.msra.mxu0 0.0
    %821 = vmatpush.xpose.msra.mxu0 0.0
    %822 = vmatpush.xpose.msra.mxu0 0.0
    %823 = vmatpush.xpose.msra.mxu0 0.0
    %824 = vmatpush.xpose.msra.mxu0 0.0
    %825 = vmatpush.xpose.msra.mxu0 0.0
    %826 = vmatpush.xpose.msra.mxu0 0.0
    %827 = vmatpush.xpose.msra.mxu0 0.0
    %828 = vmatpush.xpose.msra.mxu0 %v811
    %829 = vmatmul.f32.gmra.mxu0 %v302
    %v830 = vpop.f32.mrf.mxu0
    %v831 = vadd.f32 0.0, %v830
    %832 = vdwg.mxu0
    %vm833 = vcmask 64512
    %v835 = vsel %vm833, %v299, 0
    %v838 = vsel %vm833, %v486, 0
    %840 = vmatpush.xpose.msra.mxu0 0.0
    %841 = vmatpush.xpose.msra.mxu0 0.0
    %842 = vmatpush.xpose.msra.mxu0 0.0
    %843 = vmatpush.xpose.msra.mxu0 0.0
    %844 = vmatpush.xpose.msra.mxu0 0.0
    %845 = vmatpush.xpose.msra.mxu0 0.0
    %846 = vmatpush.xpose.msra.mxu0 0.0
    %847 = vmatpush.xpose.msra.mxu0 0.0
    %848 = vmatpush.xpose.msra.mxu0 0.0
    %849 = vmatpush.xpose.msra.mxu0 0.0
    %850 = vmatpush.xpose.msra.mxu0 0.0
    %851 = vmatpush.xpose.msra.mxu0 0.0
    %852 = vmatpush.xpose.msra.mxu0 0.0
    %853 = vmatpush.xpose.msra.mxu0 0.0
    %854 = vmatpush.xpose.msra.mxu0 0.0
    %855 = vmatpush.xpose.msra.mxu0 %v838
    %856 = vmatmul.f32.gmra.mxu0 %v835
    %v857 = vpop.f32.mrf.mxu0
    %v858 = vadd.f32 0.0, %v857
    %859 = vdwg.mxu0
    %v861 = vsel %vm833, %v325, 0
    %v864 = vsel %vm833, %v509, 0
    %866 = vmatpush.xpose.msra.mxu0 0.0
    %867 = vmatpush.xpose.msra.mxu0 0.0
    %868 = vmatpush.xpose.msra.mxu0 0.0
    %869 = vmatpush.xpose.msra.mxu0 0.0
    %870 = vmatpush.xpose.msra.mxu0 0.0
    %871 = vmatpush.xpose.msra.mxu0 0.0
    %872 = vmatpush.xpose.msra.mxu0 0.0
    %873 = vmatpush.xpose.msra.mxu0 0.0
    %874 = vmatpush.xpose.msra.mxu0 0.0
    %875 = vmatpush.xpose.msra.mxu0 0.0
    %876 = vmatpush.xpose.msra.mxu0 0.0
    %877 = vmatpush.xpose.msra.mxu0 0.0
    %878 = vmatpush.xpose.msra.mxu0 0.0
    %879 = vmatpush.xpose.msra.mxu0 0.0
    %880 = vmatpush.xpose.msra.mxu0 0.0
    %881 = vmatpush.xpose.msra.mxu0 %v864
    %882 = vmatmul.f32.gmra.mxu0 %v861
    %v883 = vpop.f32.mrf.mxu0
    %v884 = vadd.f32 0.0, %v883
    %885 = vdwg.mxu0
    %v887 = vsel %vm833, %v348, 0
    %v890 = vsel %vm833, %v532, 0
    %892 = vmatpush.xpose.msra.mxu0 0.0
    %893 = vmatpush.xpose.msra.mxu0 0.0
    %894 = vmatpush.xpose.msra.mxu0 0.0
    %895 = vmatpush.xpose.msra.mxu0 0.0
    %896 = vmatpush.xpose.msra.mxu0 0.0
    %897 = vmatpush.xpose.msra.mxu0 0.0
    %898 = vmatpush.xpose.msra.mxu0 0.0
    %899 = vmatpush.xpose.msra.mxu0 0.0
    %900 = vmatpush.xpose.msra.mxu0 0.0
    %901 = vmatpush.xpose.msra.mxu0 0.0
    %902 = vmatpush.xpose.msra.mxu0 0.0
    %903 = vmatpush.xpose.msra.mxu0 0.0
    %904 = vmatpush.xpose.msra.mxu0 0.0
    %905 = vmatpush.xpose.msra.mxu0 0.0
    %906 = vmatpush.xpose.msra.mxu0 0.0
    %907 = vmatpush.xpose.msra.mxu0 %v890
    %908 = vmatmul.f32.gmra.mxu0 %v887
    %v909 = vpop.f32.mrf.mxu0
    %v910 = vadd.f32 0.0, %v909
    %911 = vdwg.mxu0
    %v913 = vsel %vm833, %v371, 0
    %v916 = vsel %vm833, %v555, 0
    %918 = vmatpush.xpose.msra.mxu0 0.0
    %919 = vmatpush.xpose.msra.mxu0 0.0
    %920 = vmatpush.xpose.msra.mxu0 0.0
    %921 = vmatpush.xpose.msra.mxu0 0.0
    %922 = vmatpush.xpose.msra.mxu0 0.0
    %923 = vmatpush.xpose.msra.mxu0 0.0
    %924 = vmatpush.xpose.msra.mxu0 0.0
    %925 = vmatpush.xpose.msra.mxu0 0.0
    %926 = vmatpush.xpose.msra.mxu0 0.0
    %927 = vmatpush.xpose.msra.mxu0 0.0
    %928 = vmatpush.xpose.msra.mxu0 0.0
    %929 = vmatpush.xpose.msra.mxu0 0.0
    %930 = vmatpush.xpose.msra.mxu0 0.0
    %931 = vmatpush.xpose.msra.mxu0 0.0
    %932 = vmatpush.xpose.msra.mxu0 0.0
    %933 = vmatpush.xpose.msra.mxu0 %v916
    %934 = vmatmul.f32.gmra.mxu0 %v913
    %v935 = vpop.f32.mrf.mxu0
    %v936 = vadd.f32 0.0, %v935
    %937 = vdwg.mxu0
    %v939 = vsel %vm833, %v394, 0
    %v942 = vsel %vm833, %v578, 0
    %944 = vmatpush.xpose.msra.mxu0 0.0
    %945 = vmatpush.xpose.msra.mxu0 0.0
    %946 = vmatpush.xpose.msra.mxu0 0.0
    %947 = vmatpush.xpose.msra.mxu0 0.0
    %948 = vmatpush.xpose.msra.mxu0 0.0
    %949 = vmatpush.xpose.msra.mxu0 0.0
    %950 = vmatpush.xpose.msra.mxu0 0.0
    %951 = vmatpush.xpose.msra.mxu0 0.0
    %952 = vmatpush.xpose.msra.mxu0 0.0
    %953 = vmatpush.xpose.msra.mxu0 0.0
    %954 = vmatpush.xpose.msra.mxu0 0.0
    %955 = vmatpush.xpose.msra.mxu0 0.0
    %956 = vmatpush.xpose.msra.mxu0 0.0
    %957 = vmatpush.xpose.msra.mxu0 0.0
    %958 = vmatpush.xpose.msra.mxu0 0.0
    %959 = vmatpush.xpose.msra.mxu0 %v942
    %960 = vmatmul.f32.gmra.mxu0 %v939
    %v961 = vpop.f32.mrf.mxu0
    %v962 = vadd.f32 0.0, %v961
    %963 = vdwg.mxu0
    %v965 = vsel %vm833, %v417, 0
    %v968 = vsel %vm833, %v601, 0
    %970 = vmatpush.xpose.msra.mxu0 0.0
    %971 = vmatpush.xpose.msra.mxu0 0.0
    %972 = vmatpush.xpose.msra.mxu0 0.0
    %973 = vmatpush.xpose.msra.mxu0 0.0
    %974 = vmatpush.xpose.msra.mxu0 0.0
    %975 = vmatpush.xpose.msra.mxu0 0.0
    %976 = vmatpush.xpose.msra.mxu0 0.0
    %977 = vmatpush.xpose.msra.mxu0 0.0
    %978 = vmatpush.xpose.msra.mxu0 0.0
    %979 = vmatpush.xpose.msra.mxu0 0.0
    %980 = vmatpush.xpose.msra.mxu0 0.0
    %981 = vmatpush.xpose.msra.mxu0 0.0
    %982 = vmatpush.xpose.msra.mxu0 0.0
    %983 = vmatpush.xpose.msra.mxu0 0.0
    %984 = vmatpush.xpose.msra.mxu0 0.0
    %985 = vmatpush.xpose.msra.mxu0 %v968
    %986 = vmatmul.f32.gmra.mxu0 %v965
    %v987 = vpop.f32.mrf.mxu0
    %v988 = vadd.f32 0.0, %v987
    %989 = vdwg.mxu0
    %v991 = vsel %vm833, %v440, 0
    %v994 = vsel %vm833, %v624, 0
    %996 = vmatpush.xpose.msra.mxu0 0.0
    %997 = vmatpush.xpose.msra.mxu0 0.0
    %998 = vmatpush.xpose.msra.mxu0 0.0
    %999 = vmatpush.xpose.msra.mxu0 0.0
    %1000 = vmatpush.xpose.msra.mxu0 0.0
    %1001 = vmatpush.xpose.msra.mxu0 0.0
    %1002 = vmatpush.xpose.msra.mxu0 0.0
    %1003 = vmatpush.xpose.msra.mxu0 0.0
    %1004 = vmatpush.xpose.msra.mxu0 0.0
    %1005 = vmatpush.xpose.msra.mxu0 0.0
    %1006 = vmatpush.xpose.msra.mxu0 0.0
    %1007 = vmatpush.xpose.msra.mxu0 0.0
    %1008 = vmatpush.xpose.msra.mxu0 0.0
    %1009 = vmatpush.xpose.msra.mxu0 0.0
    %1010 = vmatpush.xpose.msra.mxu0 0.0
    %1011 = vmatpush.xpose.msra.mxu0 %v994
    %1012 = vmatmul.f32.gmra.mxu0 %v991
    %v1013 = vpop.f32.mrf.mxu0
    %v1014 = vadd.f32 0.0, %v1013
    %1015 = vdwg.mxu0
    %v1017 = vsel %vm833, %v463, 0
    %v1020 = vsel %vm833, %v647, 0
    %1022 = vmatpush.xpose.msra.mxu0 0.0
    %1023 = vmatpush.xpose.msra.mxu0 0.0
    %1024 = vmatpush.xpose.msra.mxu0 0.0
    %1025 = vmatpush.xpose.msra.mxu0 0.0
    %1026 = vmatpush.xpose.msra.mxu0 0.0
    %1027 = vmatpush.xpose.msra.mxu0 0.0
    %1028 = vmatpush.xpose.msra.mxu0 0.0
    %1029 = vmatpush.xpose.msra.mxu0 0.0
    %1030 = vmatpush.xpose.msra.mxu0 0.0
    %1031 = vmatpush.xpose.msra.mxu0 0.0
    %1032 = vmatpush.xpose.msra.mxu0 0.0
    %1033 = vmatpush.xpose.msra.mxu0 0.0
    %1034 = vmatpush.xpose.msra.mxu0 0.0
    %1035 = vmatpush.xpose.msra.mxu0 0.0
    %1036 = vmatpush.xpose.msra.mxu0 0.0
    %1037 = vmatpush.xpose.msra.mxu0 %v1020
    %1038 = vmatmul.f32.gmra.mxu0 %v1017
    %v1039 = vpop.f32.mrf.mxu0
    %v1040 = vadd.f32 0.0, %v1039
    %1041 = vdwg.mxu0
    %v1042 = vmul.f32 %v858, 0.35355338
    %v1043 = vmul.f32 %v884, 0.35355338
    %v1044 = vmul.f32 %v910, 0.35355338
    %v1045 = vmul.f32 %v936, 0.35355338
    %v1046 = vmul.f32 %v962, 0.35355338
    %v1047 = vmul.f32 %v988, 0.35355338
    %v1048 = vmul.f32 %v1014, 0.35355338
    %v1049 = vmul.f32 %v1040, 0.35355338
    %v1050 = vsel %vm833, %v1042, -inf
    %1051 = vmax.xlane.f32.xlu0 %v1050
    %v1052 = vpop.xlane.xlu0 %1051
    %v1053 = vsel %vm833, %v1043, -inf
    %1054 = vmax.xlane.f32.xlu0 %v1053
    %v1055 = vpop.xlane.xlu0 %1054
    %v1056 = vsel %vm833, %v1044, -inf
    %1057 = vmax.xlane.f32.xlu0 %v1056
    %v1058 = vpop.xlane.xlu0 %1057
    %v1059 = vsel %vm833, %v1045, -inf
    %1060 = vmax.xlane.f32.xlu0 %v1059
    %v1061 = vpop.xlane.xlu0 %1060
    %v1062 = vsel %vm833, %v1046, -inf
    %1063 = vmax.xlane.f32.xlu0 %v1062
    %v1064 = vpop.xlane.xlu0 %1063
    %v1065 = vsel %vm833, %v1047, -inf
    %1066 = vmax.xlane.f32.xlu0 %v1065
    %v1067 = vpop.xlane.xlu0 %1066
    %v1068 = vsel %vm833, %v1048, -inf
    %1069 = vmax.xlane.f32.xlu0 %v1068
    %v1070 = vpop.xlane.xlu0 %1069
    %v1071 = vsel %vm833, %v1049, -inf
    %1072 = vmax.xlane.f32.xlu0 %v1071
    %v1073 = vpop.xlane.xlu0 %1072
    %v1074 = vsub.f32 %v1042, %v1052
    %v1075 = vsub.f32 %v1043, %v1055
    %v1076 = vsub.f32 %v1044, %v1058
    %v1077 = vsub.f32 %v1045, %v1061
    %v1078 = vsub.f32 %v1046, %v1064
    %v1079 = vsub.f32 %v1047, %v1067
    %v1080 = vsub.f32 %v1048, %v1070
    %v1081 = vsub.f32 %v1049, %v1073
    %v1082 = vmul.f32 %v1074, 1.442695
    %v1083 = vpow.pop %v1082
    %v1084 = vmul.f32 %v1075, 1.442695
    %v1085 = vpow.pop %v1084
    %v1086 = vmul.f32 %v1076, 1.442695
    %v1087 = vpow.pop %v1086
    %v1088 = vmul.f32 %v1077, 1.442695
    %v1089 = vpow.pop %v1088
    %v1090 = vmul.f32 %v1078, 1.442695
    %v1091 = vpow.pop %v1090
    %v1092 = vmul.f32 %v1079, 1.442695
    %v1093 = vpow.pop %v1092
    %v1094 = vmul.f32 %v1080, 1.442695
    %v1095 = vpow.pop %v1094
    %v1096 = vmul.f32 %v1081, 1.442695
    %v1097 = vpow.pop %v1096
    %v1098 = vsel %vm833, %v1083, 0.0
    %1099 = vadd.xlane.f32.xlu0 %v1098
    %v1100 = vpop.xlane.xlu0 %1099
    %v1101 = vsel %vm833, %v1085, 0.0
    %1102 = vadd.xlane.f32.xlu0 %v1101
    %v1103 = vpop.xlane.xlu0 %1102
    %v1104 = vsel %vm833, %v1087, 0.0
    %1105 = vadd.xlane.f32.xlu0 %v1104
    %v1106 = vpop.xlane.xlu0 %1105
    %v1107 = vsel %vm833, %v1089, 0.0
    %1108 = vadd.xlane.f32.xlu0 %v1107
    %v1109 = vpop.xlane.xlu0 %1108
    %v1110 = vsel %vm833, %v1091, 0.0
    %1111 = vadd.xlane.f32.xlu0 %v1110
    %v1112 = vpop.xlane.xlu0 %1111
    %v1113 = vsel %vm833, %v1093, 0.0
    %1114 = vadd.xlane.f32.xlu0 %v1113
    %v1115 = vpop.xlane.xlu0 %1114
    %v1116 = vsel %vm833, %v1095, 0.0
    %1117 = vadd.xlane.f32.xlu0 %v1116
    %v1118 = vpop.xlane.xlu0 %1117
    %v1119 = vsel %vm833, %v1097, 0.0
    %1120 = vadd.xlane.f32.xlu0 %v1119
    %v1121 = vpop.xlane.xlu0 %1120
    %v1122 = vrcp.pop %v1100
    %v1123 = vmul.f32 %v1100, %v1122
    %v1124 = vsub.f32 1.0, %v1123
    %v1125 = vmul.f32 %v1122, %v1124
    %v1126 = vadd.f32 %v1122, %v1125
    %vm1127 = vweird.f32 %v1100
    %vm1128 = vweird.f32 %v1122
    %vm1129 = vmor %vm1127, %vm1128
    %v1130 = vsel %vm1129, %v1122, %v1126
    %v1131 = vand.u32 2147483647, %v1100
    %vm1132 = vcmp.eq.f32.partialorder %v1131, 8.507059e+37
    %v1133 = vand.u32 %v1100, 2147483648
    %v1134 = vor.u32 1.1754944e-38, %v1133
    %v1135 = vsel %vm1132, %v1134, %v1130
    %v1136 = vrcp.pop %v1103
    %v1137 = vmul.f32 %v1103, %v1136
    %v1138 = vsub.f32 1.0, %v1137
    %v1139 = vmul.f32 %v1136, %v1138
    %v1140 = vadd.f32 %v1136, %v1139
    %vm1141 = vweird.f32 %v1103
    %vm1142 = vweird.f32 %v1136
    %vm1143 = vmor %vm1141, %vm1142
    %v1144 = vsel %vm1143, %v1136, %v1140
    %v1145 = vand.u32 2147483647, %v1103
    %vm1146 = vcmp.eq.f32.partialorder %v1145, 8.507059e+37
    %v1147 = vand.u32 %v1103, 2147483648
    %v1148 = vor.u32 1.1754944e-38, %v1147
    %v1149 = vsel %vm1146, %v1148, %v1144
    %v1150 = vrcp.pop %v1106
    %v1151 = vmul.f32 %v1106, %v1150
    %v1152 = vsub.f32 1.0, %v1151
    %v1153 = vmul.f32 %v1150, %v1152
    %v1154 = vadd.f32 %v1150, %v1153
    %vm1155 = vweird.f32 %v1106
    %vm1156 = vweird.f32 %v1150
    %vm1157 = vmor %vm1155, %vm1156
    %v1158 = vsel %vm1157, %v1150, %v1154
    %v1159 = vand.u32 2147483647, %v1106
    %vm1160 = vcmp.eq.f32.partialorder %v1159, 8.507059e+37
    %v1161 = vand.u32 %v1106, 2147483648
    %v1162 = vor.u32 1.1754944e-38, %v1161
    %v1163 = vsel %vm1160, %v1162, %v1158
    %v1164 = vrcp.pop %v1109
    %v1165 = vmul.f32 %v1109, %v1164
    %v1166 = vsub.f32 1.0, %v1165
    %v1167 = vmul.f32 %v1164, %v1166
    %v1168 = vadd.f32 %v1164, %v1167
    %vm1169 = vweird.f32 %v1109
    %vm1170 = vweird.f32 %v1164
    %vm1171 = vmor %vm1169, %vm1170
    %v1172 = vsel %vm1171, %v1164, %v1168
    %v1173 = vand.u32 2147483647, %v1109
    %vm1174 = vcmp.eq.f32.partialorder %v1173, 8.507059e+37
    %v1175 = vand.u32 %v1109, 2147483648
    %v1176 = vor.u32 1.1754944e-38, %v1175
    %v1177 = vsel %vm1174, %v1176, %v1172
    %v1178 = vrcp.pop %v1112
    %v1179 = vmul.f32 %v1112, %v1178
    %v1180 = vsub.f32 1.0, %v1179
    %v1181 = vmul.f32 %v1178, %v1180
    %v1182 = vadd.f32 %v1178, %v1181
    %vm1183 = vweird.f32 %v1112
    %vm1184 = vweird.f32 %v1178
    %vm1185 = vmor %vm1183, %vm1184
    %v1186 = vsel %vm1185, %v1178, %v1182
    %v1187 = vand.u32 2147483647, %v1112
    %vm1188 = vcmp.eq.f32.partialorder %v1187, 8.507059e+37
    %v1189 = vand.u32 %v1112, 2147483648
    %v1190 = vor.u32 1.1754944e-38, %v1189
    %v1191 = vsel %vm1188, %v1190, %v1186
    %v1192 = vrcp.pop %v1115
    %v1193 = vmul.f32 %v1115, %v1192
    %v1194 = vsub.f32 1.0, %v1193
    %v1195 = vmul.f32 %v1192, %v1194
    %v1196 = vadd.f32 %v1192, %v1195
    %vm1197 = vweird.f32 %v1115
    %vm1198 = vweird.f32 %v1192
    %vm1199 = vmor %vm1197, %vm1198
    %v1200 = vsel %vm1199, %v1192, %v1196
    %v1201 = vand.u32 2147483647, %v1115
    %vm1202 = vcmp.eq.f32.partialorder %v1201, 8.507059e+37
    %v1203 = vand.u32 %v1115, 2147483648
    %v1204 = vor.u32 1.1754944e-38, %v1203
    %v1205 = vsel %vm1202, %v1204, %v1200
    %v1206 = vrcp.pop %v1118
    %v1207 = vmul.f32 %v1118, %v1206
    %v1208 = vsub.f32 1.0, %v1207
    %v1209 = vmul.f32 %v1206, %v1208
    %v1210 = vadd.f32 %v1206, %v1209
    %vm1211 = vweird.f32 %v1118
    %vm1212 = vweird.f32 %v1206
    %vm1213 = vmor %vm1211, %vm1212
    %v1214 = vsel %vm1213, %v1206, %v1210
    %v1215 = vand.u32 2147483647, %v1118
    %vm1216 = vcmp.eq.f32.partialorder %v1215, 8.507059e+37
    %v1217 = vand.u32 %v1118, 2147483648
    %v1218 = vor.u32 1.1754944e-38, %v1217
    %v1219 = vsel %vm1216, %v1218, %v1214
    %v1220 = vrcp.pop %v1121
    %v1221 = vmul.f32 %v1121, %v1220
    %v1222 = vsub.f32 1.0, %v1221
    %v1223 = vmul.f32 %v1220, %v1222
    %v1224 = vadd.f32 %v1220, %v1223
    %vm1225 = vweird.f32 %v1121
    %vm1226 = vweird.f32 %v1220
    %vm1227 = vmor %vm1225, %vm1226
    %v1228 = vsel %vm1227, %v1220, %v1224
    %v1229 = vand.u32 2147483647, %v1121
    %vm1230 = vcmp.eq.f32.partialorder %v1229, 8.507059e+37
    %v1231 = vand.u32 %v1121, 2147483648
    %v1232 = vor.u32 1.1754944e-38, %v1231
    %v1233 = vsel %vm1230, %v1232, %v1228
    %v1234 = vmul.f32 %v1083, %v1135
    %v1235 = vmul.f32 %v1085, %v1149
    %v1236 = vmul.f32 %v1087, %v1163
    %v1237 = vmul.f32 %v1089, %v1177
    %v1238 = vmul.f32 %v1091, %v1191
    %v1239 = vmul.f32 %v1093, %v1205
    %v1240 = vmul.f32 %v1095, %v1219
    %v1241 = vmul.f32 %v1097, %v1233
    %v1243 = vsel %vm833, %v1234, 0
    %1245 = vmatpush.msra.mxu0 0.0
    %1246 = vmatpush.msra.mxu0 0.0
    %1247 = vmatpush.msra.mxu0 0.0
    %1248 = vmatpush.msra.mxu0 0.0
    %1249 = vmatpush.msra.mxu0 0.0
    %1250 = vmatpush.msra.mxu0 0.0
    %1251 = vmatpush.msra.mxu0 0.0
    %1252 = vmatpush.msra.mxu0 0.0
    %1253 = vmatpush.msra.mxu0 0.0
    %1254 = vmatpush.msra.mxu0 0.0
    %1255 = vmatpush.msra.mxu0 0.0
    %1256 = vmatpush.msra.mxu0 0.0
    %1257 = vmatpush.msra.mxu0 0.0
    %1258 = vmatpush.msra.mxu0 0.0
    %1259 = vmatpush.msra.mxu0 0.0
    %1260 = vmatpush.msra.mxu0 %v670
    %1261 = vmatmul.f32.gmra.mxu0 %v1243
    %v1262 = vpop.f32.mrf.mxu0
    %v1263 = vadd.f32 0.0, %v1262
    %1264 = vdwg.mxu0
    %v1266 = vsel %vm833, %v1235, 0
    %1268 = vmatpush.msra.mxu0 0.0
    %1269 = vmatpush.msra.mxu0 0.0
    %1270 = vmatpush.msra.mxu0 0.0
    %1271 = vmatpush.msra.mxu0 0.0
    %1272 = vmatpush.msra.mxu0 0.0
    %1273 = vmatpush.msra.mxu0 0.0
    %1274 = vmatpush.msra.mxu0 0.0
    %1275 = vmatpush.msra.mxu0 0.0
    %1276 = vmatpush.msra.mxu0 0.0
    %1277 = vmatpush.msra.mxu0 0.0
    %1278 = vmatpush.msra.mxu0 0.0
    %1279 = vmatpush.msra.mxu0 0.0
    %1280 = vmatpush.msra.mxu0 0.0
    %1281 = vmatpush.msra.mxu0 0.0
    %1282 = vmatpush.msra.mxu0 0.0
    %1283 = vmatpush.msra.mxu0 %v693
    %1284 = vmatmul.f32.gmra.mxu0 %v1266
    %v1285 = vpop.f32.mrf.mxu0
    %v1286 = vadd.f32 0.0, %v1285
    %1287 = vdwg.mxu0
    %v1289 = vsel %vm833, %v1236, 0
    %1291 = vmatpush.msra.mxu0 0.0
    %1292 = vmatpush.msra.mxu0 0.0
    %1293 = vmatpush.msra.mxu0 0.0
    %1294 = vmatpush.msra.mxu0 0.0
    %1295 = vmatpush.msra.mxu0 0.0
    %1296 = vmatpush.msra.mxu0 0.0
    %1297 = vmatpush.msra.mxu0 0.0
    %1298 = vmatpush.msra.mxu0 0.0
    %1299 = vmatpush.msra.mxu0 0.0
    %1300 = vmatpush.msra.mxu0 0.0
    %1301 = vmatpush.msra.mxu0 0.0
    %1302 = vmatpush.msra.mxu0 0.0
    %1303 = vmatpush.msra.mxu0 0.0
    %1304 = vmatpush.msra.mxu0 0.0
    %1305 = vmatpush.msra.mxu0 0.0
    %1306 = vmatpush.msra.mxu0 %v716
    %1307 = vmatmul.f32.gmra.mxu0 %v1289
    %v1308 = vpop.f32.mrf.mxu0
    %v1309 = vadd.f32 0.0, %v1308
    %1310 = vdwg.mxu0
    %v1312 = vsel %vm833, %v1237, 0
    %1314 = vmatpush.msra.mxu0 0.0
    %1315 = vmatpush.msra.mxu0 0.0
    %1316 = vmatpush.msra.mxu0 0.0
    %1317 = vmatpush.msra.mxu0 0.0
    %1318 = vmatpush.msra.mxu0 0.0
    %1319 = vmatpush.msra.mxu0 0.0
    %1320 = vmatpush.msra.mxu0 0.0
    %1321 = vmatpush.msra.mxu0 0.0
    %1322 = vmatpush.msra.mxu0 0.0
    %1323 = vmatpush.msra.mxu0 0.0
    %1324 = vmatpush.msra.mxu0 0.0
    %1325 = vmatpush.msra.mxu0 0.0
    %1326 = vmatpush.msra.mxu0 0.0
    %1327 = vmatpush.msra.mxu0 0.0
    %1328 = vmatpush.msra.mxu0 0.0
    %1329 = vmatpush.msra.mxu0 %v739
    %1330 = vmatmul.f32.gmra.mxu0 %v1312
    %v1331 = vpop.f32.mrf.mxu0
    %v1332 = vadd.f32 0.0, %v1331
    %1333 = vdwg.mxu0
    %v1335 = vsel %vm833, %v1238, 0
    %1337 = vmatpush.msra.mxu0 0.0
    %1338 = vmatpush.msra.mxu0 0.0
    %1339 = vmatpush.msra.mxu0 0.0
    %1340 = vmatpush.msra.mxu0 0.0
    %1341 = vmatpush.msra.mxu0 0.0
    %1342 = vmatpush.msra.mxu0 0.0
    %1343 = vmatpush.msra.mxu0 0.0
    %1344 = vmatpush.msra.mxu0 0.0
    %1345 = vmatpush.msra.mxu0 0.0
    %1346 = vmatpush.msra.mxu0 0.0
    %1347 = vmatpush.msra.mxu0 0.0
    %1348 = vmatpush.msra.mxu0 0.0
    %1349 = vmatpush.msra.mxu0 0.0
    %1350 = vmatpush.msra.mxu0 0.0
    %1351 = vmatpush.msra.mxu0 0.0
    %1352 = vmatpush.msra.mxu0 %v762
    %1353 = vmatmul.f32.gmra.mxu0 %v1335
    %v1354 = vpop.f32.mrf.mxu0
    %v1355 = vadd.f32 0.0, %v1354
    %1356 = vdwg.mxu0
    %v1358 = vsel %vm833, %v1239, 0
    %1360 = vmatpush.msra.mxu0 0.0
    %1361 = vmatpush.msra.mxu0 0.0
    %1362 = vmatpush.msra.mxu0 0.0
    %1363 = vmatpush.msra.mxu0 0.0
    %1364 = vmatpush.msra.mxu0 0.0
    %1365 = vmatpush.msra.mxu0 0.0
    %1366 = vmatpush.msra.mxu0 0.0
    %1367 = vmatpush.msra.mxu0 0.0
    %1368 = vmatpush.msra.mxu0 0.0
    %1369 = vmatpush.msra.mxu0 0.0
    %1370 = vmatpush.msra.mxu0 0.0
    %1371 = vmatpush.msra.mxu0 0.0
    %1372 = vmatpush.msra.mxu0 0.0
    %1373 = vmatpush.msra.mxu0 0.0
    %1374 = vmatpush.msra.mxu0 0.0
    %1375 = vmatpush.msra.mxu0 %v785
    %1376 = vmatmul.f32.gmra.mxu0 %v1358
    %v1377 = vpop.f32.mrf.mxu0
    %v1378 = vadd.f32 0.0, %v1377
    %1379 = vdwg.mxu0
    %v1381 = vsel %vm833, %v1240, 0
    %1383 = vmatpush.msra.mxu0 0.0
    %1384 = vmatpush.msra.mxu0 0.0
    %1385 = vmatpush.msra.mxu0 0.0
    %1386 = vmatpush.msra.mxu0 0.0
    %1387 = vmatpush.msra.mxu0 0.0
    %1388 = vmatpush.msra.mxu0 0.0
    %1389 = vmatpush.msra.mxu0 0.0
    %1390 = vmatpush.msra.mxu0 0.0
    %1391 = vmatpush.msra.mxu0 0.0
    %1392 = vmatpush.msra.mxu0 0.0
    %1393 = vmatpush.msra.mxu0 0.0
    %1394 = vmatpush.msra.mxu0 0.0
    %1395 = vmatpush.msra.mxu0 0.0
    %1396 = vmatpush.msra.mxu0 0.0
    %1397 = vmatpush.msra.mxu0 0.0
    %1398 = vmatpush.msra.mxu0 %v808
    %1399 = vmatmul.f32.gmra.mxu0 %v1381
    %v1400 = vpop.f32.mrf.mxu0
    %v1401 = vadd.f32 0.0, %v1400
    %1402 = vdwg.mxu0
    %v1404 = vsel %vm833, %v1241, 0
    %1406 = vmatpush.msra.mxu0 0.0
    %1407 = vmatpush.msra.mxu0 0.0
    %1408 = vmatpush.msra.mxu0 0.0
    %1409 = vmatpush.msra.mxu0 0.0
    %1410 = vmatpush.msra.mxu0 0.0
    %1411 = vmatpush.msra.mxu0 0.0
    %1412 = vmatpush.msra.mxu0 0.0
    %1413 = vmatpush.msra.mxu0 0.0
    %1414 = vmatpush.msra.mxu0 0.0
    %1415 = vmatpush.msra.mxu0 0.0
    %1416 = vmatpush.msra.mxu0 0.0
    %1417 = vmatpush.msra.mxu0 0.0
    %1418 = vmatpush.msra.mxu0 0.0
    %1419 = vmatpush.msra.mxu0 0.0
    %1420 = vmatpush.msra.mxu0 0.0
    %1421 = vmatpush.msra.mxu0 %v831
    %1422 = vmatmul.f32.gmra.mxu0 %v1404
    %v1423 = vpop.f32.mrf.mxu0
    %v1424 = vadd.f32 0.0, %v1423
    %1425 = vdwg.mxu0
    %v1427 = vsel %vm833, %v1263, 0
    %1429 = vmatpush.msra.mxu0 0.0
    %1430 = vmatpush.msra.mxu0 0.0
    %1431 = vmatpush.msra.mxu0 0.0
    %1432 = vmatpush.msra.mxu0 0.0
    %1433 = vmatpush.msra.mxu0 0.0
    %1434 = vmatpush.msra.mxu0 0.0
    %1435 = vmatpush.msra.mxu0 0.0
    %1436 = vmatpush.msra.mxu0 0.0
    %1437 = vmatpush.msra.mxu0 0.0
    %1438 = vmatpush.msra.mxu0 0.0
    %1439 = vmatpush.msra.mxu0 0.0
    %1440 = vmatpush.msra.mxu0 0.0
    %1441 = vmatpush.msra.mxu0 0.0
    %1442 = vmatpush.msra.mxu0 0.0
    %1443 = vmatpush.msra.mxu0 0.0
    %1444 = vmatpush.msra.mxu0 %v136
    %1445 = vmatmul.f32.gmra.mxu0 %v1427
    %v1446 = vpop.f32.mrf.mxu0
    %v1447 = vadd.f32 0.0, %v1446
    %1448 = vdwg.mxu0
    %v1450 = vsel %vm833, %v1286, 0
    %1452 = vmatpush.msra.mxu0 0.0
    %1453 = vmatpush.msra.mxu0 0.0
    %1454 = vmatpush.msra.mxu0 0.0
    %1455 = vmatpush.msra.mxu0 0.0
    %1456 = vmatpush.msra.mxu0 0.0
    %1457 = vmatpush.msra.mxu0 0.0
    %1458 = vmatpush.msra.mxu0 0.0
    %1459 = vmatpush.msra.mxu0 0.0
    %1460 = vmatpush.msra.mxu0 0.0
    %1461 = vmatpush.msra.mxu0 0.0
    %1462 = vmatpush.msra.mxu0 0.0
    %1463 = vmatpush.msra.mxu0 0.0
    %1464 = vmatpush.msra.mxu0 0.0
    %1465 = vmatpush.msra.mxu0 0.0
    %1466 = vmatpush.msra.mxu0 0.0
    %1467 = vmatpush.msra.mxu0 %v137
    %1468 = vmatmul.f32.gmra.mxu0 %v1450
    %v1469 = vpop.f32.mrf.mxu0
    %v1470 = vadd.f32 0.0, %v1469
    %1471 = vdwg.mxu0
    %v1473 = vsel %vm833, %v1309, 0
    %1475 = vmatpush.msra.mxu0 0.0
    %1476 = vmatpush.msra.mxu0 0.0
    %1477 = vmatpush.msra.mxu0 0.0
    %1478 = vmatpush.msra.mxu0 0.0
    %1479 = vmatpush.msra.mxu0 0.0
    %1480 = vmatpush.msra.mxu0 0.0
    %1481 = vmatpush.msra.mxu0 0.0
    %1482 = vmatpush.msra.mxu0 0.0
    %1483 = vmatpush.msra.mxu0 0.0
    %1484 = vmatpush.msra.mxu0 0.0
    %1485 = vmatpush.msra.mxu0 0.0
    %1486 = vmatpush.msra.mxu0 0.0
    %1487 = vmatpush.msra.mxu0 0.0
    %1488 = vmatpush.msra.mxu0 0.0
    %1489 = vmatpush.msra.mxu0 0.0
    %1490 = vmatpush.msra.mxu0 %v138
    %1491 = vmatmul.f32.gmra.mxu0 %v1473
    %v1492 = vpop.f32.mrf.mxu0
    %v1493 = vadd.f32 0.0, %v1492
    %1494 = vdwg.mxu0
    %v1496 = vsel %vm833, %v1332, 0
    %1498 = vmatpush.msra.mxu0 0.0
    %1499 = vmatpush.msra.mxu0 0.0
    %1500 = vmatpush.msra.mxu0 0.0
    %1501 = vmatpush.msra.mxu0 0.0
    %1502 = vmatpush.msra.mxu0 0.0
    %1503 = vmatpush.msra.mxu0 0.0
    %1504 = vmatpush.msra.mxu0 0.0
    %1505 = vmatpush.msra.mxu0 0.0
    %1506 = vmatpush.msra.mxu0 0.0
    %1507 = vmatpush.msra.mxu0 0.0
    %1508 = vmatpush.msra.mxu0 0.0
    %1509 = vmatpush.msra.mxu0 0.0
    %1510 = vmatpush.msra.mxu0 0.0
    %1511 = vmatpush.msra.mxu0 0.0
    %1512 = vmatpush.msra.mxu0 0.0
    %1513 = vmatpush.msra.mxu0 %v139
    %1514 = vmatmul.f32.gmra.mxu0 %v1496
    %v1515 = vpop.f32.mrf.mxu0
    %v1516 = vadd.f32 0.0, %v1515
    %1517 = vdwg.mxu0
    %v1519 = vsel %vm833, %v1355, 0
    %1521 = vmatpush.msra.mxu0 0.0
    %1522 = vmatpush.msra.mxu0 0.0
    %1523 = vmatpush.msra.mxu0 0.0
    %1524 = vmatpush.msra.mxu0 0.0
    %1525 = vmatpush.msra.mxu0 0.0
    %1526 = vmatpush.msra.mxu0 0.0
    %1527 = vmatpush.msra.mxu0 0.0
    %1528 = vmatpush.msra.mxu0 0.0
    %1529 = vmatpush.msra.mxu0 0.0
    %1530 = vmatpush.msra.mxu0 0.0
    %1531 = vmatpush.msra.mxu0 0.0
    %1532 = vmatpush.msra.mxu0 0.0
    %1533 = vmatpush.msra.mxu0 0.0
    %1534 = vmatpush.msra.mxu0 0.0
    %1535 = vmatpush.msra.mxu0 0.0
    %1536 = vmatpush.msra.mxu0 %v140
    %1537 = vmatmul.f32.gmra.mxu0 %v1519
    %v1538 = vpop.f32.mrf.mxu0
    %v1539 = vadd.f32 0.0, %v1538
    %1540 = vdwg.mxu0
    %v1542 = vsel %vm833, %v1378, 0
    %1544 = vmatpush.msra.mxu0 0.0
    %1545 = vmatpush.msra.mxu0 0.0
    %1546 = vmatpush.msra.mxu0 0.0
    %1547 = vmatpush.msra.mxu0 0.0
    %1548 = vmatpush.msra.mxu0 0.0
    %1549 = vmatpush.msra.mxu0 0.0
    %1550 = vmatpush.msra.mxu0 0.0
    %1551 = vmatpush.msra.mxu0 0.0
    %1552 = vmatpush.msra.mxu0 0.0
    %1553 = vmatpush.msra.mxu0 0.0
    %1554 = vmatpush.msra.mxu0 0.0
    %1555 = vmatpush.msra.mxu0 0.0
    %1556 = vmatpush.msra.mxu0 0.0
    %1557 = vmatpush.msra.mxu0 0.0
    %1558 = vmatpush.msra.mxu0 0.0
    %1559 = vmatpush.msra.mxu0 %v141
    %1560 = vmatmul.f32.gmra.mxu0 %v1542
    %v1561 = vpop.f32.mrf.mxu0
    %v1562 = vadd.f32 0.0, %v1561
    %1563 = vdwg.mxu0
    %v1565 = vsel %vm833, %v1401, 0
    %1567 = vmatpush.msra.mxu0 0.0
    %1568 = vmatpush.msra.mxu0 0.0
    %1569 = vmatpush.msra.mxu0 0.0
    %1570 = vmatpush.msra.mxu0 0.0
    %1571 = vmatpush.msra.mxu0 0.0
    %1572 = vmatpush.msra.mxu0 0.0
    %1573 = vmatpush.msra.mxu0 0.0
    %1574 = vmatpush.msra.mxu0 0.0
    %1575 = vmatpush.msra.mxu0 0.0
    %1576 = vmatpush.msra.mxu0 0.0
    %1577 = vmatpush.msra.mxu0 0.0
    %1578 = vmatpush.msra.mxu0 0.0
    %1579 = vmatpush.msra.mxu0 0.0
    %1580 = vmatpush.msra.mxu0 0.0
    %1581 = vmatpush.msra.mxu0 0.0
    %1582 = vmatpush.msra.mxu0 %v142
    %1583 = vmatmul.f32.gmra.mxu0 %v1565
    %v1584 = vpop.f32.mrf.mxu0
    %v1585 = vadd.f32 0.0, %v1584
    %1586 = vdwg.mxu0
    %v1588 = vsel %vm833, %v1424, 0
    %1590 = vmatpush.msra.mxu0 0.0
    %1591 = vmatpush.msra.mxu0 0.0
    %1592 = vmatpush.msra.mxu0 0.0
    %1593 = vmatpush.msra.mxu0 0.0
    %1594 = vmatpush.msra.mxu0 0.0
    %1595 = vmatpush.msra.mxu0 0.0
    %1596 = vmatpush.msra.mxu0 0.0
    %1597 = vmatpush.msra.mxu0 0.0
    %1598 = vmatpush.msra.mxu0 0.0
    %1599 = vmatpush.msra.mxu0 0.0
    %1600 = vmatpush.msra.mxu0 0.0
    %1601 = vmatpush.msra.mxu0 0.0
    %1602 = vmatpush.msra.mxu0 0.0
    %1603 = vmatpush.msra.mxu0 0.0
    %1604 = vmatpush.msra.mxu0 0.0
    %1605 = vmatpush.msra.mxu0 %v143
    %1606 = vmatmul.f32.gmra.mxu0 %v1588
    %v1607 = vpop.f32.mrf.mxu0
    %v1608 = vadd.f32 0.0, %v1607
    %1609 = vdwg.mxu0
    %v1610 = vadd.f32 %v1447, %v1493
    %v1611 = vadd.f32 %v1470, %v1516
    %v1612 = vadd.f32 %v1610, %v1539
    %v1613 = vadd.f32 %v1611, %v1562
    %v1614 = vadd.f32 %v1612, %v1585
    %v1615 = vadd.f32 %v1613, %v1608
    %v1616 = vadd.f32 %v106, %v1614
    %v1617 = vadd.f32 %v107, %v1615
    %v1618 = vperm.slane %v110, 6
    %v1619 = vadd.f32 %v1616, %v1618
    %v1620 = vadd.f32 %v1617, %v1618
    %v1621 = vsel %vm192, %v1619, 0.0
    %1622 = vadd.xlane.f32.xlu0 %v1621
    %v1623 = vpop.xlane.xlu0 %1622
    %v1624 = vsel %vm192, %v1620, 0.0
    %1625 = vadd.xlane.f32.xlu0 %v1624
    %v1626 = vpop.xlane.xlu0 %1625
    %v1627 = vmul.f32 %v1623, 0.03125
    %v1628 = vmul.f32 %v1626, 0.03125
    %v1629 = vsub.f32 %v1619, %v1627
    %v1630 = vsub.f32 %v1620, %v1628
    %v1631 = vmul.f32 %v1629, %v1629
    %v1632 = vmul.f32 %v1630, %v1630
    %v1633 = vsel %vm192, %v1631, 0.0
    %1634 = vadd.xlane.f32.xlu0 %v1633
    %v1635 = vpop.xlane.xlu0 %1634
    %v1636 = vsel %vm192, %v1632, 0.0
    %1637 = vadd.xlane.f32.xlu0 %v1636
    %v1638 = vpop.xlane.xlu0 %1637
    %v1639 = vmul.f32 %v1635, 0.032258064
    %v1640 = vmul.f32 %v1638, 0.032258064
    %v1641 = vrsqrt.pop %v1639
    %v1642 = vmul.f32 %v1641, %v1639
    %v1643 = vmul.f32 %v1642, %v1641
    %v1644 = vmul.f32 0.5, %v1643
    %v1645 = vsub.f32 1.5, %v1644
    %v1646 = vmul.f32 %v1641, %v1645
    %v1647 = vmul.f32 %v1639, %v1646
    %vm1648 = vcmp.eq.f32.partialorder %v1639, inf
    %v1649 = vsel %vm1648, %v1639, %v1647
    %vm1650 = vcmp.eq.f32.partialorder %v1639, 0.0
    %v1651 = vand.u32 %v1639, 2147483648
    %v1652 = vsel %vm1650, %v1651, %v1649
    %v1653 = vrsqrt.pop %v1640
    %v1654 = vmul.f32 %v1653, %v1640
    %v1655 = vmul.f32 %v1654, %v1653
    %v1656 = vmul.f32 0.5, %v1655
    %v1657 = vsub.f32 1.5, %v1656
    %v1658 = vmul.f32 %v1653, %v1657
    %v1659 = vmul.f32 %v1640, %v1658
    %vm1660 = vcmp.eq.f32.partialorder %v1640, inf
    %v1661 = vsel %vm1660, %v1640, %v1659
    %vm1662 = vcmp.eq.f32.partialorder %v1640, 0.0
    %v1663 = vand.u32 %v1640, 2147483648
    %v1664 = vsel %vm1662, %v1663, %v1661
    %v1665 = vadd.f32 %v1652, 1e-06
    %v1666 = vadd.f32 %v1664, 1e-06
    %v1667 = vrcp.pop %v1665
    %v1668 = vmul.f32 %v1665, %v1667
    %v1669 = vsub.f32 1.0, %v1668
    %v1670 = vmul.f32 %v1667, %v1669
    %v1671 = vadd.f32 %v1667, %v1670
    %vm1672 = vweird.f32 %v1665
    %vm1673 = vweird.f32 %v1667
    %vm1674 = vmor %vm1672, %vm1673
    %v1675 = vsel %vm1674, %v1667, %v1671
    %v1676 = vand.u32 2147483647, %v1665
    %vm1677 = vcmp.eq.f32.partialorder %v1676, 8.507059e+37
    %v1678 = vand.u32 %v1665, 2147483648
    %v1679 = vor.u32 1.1754944e-38, %v1678
    %v1680 = vsel %vm1677, %v1679, %v1675
    %v1681 = vrcp.pop %v1666
    %v1682 = vmul.f32 %v1666, %v1681
    %v1683 = vsub.f32 1.0, %v1682
    %v1684 = vmul.f32 %v1681, %v1683
    %v1685 = vadd.f32 %v1681, %v1684
    %vm1686 = vweird.f32 %v1666
    %vm1687 = vweird.f32 %v1681
    %vm1688 = vmor %vm1686, %vm1687
    %v1689 = vsel %vm1688, %v1681, %v1685
    %v1690 = vand.u32 2147483647, %v1666
    %vm1691 = vcmp.eq.f32.partialorder %v1690, 8.507059e+37
    %v1692 = vand.u32 %v1666, 2147483648
    %v1693 = vor.u32 1.1754944e-38, %v1692
    %v1694 = vsel %vm1691, %v1693, %v1689
    %v1695 = vperm.slane %v110, 2
    %v1696 = vmul.f32 %v1695, %v1629
    %v1697 = vmul.f32 %v1695, %v1630
    %v1698 = vmul.f32 %v1696, %v1680
    %v1699 = vmul.f32 %v1697, %v1694
    %v1700 = vperm.slane %v110, 3
    %v1701 = vadd.f32 %v1698, %v1700
    %v1702 = vadd.f32 %v1699, %v1700
    %v1704 = vsel %vm192, %v1701, 0
    %v1707 = vsel %vm192, %v144, 0
    %1709 = vmatpush.xpose.msra.mxu0 0.0
    %1710 = vmatpush.xpose.msra.mxu0 0.0
    %1711 = vmatpush.xpose.msra.mxu0 0.0
    %1712 = vmatpush.xpose.msra.mxu0 0.0
    %1713 = vmatpush.xpose.msra.mxu0 0.0
    %1714 = vmatpush.xpose.msra.mxu0 0.0
    %1715 = vmatpush.xpose.msra.mxu0 0.0
    %1716 = vmatpush.xpose.msra.mxu0 0.0
    %1717 = vmatpush.xpose.msra.mxu0 0.0
    %1718 = vmatpush.xpose.msra.mxu0 0.0
    %1719 = vmatpush.xpose.msra.mxu0 0.0
    %1720 = vmatpush.xpose.msra.mxu0 0.0
    %1721 = vmatpush.xpose.msra.mxu0 0.0
    %1722 = vmatpush.xpose.msra.mxu0 0.0
    %1723 = vmatpush.xpose.msra.mxu0 0.0
    %1724 = vmatpush.xpose.msra.mxu0 %v1707
    %1725 = vmatmul.f32.gmra.mxu0 %v1704
    %v1726 = vpop.f32.mrf.mxu0
    %v1727 = vadd.f32 %v184, %v1726
    %1728 = vdwg.mxu0
    %v1730 = vsel %vm192, %v1702, 0
    %v1733 = vsel %vm192, %v145, 0
    %1735 = vmatpush.xpose.msra.mxu0 0.0
    %1736 = vmatpush.xpose.msra.mxu0 0.0
    %1737 = vmatpush.xpose.msra.mxu0 0.0
    %1738 = vmatpush.xpose.msra.mxu0 0.0
    %1739 = vmatpush.xpose.msra.mxu0 0.0
    %1740 = vmatpush.xpose.msra.mxu0 0.0
    %1741 = vmatpush.xpose.msra.mxu0 0.0
    %1742 = vmatpush.xpose.msra.mxu0 0.0
    %1743 = vmatpush.xpose.msra.mxu0 0.0
    %1744 = vmatpush.xpose.msra.mxu0 0.0
    %1745 = vmatpush.xpose.msra.mxu0 0.0
    %1746 = vmatpush.xpose.msra.mxu0 0.0
    %1747 = vmatpush.xpose.msra.mxu0 0.0
    %1748 = vmatpush.xpose.msra.mxu0 0.0
    %1749 = vmatpush.xpose.msra.mxu0 0.0
    %1750 = vmatpush.xpose.msra.mxu0 %v1733
    %1751 = vmatmul.f32.gmra.mxu0 %v1730
    %v1752 = vpop.f32.mrf.mxu0
    %v1753 = vadd.f32 %v185, %v1752
    %1754 = vdwg.mxu0
    %v1756 = vsel %vm192, %v146, 0
    %1758 = vmatpush.xpose.msra.mxu0 0.0
    %1759 = vmatpush.xpose.msra.mxu0 0.0
    %1760 = vmatpush.xpose.msra.mxu0 0.0
    %1761 = vmatpush.xpose.msra.mxu0 0.0
    %1762 = vmatpush.xpose.msra.mxu0 0.0
    %1763 = vmatpush.xpose.msra.mxu0 0.0
    %1764 = vmatpush.xpose.msra.mxu0 0.0
    %1765 = vmatpush.xpose.msra.mxu0 0.0
    %1766 = vmatpush.xpose.msra.mxu0 0.0
    %1767 = vmatpush.xpose.msra.mxu0 0.0
    %1768 = vmatpush.xpose.msra.mxu0 0.0
    %1769 = vmatpush.xpose.msra.mxu0 0.0
    %1770 = vmatpush.xpose.msra.mxu0 0.0
    %1771 = vmatpush.xpose.msra.mxu0 0.0
    %1772 = vmatpush.xpose.msra.mxu0 0.0
    %1773 = vmatpush.xpose.msra.mxu0 %v1756
    %1774 = vmatmul.f32.gmra.mxu0 %v1704
    %v1775 = vpop.f32.mrf.mxu0
    %v1776 = vadd.f32 %v186, %v1775
    %1777 = vdwg.mxu0
    %v1779 = vsel %vm192, %v147, 0
    %1781 = vmatpush.xpose.msra.mxu0 0.0
    %1782 = vmatpush.xpose.msra.mxu0 0.0
    %1783 = vmatpush.xpose.msra.mxu0 0.0
    %1784 = vmatpush.xpose.msra.mxu0 0.0
    %1785 = vmatpush.xpose.msra.mxu0 0.0
    %1786 = vmatpush.xpose.msra.mxu0 0.0
    %1787 = vmatpush.xpose.msra.mxu0 0.0
    %1788 = vmatpush.xpose.msra.mxu0 0.0
    %1789 = vmatpush.xpose.msra.mxu0 0.0
    %1790 = vmatpush.xpose.msra.mxu0 0.0
    %1791 = vmatpush.xpose.msra.mxu0 0.0
    %1792 = vmatpush.xpose.msra.mxu0 0.0
    %1793 = vmatpush.xpose.msra.mxu0 0.0
    %1794 = vmatpush.xpose.msra.mxu0 0.0
    %1795 = vmatpush.xpose.msra.mxu0 0.0
    %1796 = vmatpush.xpose.msra.mxu0 %v1779
    %1797 = vmatmul.f32.gmra.mxu0 %v1730
    %v1798 = vpop.f32.mrf.mxu0
    %v1799 = vadd.f32 %v187, %v1798
    %1800 = vdwg.mxu0
    %v1802 = vsel %vm192, %v148, 0
    %1804 = vmatpush.xpose.msra.mxu0 0.0
    %1805 = vmatpush.xpose.msra.mxu0 0.0
    %1806 = vmatpush.xpose.msra.mxu0 0.0
    %1807 = vmatpush.xpose.msra.mxu0 0.0
    %1808 = vmatpush.xpose.msra.mxu0 0.0
    %1809 = vmatpush.xpose.msra.mxu0 0.0
    %1810 = vmatpush.xpose.msra.mxu0 0.0
    %1811 = vmatpush.xpose.msra.mxu0 0.0
    %1812 = vmatpush.xpose.msra.mxu0 0.0
    %1813 = vmatpush.xpose.msra.mxu0 0.0
    %1814 = vmatpush.xpose.msra.mxu0 0.0
    %1815 = vmatpush.xpose.msra.mxu0 0.0
    %1816 = vmatpush.xpose.msra.mxu0 0.0
    %1817 = vmatpush.xpose.msra.mxu0 0.0
    %1818 = vmatpush.xpose.msra.mxu0 0.0
    %1819 = vmatpush.xpose.msra.mxu0 %v1802
    %1820 = vmatmul.f32.gmra.mxu0 %v1704
    %v1821 = vpop.f32.mrf.mxu0
    %v1822 = vadd.f32 %v188, %v1821
    %1823 = vdwg.mxu0
    %v1825 = vsel %vm192, %v149, 0
    %1827 = vmatpush.xpose.msra.mxu0 0.0
    %1828 = vmatpush.xpose.msra.mxu0 0.0
    %1829 = vmatpush.xpose.msra.mxu0 0.0
    %1830 = vmatpush.xpose.msra.mxu0 0.0
    %1831 = vmatpush.xpose.msra.mxu0 0.0
    %1832 = vmatpush.xpose.msra.mxu0 0.0
    %1833 = vmatpush.xpose.msra.mxu0 0.0
    %1834 = vmatpush.xpose.msra.mxu0 0.0
    %1835 = vmatpush.xpose.msra.mxu0 0.0
    %1836 = vmatpush.xpose.msra.mxu0 0.0
    %1837 = vmatpush.xpose.msra.mxu0 0.0
    %1838 = vmatpush.xpose.msra.mxu0 0.0
    %1839 = vmatpush.xpose.msra.mxu0 0.0
    %1840 = vmatpush.xpose.msra.mxu0 0.0
    %1841 = vmatpush.xpose.msra.mxu0 0.0
    %1842 = vmatpush.xpose.msra.mxu0 %v1825
    %1843 = vmatmul.f32.gmra.mxu0 %v1730
    %v1844 = vpop.f32.mrf.mxu0
    %v1845 = vadd.f32 %v189, %v1844
    %1846 = vdwg.mxu0
    %v1848 = vsel %vm192, %v150, 0
    %1850 = vmatpush.xpose.msra.mxu0 0.0
    %1851 = vmatpush.xpose.msra.mxu0 0.0
    %1852 = vmatpush.xpose.msra.mxu0 0.0
    %1853 = vmatpush.xpose.msra.mxu0 0.0
    %1854 = vmatpush.xpose.msra.mxu0 0.0
    %1855 = vmatpush.xpose.msra.mxu0 0.0
    %1856 = vmatpush.xpose.msra.mxu0 0.0
    %1857 = vmatpush.xpose.msra.mxu0 0.0
    %1858 = vmatpush.xpose.msra.mxu0 0.0
    %1859 = vmatpush.xpose.msra.mxu0 0.0
    %1860 = vmatpush.xpose.msra.mxu0 0.0
    %1861 = vmatpush.xpose.msra.mxu0 0.0
    %1862 = vmatpush.xpose.msra.mxu0 0.0
    %1863 = vmatpush.xpose.msra.mxu0 0.0
    %1864 = vmatpush.xpose.msra.mxu0 0.0
    %1865 = vmatpush.xpose.msra.mxu0 %v1848
    %1866 = vmatmul.f32.gmra.mxu0 %v1704
    %v1867 = vpop.f32.mrf.mxu0
    %v1868 = vadd.f32 %v190, %v1867
    %1869 = vdwg.mxu0
    %v1871 = vsel %vm192, %v151, 0
    %1873 = vmatpush.xpose.msra.mxu0 0.0
    %1874 = vmatpush.xpose.msra.mxu0 0.0
    %1875 = vmatpush.xpose.msra.mxu0 0.0
    %1876 = vmatpush.xpose.msra.mxu0 0.0
    %1877 = vmatpush.xpose.msra.mxu0 0.0
    %1878 = vmatpush.xpose.msra.mxu0 0.0
    %1879 = vmatpush.xpose.msra.mxu0 0.0
    %1880 = vmatpush.xpose.msra.mxu0 0.0
    %1881 = vmatpush.xpose.msra.mxu0 0.0
    %1882 = vmatpush.xpose.msra.mxu0 0.0
    %1883 = vmatpush.xpose.msra.mxu0 0.0
    %1884 = vmatpush.xpose.msra.mxu0 0.0
    %1885 = vmatpush.xpose.msra.mxu0 0.0
    %1886 = vmatpush.xpose.msra.mxu0 0.0
    %1887 = vmatpush.xpose.msra.mxu0 0.0
    %1888 = vmatpush.xpose.msra.mxu0 %v1871
    %1889 = vmatmul.f32.gmra.mxu0 %v1730
    %v1890 = vpop.f32.mrf.mxu0
    %v1891 = vadd.f32 %v191, %v1890
    %1892 = vdwg.mxu0
    %v1894 = vsel %vm192, %v108, 0
    %v1897 = vsel %vm192, %v152, 0
    %1899 = vmatpush.xpose.msra.mxu0 0.0
    %1900 = vmatpush.xpose.msra.mxu0 0.0
    %1901 = vmatpush.xpose.msra.mxu0 0.0
    %1902 = vmatpush.xpose.msra.mxu0 0.0
    %1903 = vmatpush.xpose.msra.mxu0 0.0
    %1904 = vmatpush.xpose.msra.mxu0 0.0
    %1905 = vmatpush.xpose.msra.mxu0 0.0
    %1906 = vmatpush.xpose.msra.mxu0 0.0
    %1907 = vmatpush.xpose.msra.mxu0 0.0
    %1908 = vmatpush.xpose.msra.mxu0 0.0
    %1909 = vmatpush.xpose.msra.mxu0 0.0
    %1910 = vmatpush.xpose.msra.mxu0 0.0
    %1911 = vmatpush.xpose.msra.mxu0 0.0
    %1912 = vmatpush.xpose.msra.mxu0 0.0
    %1913 = vmatpush.xpose.msra.mxu0 0.0
    %1914 = vmatpush.xpose.msra.mxu0 %v1897
    %1915 = vmatmul.f32.gmra.mxu0 %v1894
    %v1916 = vpop.f32.mrf.mxu0
    %v1917 = vadd.f32 0.0, %v1916
    %1918 = vdwg.mxu0
    %v1920 = vsel %vm192, %v109, 0
    %v1923 = vsel %vm192, %v153, 0
    %1925 = vmatpush.xpose.msra.mxu0 0.0
    %1926 = vmatpush.xpose.msra.mxu0 0.0
    %1927 = vmatpush.xpose.msra.mxu0 0.0
    %1928 = vmatpush.xpose.msra.mxu0 0.0
    %1929 = vmatpush.xpose.msra.mxu0 0.0
    %1930 = vmatpush.xpose.msra.mxu0 0.0
    %1931 = vmatpush.xpose.msra.mxu0 0.0
    %1932 = vmatpush.xpose.msra.mxu0 0.0
    %1933 = vmatpush.xpose.msra.mxu0 0.0
    %1934 = vmatpush.xpose.msra.mxu0 0.0
    %1935 = vmatpush.xpose.msra.mxu0 0.0
    %1936 = vmatpush.xpose.msra.mxu0 0.0
    %1937 = vmatpush.xpose.msra.mxu0 0.0
    %1938 = vmatpush.xpose.msra.mxu0 0.0
    %1939 = vmatpush.xpose.msra.mxu0 0.0
    %1940 = vmatpush.xpose.msra.mxu0 %v1923
    %1941 = vmatmul.f32.gmra.mxu0 %v1920
    %v1942 = vpop.f32.mrf.mxu0
    %v1943 = vadd.f32 0.0, %v1942
    %1944 = vdwg.mxu0
    %v1946 = vsel %vm192, %v154, 0
    %1948 = vmatpush.xpose.msra.mxu0 0.0
    %1949 = vmatpush.xpose.msra.mxu0 0.0
    %1950 = vmatpush.xpose.msra.mxu0 0.0
    %1951 = vmatpush.xpose.msra.mxu0 0.0
    %1952 = vmatpush.xpose.msra.mxu0 0.0
    %1953 = vmatpush.xpose.msra.mxu0 0.0
    %1954 = vmatpush.xpose.msra.mxu0 0.0
    %1955 = vmatpush.xpose.msra.mxu0 0.0
    %1956 = vmatpush.xpose.msra.mxu0 0.0
    %1957 = vmatpush.xpose.msra.mxu0 0.0
    %1958 = vmatpush.xpose.msra.mxu0 0.0
    %1959 = vmatpush.xpose.msra.mxu0 0.0
    %1960 = vmatpush.xpose.msra.mxu0 0.0
    %1961 = vmatpush.xpose.msra.mxu0 0.0
    %1962 = vmatpush.xpose.msra.mxu0 0.0
    %1963 = vmatpush.xpose.msra.mxu0 %v1946
    %1964 = vmatmul.f32.gmra.mxu0 %v1894
    %v1965 = vpop.f32.mrf.mxu0
    %v1966 = vadd.f32 0.0, %v1965
    %1967 = vdwg.mxu0
    %v1969 = vsel %vm192, %v155, 0
    %1971 = vmatpush.xpose.msra.mxu0 0.0
    %1972 = vmatpush.xpose.msra.mxu0 0.0
    %1973 = vmatpush.xpose.msra.mxu0 0.0
    %1974 = vmatpush.xpose.msra.mxu0 0.0
    %1975 = vmatpush.xpose.msra.mxu0 0.0
    %1976 = vmatpush.xpose.msra.mxu0 0.0
    %1977 = vmatpush.xpose.msra.mxu0 0.0
    %1978 = vmatpush.xpose.msra.mxu0 0.0
    %1979 = vmatpush.xpose.msra.mxu0 0.0
    %1980 = vmatpush.xpose.msra.mxu0 0.0
    %1981 = vmatpush.xpose.msra.mxu0 0.0
    %1982 = vmatpush.xpose.msra.mxu0 0.0
    %1983 = vmatpush.xpose.msra.mxu0 0.0
    %1984 = vmatpush.xpose.msra.mxu0 0.0
    %1985 = vmatpush.xpose.msra.mxu0 0.0
    %1986 = vmatpush.xpose.msra.mxu0 %v1969
    %1987 = vmatmul.f32.gmra.mxu0 %v1920
    %v1988 = vpop.f32.mrf.mxu0
    %v1989 = vadd.f32 0.0, %v1988
    %1990 = vdwg.mxu0
    %v1992 = vsel %vm192, %v156, 0
    %1994 = vmatpush.xpose.msra.mxu0 0.0
    %1995 = vmatpush.xpose.msra.mxu0 0.0
    %1996 = vmatpush.xpose.msra.mxu0 0.0
    %1997 = vmatpush.xpose.msra.mxu0 0.0
    %1998 = vmatpush.xpose.msra.mxu0 0.0
    %1999 = vmatpush.xpose.msra.mxu0 0.0
    %2000 = vmatpush.xpose.msra.mxu0 0.0
    %2001 = vmatpush.xpose.msra.mxu0 0.0
    %2002 = vmatpush.xpose.msra.mxu0 0.0
    %2003 = vmatpush.xpose.msra.mxu0 0.0
    %2004 = vmatpush.xpose.msra.mxu0 0.0
    %2005 = vmatpush.xpose.msra.mxu0 0.0
    %2006 = vmatpush.xpose.msra.mxu0 0.0
    %2007 = vmatpush.xpose.msra.mxu0 0.0
    %2008 = vmatpush.xpose.msra.mxu0 0.0
    %2009 = vmatpush.xpose.msra.mxu0 %v1992
    %2010 = vmatmul.f32.gmra.mxu0 %v1894
    %v2011 = vpop.f32.mrf.mxu0
    %v2012 = vadd.f32 0.0, %v2011
    %2013 = vdwg.mxu0
    %v2015 = vsel %vm192, %v157, 0
    %2017 = vmatpush.xpose.msra.mxu0 0.0
    %2018 = vmatpush.xpose.msra.mxu0 0.0
    %2019 = vmatpush.xpose.msra.mxu0 0.0
    %2020 = vmatpush.xpose.msra.mxu0 0.0
    %2021 = vmatpush.xpose.msra.mxu0 0.0
    %2022 = vmatpush.xpose.msra.mxu0 0.0
    %2023 = vmatpush.xpose.msra.mxu0 0.0
    %2024 = vmatpush.xpose.msra.mxu0 0.0
    %2025 = vmatpush.xpose.msra.mxu0 0.0
    %2026 = vmatpush.xpose.msra.mxu0 0.0
    %2027 = vmatpush.xpose.msra.mxu0 0.0
    %2028 = vmatpush.xpose.msra.mxu0 0.0
    %2029 = vmatpush.xpose.msra.mxu0 0.0
    %2030 = vmatpush.xpose.msra.mxu0 0.0
    %2031 = vmatpush.xpose.msra.mxu0 0.0
    %2032 = vmatpush.xpose.msra.mxu0 %v2015
    %2033 = vmatmul.f32.gmra.mxu0 %v1920
    %v2034 = vpop.f32.mrf.mxu0
    %v2035 = vadd.f32 0.0, %v2034
    %2036 = vdwg.mxu0
    %v2038 = vsel %vm192, %v158, 0
    %2040 = vmatpush.xpose.msra.mxu0 0.0
    %2041 = vmatpush.xpose.msra.mxu0 0.0
    %2042 = vmatpush.xpose.msra.mxu0 0.0
    %2043 = vmatpush.xpose.msra.mxu0 0.0
    %2044 = vmatpush.xpose.msra.mxu0 0.0
    %2045 = vmatpush.xpose.msra.mxu0 0.0
    %2046 = vmatpush.xpose.msra.mxu0 0.0
    %2047 = vmatpush.xpose.msra.mxu0 0.0
    %2048 = vmatpush.xpose.msra.mxu0 0.0
    %2049 = vmatpush.xpose.msra.mxu0 0.0
    %2050 = vmatpush.xpose.msra.mxu0 0.0
    %2051 = vmatpush.xpose.msra.mxu0 0.0
    %2052 = vmatpush.xpose.msra.mxu0 0.0
    %2053 = vmatpush.xpose.msra.mxu0 0.0
    %2054 = vmatpush.xpose.msra.mxu0 0.0
    %2055 = vmatpush.xpose.msra.mxu0 %v2038
    %2056 = vmatmul.f32.gmra.mxu0 %v1894
    %v2057 = vpop.f32.mrf.mxu0
    %v2058 = vadd.f32 0.0, %v2057
    %2059 = vdwg.mxu0
    %v2061 = vsel %vm192, %v159, 0
    %2063 = vmatpush.xpose.msra.mxu0 0.0
    %2064 = vmatpush.xpose.msra.mxu0 0.0
    %2065 = vmatpush.xpose.msra.mxu0 0.0
    %2066 = vmatpush.xpose.msra.mxu0 0.0
    %2067 = vmatpush.xpose.msra.mxu0 0.0
    %2068 = vmatpush.xpose.msra.mxu0 0.0
    %2069 = vmatpush.xpose.msra.mxu0 0.0
    %2070 = vmatpush.xpose.msra.mxu0 0.0
    %2071 = vmatpush.xpose.msra.mxu0 0.0
    %2072 = vmatpush.xpose.msra.mxu0 0.0
    %2073 = vmatpush.xpose.msra.mxu0 0.0
    %2074 = vmatpush.xpose.msra.mxu0 0.0
    %2075 = vmatpush.xpose.msra.mxu0 0.0
    %2076 = vmatpush.xpose.msra.mxu0 0.0
    %2077 = vmatpush.xpose.msra.mxu0 0.0
    %2078 = vmatpush.xpose.msra.mxu0 %v2061
    %2079 = vmatmul.f32.gmra.mxu0 %v1920
    %v2080 = vpop.f32.mrf.mxu0
    %v2081 = vadd.f32 0.0, %v2080
    %2082 = vdwg.mxu0
    %v2084 = vsel %vm192, %v160, 0
    %2086 = vmatpush.xpose.msra.mxu0 0.0
    %2087 = vmatpush.xpose.msra.mxu0 0.0
    %2088 = vmatpush.xpose.msra.mxu0 0.0
    %2089 = vmatpush.xpose.msra.mxu0 0.0
    %2090 = vmatpush.xpose.msra.mxu0 0.0
    %2091 = vmatpush.xpose.msra.mxu0 0.0
    %2092 = vmatpush.xpose.msra.mxu0 0.0
    %2093 = vmatpush.xpose.msra.mxu0 0.0
    %2094 = vmatpush.xpose.msra.mxu0 0.0
    %2095 = vmatpush.xpose.msra.mxu0 0.0
    %2096 = vmatpush.xpose.msra.mxu0 0.0
    %2097 = vmatpush.xpose.msra.mxu0 0.0
    %2098 = vmatpush.xpose.msra.mxu0 0.0
    %2099 = vmatpush.xpose.msra.mxu0 0.0
    %2100 = vmatpush.xpose.msra.mxu0 0.0
    %2101 = vmatpush.xpose.msra.mxu0 %v2084
    %2102 = vmatmul.f32.gmra.mxu0 %v1894
    %v2103 = vpop.f32.mrf.mxu0
    %v2104 = vadd.f32 0.0, %v2103
    %2105 = vdwg.mxu0
    %v2107 = vsel %vm192, %v161, 0
    %2109 = vmatpush.xpose.msra.mxu0 0.0
    %2110 = vmatpush.xpose.msra.mxu0 0.0
    %2111 = vmatpush.xpose.msra.mxu0 0.0
    %2112 = vmatpush.xpose.msra.mxu0 0.0
    %2113 = vmatpush.xpose.msra.mxu0 0.0
    %2114 = vmatpush.xpose.msra.mxu0 0.0
    %2115 = vmatpush.xpose.msra.mxu0 0.0
    %2116 = vmatpush.xpose.msra.mxu0 0.0
    %2117 = vmatpush.xpose.msra.mxu0 0.0
    %2118 = vmatpush.xpose.msra.mxu0 0.0
    %2119 = vmatpush.xpose.msra.mxu0 0.0
    %2120 = vmatpush.xpose.msra.mxu0 0.0
    %2121 = vmatpush.xpose.msra.mxu0 0.0
    %2122 = vmatpush.xpose.msra.mxu0 0.0
    %2123 = vmatpush.xpose.msra.mxu0 0.0
    %2124 = vmatpush.xpose.msra.mxu0 %v2107
    %2125 = vmatmul.f32.gmra.mxu0 %v1920
    %v2126 = vpop.f32.mrf.mxu0
    %v2127 = vadd.f32 0.0, %v2126
    %2128 = vdwg.mxu0
    %v2130 = vsel %vm192, %v162, 0
    %2132 = vmatpush.xpose.msra.mxu0 0.0
    %2133 = vmatpush.xpose.msra.mxu0 0.0
    %2134 = vmatpush.xpose.msra.mxu0 0.0
    %2135 = vmatpush.xpose.msra.mxu0 0.0
    %2136 = vmatpush.xpose.msra.mxu0 0.0
    %2137 = vmatpush.xpose.msra.mxu0 0.0
    %2138 = vmatpush.xpose.msra.mxu0 0.0
    %2139 = vmatpush.xpose.msra.mxu0 0.0
    %2140 = vmatpush.xpose.msra.mxu0 0.0
    %2141 = vmatpush.xpose.msra.mxu0 0.0
    %2142 = vmatpush.xpose.msra.mxu0 0.0
    %2143 = vmatpush.xpose.msra.mxu0 0.0
    %2144 = vmatpush.xpose.msra.mxu0 0.0
    %2145 = vmatpush.xpose.msra.mxu0 0.0
    %2146 = vmatpush.xpose.msra.mxu0 0.0
    %2147 = vmatpush.xpose.msra.mxu0 %v2130
    %2148 = vmatmul.f32.gmra.mxu0 %v1894
    %v2149 = vpop.f32.mrf.mxu0
    %v2150 = vadd.f32 0.0, %v2149
    %2151 = vdwg.mxu0
    %v2153 = vsel %vm192, %v163, 0
    %2155 = vmatpush.xpose.msra.mxu0 0.0
    %2156 = vmatpush.xpose.msra.mxu0 0.0
    %2157 = vmatpush.xpose.msra.mxu0 0.0
    %2158 = vmatpush.xpose.msra.mxu0 0.0
    %2159 = vmatpush.xpose.msra.mxu0 0.0
    %2160 = vmatpush.xpose.msra.mxu0 0.0
    %2161 = vmatpush.xpose.msra.mxu0 0.0
    %2162 = vmatpush.xpose.msra.mxu0 0.0
    %2163 = vmatpush.xpose.msra.mxu0 0.0
    %2164 = vmatpush.xpose.msra.mxu0 0.0
    %2165 = vmatpush.xpose.msra.mxu0 0.0
    %2166 = vmatpush.xpose.msra.mxu0 0.0
    %2167 = vmatpush.xpose.msra.mxu0 0.0
    %2168 = vmatpush.xpose.msra.mxu0 0.0
    %2169 = vmatpush.xpose.msra.mxu0 0.0
    %2170 = vmatpush.xpose.msra.mxu0 %v2153
    %2171 = vmatmul.f32.gmra.mxu0 %v1920
    %v2172 = vpop.f32.mrf.mxu0
    %v2173 = vadd.f32 0.0, %v2172
    %2174 = vdwg.mxu0
    %v2176 = vsel %vm192, %v164, 0
    %2178 = vmatpush.xpose.msra.mxu0 0.0
    %2179 = vmatpush.xpose.msra.mxu0 0.0
    %2180 = vmatpush.xpose.msra.mxu0 0.0
    %2181 = vmatpush.xpose.msra.mxu0 0.0
    %2182 = vmatpush.xpose.msra.mxu0 0.0
    %2183 = vmatpush.xpose.msra.mxu0 0.0
    %2184 = vmatpush.xpose.msra.mxu0 0.0
    %2185 = vmatpush.xpose.msra.mxu0 0.0
    %2186 = vmatpush.xpose.msra.mxu0 0.0
    %2187 = vmatpush.xpose.msra.mxu0 0.0
    %2188 = vmatpush.xpose.msra.mxu0 0.0
    %2189 = vmatpush.xpose.msra.mxu0 0.0
    %2190 = vmatpush.xpose.msra.mxu0 0.0
    %2191 = vmatpush.xpose.msra.mxu0 0.0
    %2192 = vmatpush.xpose.msra.mxu0 0.0
    %2193 = vmatpush.xpose.msra.mxu0 %v2176
    %2194 = vmatmul.f32.gmra.mxu0 %v1894
    %v2195 = vpop.f32.mrf.mxu0
    %v2196 = vadd.f32 0.0, %v2195
    %2197 = vdwg.mxu0
    %v2199 = vsel %vm192, %v165, 0
    %2201 = vmatpush.xpose.msra.mxu0 0.0
    %2202 = vmatpush.xpose.msra.mxu0 0.0
    %2203 = vmatpush.xpose.msra.mxu0 0.0
    %2204 = vmatpush.xpose.msra.mxu0 0.0
    %2205 = vmatpush.xpose.msra.mxu0 0.0
    %2206 = vmatpush.xpose.msra.mxu0 0.0
    %2207 = vmatpush.xpose.msra.mxu0 0.0
    %2208 = vmatpush.xpose.msra.mxu0 0.0
    %2209 = vmatpush.xpose.msra.mxu0 0.0
    %2210 = vmatpush.xpose.msra.mxu0 0.0
    %2211 = vmatpush.xpose.msra.mxu0 0.0
    %2212 = vmatpush.xpose.msra.mxu0 0.0
    %2213 = vmatpush.xpose.msra.mxu0 0.0
    %2214 = vmatpush.xpose.msra.mxu0 0.0
    %2215 = vmatpush.xpose.msra.mxu0 0.0
    %2216 = vmatpush.xpose.msra.mxu0 %v2199
    %2217 = vmatmul.f32.gmra.mxu0 %v1920
    %v2218 = vpop.f32.mrf.mxu0
    %v2219 = vadd.f32 0.0, %v2218
    %2220 = vdwg.mxu0
    %v2222 = vsel %vm192, %v166, 0
    %2224 = vmatpush.xpose.msra.mxu0 0.0
    %2225 = vmatpush.xpose.msra.mxu0 0.0
    %2226 = vmatpush.xpose.msra.mxu0 0.0
    %2227 = vmatpush.xpose.msra.mxu0 0.0
    %2228 = vmatpush.xpose.msra.mxu0 0.0
    %2229 = vmatpush.xpose.msra.mxu0 0.0
    %2230 = vmatpush.xpose.msra.mxu0 0.0
    %2231 = vmatpush.xpose.msra.mxu0 0.0
    %2232 = vmatpush.xpose.msra.mxu0 0.0
    %2233 = vmatpush.xpose.msra.mxu0 0.0
    %2234 = vmatpush.xpose.msra.mxu0 0.0
    %2235 = vmatpush.xpose.msra.mxu0 0.0
    %2236 = vmatpush.xpose.msra.mxu0 0.0
    %2237 = vmatpush.xpose.msra.mxu0 0.0
    %2238 = vmatpush.xpose.msra.mxu0 0.0
    %2239 = vmatpush.xpose.msra.mxu0 %v2222
    %2240 = vmatmul.f32.gmra.mxu0 %v1894
    %v2241 = vpop.f32.mrf.mxu0
    %v2242 = vadd.f32 0.0, %v2241
    %2243 = vdwg.mxu0
    %v2245 = vsel %vm192, %v167, 0
    %2247 = vmatpush.xpose.msra.mxu0 0.0
    %2248 = vmatpush.xpose.msra.mxu0 0.0
    %2249 = vmatpush.xpose.msra.mxu0 0.0
    %2250 = vmatpush.xpose.msra.mxu0 0.0
    %2251 = vmatpush.xpose.msra.mxu0 0.0
    %2252 = vmatpush.xpose.msra.mxu0 0.0
    %2253 = vmatpush.xpose.msra.mxu0 0.0
    %2254 = vmatpush.xpose.msra.mxu0 0.0
    %2255 = vmatpush.xpose.msra.mxu0 0.0
    %2256 = vmatpush.xpose.msra.mxu0 0.0
    %2257 = vmatpush.xpose.msra.mxu0 0.0
    %2258 = vmatpush.xpose.msra.mxu0 0.0
    %2259 = vmatpush.xpose.msra.mxu0 0.0
    %2260 = vmatpush.xpose.msra.mxu0 0.0
    %2261 = vmatpush.xpose.msra.mxu0 0.0
    %2262 = vmatpush.xpose.msra.mxu0 %v2245
    %2263 = vmatmul.f32.gmra.mxu0 %v1920
    %v2264 = vpop.f32.mrf.mxu0
    %v2265 = vadd.f32 0.0, %v2264
    %2266 = vdwg.mxu0
    %v2268 = vsel %vm833, %v1727, 0
    %v2271 = vsel %vm833, %v1917, 0
    %2273 = vmatpush.xpose.msra.mxu0 0.0
    %2274 = vmatpush.xpose.msra.mxu0 0.0
    %2275 = vmatpush.xpose.msra.mxu0 0.0
    %2276 = vmatpush.xpose.msra.mxu0 0.0
    %2277 = vmatpush.xpose.msra.mxu0 0.0
    %2278 = vmatpush.xpose.msra.mxu0 0.0
    %2279 = vmatpush.xpose.msra.mxu0 0.0
    %2280 = vmatpush.xpose.msra.mxu0 0.0
    %2281 = vmatpush.xpose.msra.mxu0 0.0
    %2282 = vmatpush.xpose.msra.mxu0 0.0
    %2283 = vmatpush.xpose.msra.mxu0 0.0
    %2284 = vmatpush.xpose.msra.mxu0 0.0
    %2285 = vmatpush.xpose.msra.mxu0 0.0
    %2286 = vmatpush.xpose.msra.mxu0 0.0
    %2287 = vmatpush.xpose.msra.mxu0 0.0
    %2288 = vmatpush.xpose.msra.mxu0 %v2271
    %2289 = vmatmul.f32.gmra.mxu0 %v2268
    %v2290 = vpop.f32.mrf.mxu0
    %v2291 = vadd.f32 0.0, %v2290
    %2292 = vdwg.mxu0
    %v2294 = vsel %vm833, %v1753, 0
    %v2297 = vsel %vm833, %v1943, 0
    %2299 = vmatpush.xpose.msra.mxu0 0.0
    %2300 = vmatpush.xpose.msra.mxu0 0.0
    %2301 = vmatpush.xpose.msra.mxu0 0.0
    %2302 = vmatpush.xpose.msra.mxu0 0.0
    %2303 = vmatpush.xpose.msra.mxu0 0.0
    %2304 = vmatpush.xpose.msra.mxu0 0.0
    %2305 = vmatpush.xpose.msra.mxu0 0.0
    %2306 = vmatpush.xpose.msra.mxu0 0.0
    %2307 = vmatpush.xpose.msra.mxu0 0.0
    %2308 = vmatpush.xpose.msra.mxu0 0.0
    %2309 = vmatpush.xpose.msra.mxu0 0.0
    %2310 = vmatpush.xpose.msra.mxu0 0.0
    %2311 = vmatpush.xpose.msra.mxu0 0.0
    %2312 = vmatpush.xpose.msra.mxu0 0.0
    %2313 = vmatpush.xpose.msra.mxu0 0.0
    %2314 = vmatpush.xpose.msra.mxu0 %v2297
    %2315 = vmatmul.f32.gmra.mxu0 %v2294
    %v2316 = vpop.f32.mrf.mxu0
    %v2317 = vadd.f32 0.0, %v2316
    %2318 = vdwg.mxu0
    %v2320 = vsel %vm833, %v1776, 0
    %v2323 = vsel %vm833, %v1966, 0
    %2325 = vmatpush.xpose.msra.mxu0 0.0
    %2326 = vmatpush.xpose.msra.mxu0 0.0
    %2327 = vmatpush.xpose.msra.mxu0 0.0
    %2328 = vmatpush.xpose.msra.mxu0 0.0
    %2329 = vmatpush.xpose.msra.mxu0 0.0
    %2330 = vmatpush.xpose.msra.mxu0 0.0
    %2331 = vmatpush.xpose.msra.mxu0 0.0
    %2332 = vmatpush.xpose.msra.mxu0 0.0
    %2333 = vmatpush.xpose.msra.mxu0 0.0
    %2334 = vmatpush.xpose.msra.mxu0 0.0
    %2335 = vmatpush.xpose.msra.mxu0 0.0
    %2336 = vmatpush.xpose.msra.mxu0 0.0
    %2337 = vmatpush.xpose.msra.mxu0 0.0
    %2338 = vmatpush.xpose.msra.mxu0 0.0
    %2339 = vmatpush.xpose.msra.mxu0 0.0
    %2340 = vmatpush.xpose.msra.mxu0 %v2323
    %2341 = vmatmul.f32.gmra.mxu0 %v2320
    %v2342 = vpop.f32.mrf.mxu0
    %v2343 = vadd.f32 0.0, %v2342
    %2344 = vdwg.mxu0
    %v2346 = vsel %vm833, %v1799, 0
    %v2349 = vsel %vm833, %v1989, 0
    %2351 = vmatpush.xpose.msra.mxu0 0.0
    %2352 = vmatpush.xpose.msra.mxu0 0.0
    %2353 = vmatpush.xpose.msra.mxu0 0.0
    %2354 = vmatpush.xpose.msra.mxu0 0.0
    %2355 = vmatpush.xpose.msra.mxu0 0.0
    %2356 = vmatpush.xpose.msra.mxu0 0.0
    %2357 = vmatpush.xpose.msra.mxu0 0.0
    %2358 = vmatpush.xpose.msra.mxu0 0.0
    %2359 = vmatpush.xpose.msra.mxu0 0.0
    %2360 = vmatpush.xpose.msra.mxu0 0.0
    %2361 = vmatpush.xpose.msra.mxu0 0.0
    %2362 = vmatpush.xpose.msra.mxu0 0.0
    %2363 = vmatpush.xpose.msra.mxu0 0.0
    %2364 = vmatpush.xpose.msra.mxu0 0.0
    %2365 = vmatpush.xpose.msra.mxu0 0.0
    %2366 = vmatpush.xpose.msra.mxu0 %v2349
    %2367 = vmatmul.f32.gmra.mxu0 %v2346
    %v2368 = vpop.f32.mrf.mxu0
    %v2369 = vadd.f32 0.0, %v2368
    %2370 = vdwg.mxu0
    %v2372 = vsel %vm833, %v1822, 0
    %v2375 = vsel %vm833, %v2012, 0
    %2377 = vmatpush.xpose.msra.mxu0 0.0
    %2378 = vmatpush.xpose.msra.mxu0 0.0
    %2379 = vmatpush.xpose.msra.mxu0 0.0
    %2380 = vmatpush.xpose.msra.mxu0 0.0
    %2381 = vmatpush.xpose.msra.mxu0 0.0
    %2382 = vmatpush.xpose.msra.mxu0 0.0
    %2383 = vmatpush.xpose.msra.mxu0 0.0
    %2384 = vmatpush.xpose.msra.mxu0 0.0
    %2385 = vmatpush.xpose.msra.mxu0 0.0
    %2386 = vmatpush.xpose.msra.mxu0 0.0
    %2387 = vmatpush.xpose.msra.mxu0 0.0
    %2388 = vmatpush.xpose.msra.mxu0 0.0
    %2389 = vmatpush.xpose.msra.mxu0 0.0
    %2390 = vmatpush.xpose.msra.mxu0 0.0
    %2391 = vmatpush.xpose.msra.mxu0 0.0
    %2392 = vmatpush.xpose.msra.mxu0 %v2375
    %2393 = vmatmul.f32.gmra.mxu0 %v2372
    %v2394 = vpop.f32.mrf.mxu0
    %v2395 = vadd.f32 0.0, %v2394
    %2396 = vdwg.mxu0
    %v2398 = vsel %vm833, %v1845, 0
    %v2401 = vsel %vm833, %v2035, 0
    %2403 = vmatpush.xpose.msra.mxu0 0.0
    %2404 = vmatpush.xpose.msra.mxu0 0.0
    %2405 = vmatpush.xpose.msra.mxu0 0.0
    %2406 = vmatpush.xpose.msra.mxu0 0.0
    %2407 = vmatpush.xpose.msra.mxu0 0.0
    %2408 = vmatpush.xpose.msra.mxu0 0.0
    %2409 = vmatpush.xpose.msra.mxu0 0.0
    %2410 = vmatpush.xpose.msra.mxu0 0.0
    %2411 = vmatpush.xpose.msra.mxu0 0.0
    %2412 = vmatpush.xpose.msra.mxu0 0.0
    %2413 = vmatpush.xpose.msra.mxu0 0.0
    %2414 = vmatpush.xpose.msra.mxu0 0.0
    %2415 = vmatpush.xpose.msra.mxu0 0.0
    %2416 = vmatpush.xpose.msra.mxu0 0.0
    %2417 = vmatpush.xpose.msra.mxu0 0.0
    %2418 = vmatpush.xpose.msra.mxu0 %v2401
    %2419 = vmatmul.f32.gmra.mxu0 %v2398
    %v2420 = vpop.f32.mrf.mxu0
    %v2421 = vadd.f32 0.0, %v2420
    %2422 = vdwg.mxu0
    %v2424 = vsel %vm833, %v1868, 0
    %v2427 = vsel %vm833, %v2058, 0
    %2429 = vmatpush.xpose.msra.mxu0 0.0
    %2430 = vmatpush.xpose.msra.mxu0 0.0
    %2431 = vmatpush.xpose.msra.mxu0 0.0
    %2432 = vmatpush.xpose.msra.mxu0 0.0
    %2433 = vmatpush.xpose.msra.mxu0 0.0
    %2434 = vmatpush.xpose.msra.mxu0 0.0
    %2435 = vmatpush.xpose.msra.mxu0 0.0
    %2436 = vmatpush.xpose.msra.mxu0 0.0
    %2437 = vmatpush.xpose.msra.mxu0 0.0
    %2438 = vmatpush.xpose.msra.mxu0 0.0
    %2439 = vmatpush.xpose.msra.mxu0 0.0
    %2440 = vmatpush.xpose.msra.mxu0 0.0
    %2441 = vmatpush.xpose.msra.mxu0 0.0
    %2442 = vmatpush.xpose.msra.mxu0 0.0
    %2443 = vmatpush.xpose.msra.mxu0 0.0
    %2444 = vmatpush.xpose.msra.mxu0 %v2427
    %2445 = vmatmul.f32.gmra.mxu0 %v2424
    %v2446 = vpop.f32.mrf.mxu0
    %v2447 = vadd.f32 0.0, %v2446
    %2448 = vdwg.mxu0
    %v2450 = vsel %vm833, %v1891, 0
    %v2453 = vsel %vm833, %v2081, 0
    %2455 = vmatpush.xpose.msra.mxu0 0.0
    %2456 = vmatpush.xpose.msra.mxu0 0.0
    %2457 = vmatpush.xpose.msra.mxu0 0.0
    %2458 = vmatpush.xpose.msra.mxu0 0.0
    %2459 = vmatpush.xpose.msra.mxu0 0.0
    %2460 = vmatpush.xpose.msra.mxu0 0.0
    %2461 = vmatpush.xpose.msra.mxu0 0.0
    %2462 = vmatpush.xpose.msra.mxu0 0.0
    %2463 = vmatpush.xpose.msra.mxu0 0.0
    %2464 = vmatpush.xpose.msra.mxu0 0.0
    %2465 = vmatpush.xpose.msra.mxu0 0.0
    %2466 = vmatpush.xpose.msra.mxu0 0.0
    %2467 = vmatpush.xpose.msra.mxu0 0.0
    %2468 = vmatpush.xpose.msra.mxu0 0.0
    %2469 = vmatpush.xpose.msra.mxu0 0.0
    %2470 = vmatpush.xpose.msra.mxu0 %v2453
    %2471 = vmatmul.f32.gmra.mxu0 %v2450
    %v2472 = vpop.f32.mrf.mxu0
    %v2473 = vadd.f32 0.0, %v2472
    %2474 = vdwg.mxu0
    %v2475 = vmul.f32 %v2291, 0.35355338
    %v2476 = vmul.f32 %v2317, 0.35355338
    %v2477 = vmul.f32 %v2343, 0.35355338
    %v2478 = vmul.f32 %v2369, 0.35355338
    %v2479 = vmul.f32 %v2395, 0.35355338
    %v2480 = vmul.f32 %v2421, 0.35355338
    %v2481 = vmul.f32 %v2447, 0.35355338
    %v2482 = vmul.f32 %v2473, 0.35355338
    %v2483 = vsel %vm833, %v2475, -inf
    %2484 = vmax.xlane.f32.xlu0 %v2483
    %v2485 = vpop.xlane.xlu0 %2484
    %v2486 = vsel %vm833, %v2476, -inf
    %2487 = vmax.xlane.f32.xlu0 %v2486
    %v2488 = vpop.xlane.xlu0 %2487
    %v2489 = vsel %vm833, %v2477, -inf
    %2490 = vmax.xlane.f32.xlu0 %v2489
    %v2491 = vpop.xlane.xlu0 %2490
    %v2492 = vsel %vm833, %v2478, -inf
    %2493 = vmax.xlane.f32.xlu0 %v2492
    %v2494 = vpop.xlane.xlu0 %2493
    %v2495 = vsel %vm833, %v2479, -inf
    %2496 = vmax.xlane.f32.xlu0 %v2495
    %v2497 = vpop.xlane.xlu0 %2496
    %v2498 = vsel %vm833, %v2480, -inf
    %2499 = vmax.xlane.f32.xlu0 %v2498
    %v2500 = vpop.xlane.xlu0 %2499
    %v2501 = vsel %vm833, %v2481, -inf
    %2502 = vmax.xlane.f32.xlu0 %v2501
    %v2503 = vpop.xlane.xlu0 %2502
    %v2504 = vsel %vm833, %v2482, -inf
    %2505 = vmax.xlane.f32.xlu0 %v2504
    %v2506 = vpop.xlane.xlu0 %2505
    %v2507 = vsub.f32 %v2475, %v2485
    %v2508 = vsub.f32 %v2476, %v2488
    %v2509 = vsub.f32 %v2477, %v2491
    %v2510 = vsub.f32 %v2478, %v2494
    %v2511 = vsub.f32 %v2479, %v2497
    %v2512 = vsub.f32 %v2480, %v2500
    %v2513 = vsub.f32 %v2481, %v2503
    %v2514 = vsub.f32 %v2482, %v2506
    %v2515 = vmul.f32 %v2507, 1.442695
    %v2516 = vpow.pop %v2515
    %v2517 = vmul.f32 %v2508, 1.442695
    %v2518 = vpow.pop %v2517
    %v2519 = vmul.f32 %v2509, 1.442695
    %v2520 = vpow.pop %v2519
    %v2521 = vmul.f32 %v2510, 1.442695
    %v2522 = vpow.pop %v2521
    %v2523 = vmul.f32 %v2511, 1.442695
    %v2524 = vpow.pop %v2523
    %v2525 = vmul.f32 %v2512, 1.442695
    %v2526 = vpow.pop %v2525
    %v2527 = vmul.f32 %v2513, 1.442695
    %v2528 = vpow.pop %v2527
    %v2529 = vmul.f32 %v2514, 1.442695
    %v2530 = vpow.pop %v2529
    %v2531 = vsel %vm833, %v2516, 0.0
    %2532 = vadd.xlane.f32.xlu0 %v2531
    %v2533 = vpop.xlane.xlu0 %2532
    %v2534 = vsel %vm833, %v2518, 0.0
    %2535 = vadd.xlane.f32.xlu0 %v2534
    %v2536 = vpop.xlane.xlu0 %2535
    %v2537 = vsel %vm833, %v2520, 0.0
    %2538 = vadd.xlane.f32.xlu0 %v2537
    %v2539 = vpop.xlane.xlu0 %2538
    %v2540 = vsel %vm833, %v2522, 0.0
    %2541 = vadd.xlane.f32.xlu0 %v2540
    %v2542 = vpop.xlane.xlu0 %2541
    %v2543 = vsel %vm833, %v2524, 0.0
    %2544 = vadd.xlane.f32.xlu0 %v2543
    %v2545 = vpop.xlane.xlu0 %2544
    %v2546 = vsel %vm833, %v2526, 0.0
    %2547 = vadd.xlane.f32.xlu0 %v2546
    %v2548 = vpop.xlane.xlu0 %2547
    %v2549 = vsel %vm833, %v2528, 0.0
    %2550 = vadd.xlane.f32.xlu0 %v2549
    %v2551 = vpop.xlane.xlu0 %2550
    %v2552 = vsel %vm833, %v2530, 0.0
    %2553 = vadd.xlane.f32.xlu0 %v2552
    %v2554 = vpop.xlane.xlu0 %2553
    %v2555 = vrcp.pop %v2533
    %v2556 = vmul.f32 %v2533, %v2555
    %v2557 = vsub.f32 1.0, %v2556
    %v2558 = vmul.f32 %v2555, %v2557
    %v2559 = vadd.f32 %v2555, %v2558
    %vm2560 = vweird.f32 %v2533
    %vm2561 = vweird.f32 %v2555
    %vm2562 = vmor %vm2560, %vm2561
    %v2563 = vsel %vm2562, %v2555, %v2559
    %v2564 = vand.u32 2147483647, %v2533
    %vm2565 = vcmp.eq.f32.partialorder %v2564, 8.507059e+37
    %v2566 = vand.u32 %v2533, 2147483648
    %v2567 = vor.u32 1.1754944e-38, %v2566
    %v2568 = vsel %vm2565, %v2567, %v2563
    %v2569 = vrcp.pop %v2536
    %v2570 = vmul.f32 %v2536, %v2569
    %v2571 = vsub.f32 1.0, %v2570
    %v2572 = vmul.f32 %v2569, %v2571
    %v2573 = vadd.f32 %v2569, %v2572
    %vm2574 = vweird.f32 %v2536
    %vm2575 = vweird.f32 %v2569
    %vm2576 = vmor %vm2574, %vm2575
    %v2577 = vsel %vm2576, %v2569, %v2573
    %v2578 = vand.u32 2147483647, %v2536
    %vm2579 = vcmp.eq.f32.partialorder %v2578, 8.507059e+37
    %v2580 = vand.u32 %v2536, 2147483648
    %v2581 = vor.u32 1.1754944e-38, %v2580
    %v2582 = vsel %vm2579, %v2581, %v2577
    %v2583 = vrcp.pop %v2539
    %v2584 = vmul.f32 %v2539, %v2583
    %v2585 = vsub.f32 1.0, %v2584
    %v2586 = vmul.f32 %v2583, %v2585
    %v2587 = vadd.f32 %v2583, %v2586
    %vm2588 = vweird.f32 %v2539
    %vm2589 = vweird.f32 %v2583
    %vm2590 = vmor %vm2588, %vm2589
    %v2591 = vsel %vm2590, %v2583, %v2587
    %v2592 = vand.u32 2147483647, %v2539
    %vm2593 = vcmp.eq.f32.partialorder %v2592, 8.507059e+37
    %v2594 = vand.u32 %v2539, 2147483648
    %v2595 = vor.u32 1.1754944e-38, %v2594
    %v2596 = vsel %vm2593, %v2595, %v2591
    %v2597 = vrcp.pop %v2542
    %v2598 = vmul.f32 %v2542, %v2597
    %v2599 = vsub.f32 1.0, %v2598
    %v2600 = vmul.f32 %v2597, %v2599
    %v2601 = vadd.f32 %v2597, %v2600
    %vm2602 = vweird.f32 %v2542
    %vm2603 = vweird.f32 %v2597
    %vm2604 = vmor %vm2602, %vm2603
    %v2605 = vsel %vm2604, %v2597, %v2601
    %v2606 = vand.u32 2147483647, %v2542
    %vm2607 = vcmp.eq.f32.partialorder %v2606, 8.507059e+37
    %v2608 = vand.u32 %v2542, 2147483648
    %v2609 = vor.u32 1.1754944e-38, %v2608
    %v2610 = vsel %vm2607, %v2609, %v2605
    %v2611 = vrcp.pop %v2545
    %v2612 = vmul.f32 %v2545, %v2611
    %v2613 = vsub.f32 1.0, %v2612
    %v2614 = vmul.f32 %v2611, %v2613
    %v2615 = vadd.f32 %v2611, %v2614
    %vm2616 = vweird.f32 %v2545
    %vm2617 = vweird.f32 %v2611
    %vm2618 = vmor %vm2616, %vm2617
    %v2619 = vsel %vm2618, %v2611, %v2615
    %v2620 = vand.u32 2147483647, %v2545
    %vm2621 = vcmp.eq.f32.partialorder %v2620, 8.507059e+37
    %v2622 = vand.u32 %v2545, 2147483648
    %v2623 = vor.u32 1.1754944e-38, %v2622
    %v2624 = vsel %vm2621, %v2623, %v2619
    %v2625 = vrcp.pop %v2548
    %v2626 = vmul.f32 %v2548, %v2625
    %v2627 = vsub.f32 1.0, %v2626
    %v2628 = vmul.f32 %v2625, %v2627
    %v2629 = vadd.f32 %v2625, %v2628
    %vm2630 = vweird.f32 %v2548
    %vm2631 = vweird.f32 %v2625
    %vm2632 = vmor %vm2630, %vm2631
    %v2633 = vsel %vm2632, %v2625, %v2629
    %v2634 = vand.u32 2147483647, %v2548
    %vm2635 = vcmp.eq.f32.partialorder %v2634, 8.507059e+37
    %v2636 = vand.u32 %v2548, 2147483648
    %v2637 = vor.u32 1.1754944e-38, %v2636
    %v2638 = vsel %vm2635, %v2637, %v2633
    %v2639 = vrcp.pop %v2551
    %v2640 = vmul.f32 %v2551, %v2639
    %v2641 = vsub.f32 1.0, %v2640
    %v2642 = vmul.f32 %v2639, %v2641
    %v2643 = vadd.f32 %v2639, %v2642
    %vm2644 = vweird.f32 %v2551
    %vm2645 = vweird.f32 %v2639
    %vm2646 = vmor %vm2644, %vm2645
    %v2647 = vsel %vm2646, %v2639, %v2643
    %v2648 = vand.u32 2147483647, %v2551
    %vm2649 = vcmp.eq.f32.partialorder %v2648, 8.507059e+37
    %v2650 = vand.u32 %v2551, 2147483648
    %v2651 = vor.u32 1.1754944e-38, %v2650
    %v2652 = vsel %vm2649, %v2651, %v2647
    %v2653 = vrcp.pop %v2554
    %v2654 = vmul.f32 %v2554, %v2653
    %v2655 = vsub.f32 1.0, %v2654
    %v2656 = vmul.f32 %v2653, %v2655
    %v2657 = vadd.f32 %v2653, %v2656
    %vm2658 = vweird.f32 %v2554
    %vm2659 = vweird.f32 %v2653
    %vm2660 = vmor %vm2658, %vm2659
    %v2661 = vsel %vm2660, %v2653, %v2657
    %v2662 = vand.u32 2147483647, %v2554
    %vm2663 = vcmp.eq.f32.partialorder %v2662, 8.507059e+37
    %v2664 = vand.u32 %v2554, 2147483648
    %v2665 = vor.u32 1.1754944e-38, %v2664
    %v2666 = vsel %vm2663, %v2665, %v2661
    %v2667 = vmul.f32 %v2516, %v2568
    %v2668 = vmul.f32 %v2518, %v2582
    %v2669 = vmul.f32 %v2520, %v2596
    %v2670 = vmul.f32 %v2522, %v2610
    %v2671 = vmul.f32 %v2524, %v2624
    %v2672 = vmul.f32 %v2526, %v2638
    %v2673 = vmul.f32 %v2528, %v2652
    %v2674 = vmul.f32 %v2530, %v2666
    %v2676 = vsel %vm833, %v2667, 0
    %2678 = vmatpush.msra.mxu0 0.0
    %2679 = vmatpush.msra.mxu0 0.0
    %2680 = vmatpush.msra.mxu0 0.0
    %2681 = vmatpush.msra.mxu0 0.0
    %2682 = vmatpush.msra.mxu0 0.0
    %2683 = vmatpush.msra.mxu0 0.0
    %2684 = vmatpush.msra.mxu0 0.0
    %2685 = vmatpush.msra.mxu0 0.0
    %2686 = vmatpush.msra.mxu0 0.0
    %2687 = vmatpush.msra.mxu0 0.0
    %2688 = vmatpush.msra.mxu0 0.0
    %2689 = vmatpush.msra.mxu0 0.0
    %2690 = vmatpush.msra.mxu0 0.0
    %2691 = vmatpush.msra.mxu0 0.0
    %2692 = vmatpush.msra.mxu0 0.0
    %2693 = vmatpush.msra.mxu0 %v2104
    %2694 = vmatmul.f32.gmra.mxu0 %v2676
    %v2695 = vpop.f32.mrf.mxu0
    %v2696 = vadd.f32 0.0, %v2695
    %2697 = vdwg.mxu0
    %v2699 = vsel %vm833, %v2668, 0
    %2701 = vmatpush.msra.mxu0 0.0
    %2702 = vmatpush.msra.mxu0 0.0
    %2703 = vmatpush.msra.mxu0 0.0
    %2704 = vmatpush.msra.mxu0 0.0
    %2705 = vmatpush.msra.mxu0 0.0
    %2706 = vmatpush.msra.mxu0 0.0
    %2707 = vmatpush.msra.mxu0 0.0
    %2708 = vmatpush.msra.mxu0 0.0
    %2709 = vmatpush.msra.mxu0 0.0
    %2710 = vmatpush.msra.mxu0 0.0
    %2711 = vmatpush.msra.mxu0 0.0
    %2712 = vmatpush.msra.mxu0 0.0
    %2713 = vmatpush.msra.mxu0 0.0
    %2714 = vmatpush.msra.mxu0 0.0
    %2715 = vmatpush.msra.mxu0 0.0
    %2716 = vmatpush.msra.mxu0 %v2127
    %2717 = vmatmul.f32.gmra.mxu0 %v2699
    %v2718 = vpop.f32.mrf.mxu0
    %v2719 = vadd.f32 0.0, %v2718
    %2720 = vdwg.mxu0
    %v2722 = vsel %vm833, %v2669, 0
    %2724 = vmatpush.msra.mxu0 0.0
    %2725 = vmatpush.msra.mxu0 0.0
    %2726 = vmatpush.msra.mxu0 0.0
    %2727 = vmatpush.msra.mxu0 0.0
    %2728 = vmatpush.msra.mxu0 0.0
    %2729 = vmatpush.msra.mxu0 0.0
    %2730 = vmatpush.msra.mxu0 0.0
    %2731 = vmatpush.msra.mxu0 0.0
    %2732 = vmatpush.msra.mxu0 0.0
    %2733 = vmatpush.msra.mxu0 0.0
    %2734 = vmatpush.msra.mxu0 0.0
    %2735 = vmatpush.msra.mxu0 0.0
    %2736 = vmatpush.msra.mxu0 0.0
    %2737 = vmatpush.msra.mxu0 0.0
    %2738 = vmatpush.msra.mxu0 0.0
    %2739 = vmatpush.msra.mxu0 %v2150
    %2740 = vmatmul.f32.gmra.mxu0 %v2722
    %v2741 = vpop.f32.mrf.mxu0
    %v2742 = vadd.f32 0.0, %v2741
    %2743 = vdwg.mxu0
    %v2745 = vsel %vm833, %v2670, 0
    %2747 = vmatpush.msra.mxu0 0.0
    %2748 = vmatpush.msra.mxu0 0.0
    %2749 = vmatpush.msra.mxu0 0.0
    %2750 = vmatpush.msra.mxu0 0.0
    %2751 = vmatpush.msra.mxu0 0.0
    %2752 = vmatpush.msra.mxu0 0.0
    %2753 = vmatpush.msra.mxu0 0.0
    %2754 = vmatpush.msra.mxu0 0.0
    %2755 = vmatpush.msra.mxu0 0.0
    %2756 = vmatpush.msra.mxu0 0.0
    %2757 = vmatpush.msra.mxu0 0.0
    %2758 = vmatpush.msra.mxu0 0.0
    %2759 = vmatpush.msra.mxu0 0.0
    %2760 = vmatpush.msra.mxu0 0.0
    %2761 = vmatpush.msra.mxu0 0.0
    %2762 = vmatpush.msra.mxu0 %v2173
    %2763 = vmatmul.f32.gmra.mxu0 %v2745
    %v2764 = vpop.f32.mrf.mxu0
    %v2765 = vadd.f32 0.0, %v2764
    %2766 = vdwg.mxu0
    %v2768 = vsel %vm833, %v2671, 0
    %2770 = vmatpush.msra.mxu0 0.0
    %2771 = vmatpush.msra.mxu0 0.0
    %2772 = vmatpush.msra.mxu0 0.0
    %2773 = vmatpush.msra.mxu0 0.0
    %2774 = vmatpush.msra.mxu0 0.0
    %2775 = vmatpush.msra.mxu0 0.0
    %2776 = vmatpush.msra.mxu0 0.0
    %2777 = vmatpush.msra.mxu0 0.0
    %2778 = vmatpush.msra.mxu0 0.0
    %2779 = vmatpush.msra.mxu0 0.0
    %2780 = vmatpush.msra.mxu0 0.0
    %2781 = vmatpush.msra.mxu0 0.0
    %2782 = vmatpush.msra.mxu0 0.0
    %2783 = vmatpush.msra.mxu0 0.0
    %2784 = vmatpush.msra.mxu0 0.0
    %2785 = vmatpush.msra.mxu0 %v2196
    %2786 = vmatmul.f32.gmra.mxu0 %v2768
    %v2787 = vpop.f32.mrf.mxu0
    %v2788 = vadd.f32 0.0, %v2787
    %2789 = vdwg.mxu0
    %v2791 = vsel %vm833, %v2672, 0
    %2793 = vmatpush.msra.mxu0 0.0
    %2794 = vmatpush.msra.mxu0 0.0
    %2795 = vmatpush.msra.mxu0 0.0
    %2796 = vmatpush.msra.mxu0 0.0
    %2797 = vmatpush.msra.mxu0 0.0
    %2798 = vmatpush.msra.mxu0 0.0
    %2799 = vmatpush.msra.mxu0 0.0
    %2800 = vmatpush.msra.mxu0 0.0
    %2801 = vmatpush.msra.mxu0 0.0
    %2802 = vmatpush.msra.mxu0 0.0
    %2803 = vmatpush.msra.mxu0 0.0
    %2804 = vmatpush.msra.mxu0 0.0
    %2805 = vmatpush.msra.mxu0 0.0
    %2806 = vmatpush.msra.mxu0 0.0
    %2807 = vmatpush.msra.mxu0 0.0
    %2808 = vmatpush.msra.mxu0 %v2219
    %2809 = vmatmul.f32.gmra.mxu0 %v2791
    %v2810 = vpop.f32.mrf.mxu0
    %v2811 = vadd.f32 0.0, %v2810
    %2812 = vdwg.mxu0
    %v2814 = vsel %vm833, %v2673, 0
    %2816 = vmatpush.msra.mxu0 0.0
    %2817 = vmatpush.msra.mxu0 0.0
    %2818 = vmatpush.msra.mxu0 0.0
    %2819 = vmatpush.msra.mxu0 0.0
    %2820 = vmatpush.msra.mxu0 0.0
    %2821 = vmatpush.msra.mxu0 0.0
    %2822 = vmatpush.msra.mxu0 0.0
    %2823 = vmatpush.msra.mxu0 0.0
    %2824 = vmatpush.msra.mxu0 0.0
    %2825 = vmatpush.msra.mxu0 0.0
    %2826 = vmatpush.msra.mxu0 0.0
    %2827 = vmatpush.msra.mxu0 0.0
    %2828 = vmatpush.msra.mxu0 0.0
    %2829 = vmatpush.msra.mxu0 0.0
    %2830 = vmatpush.msra.mxu0 0.0
    %2831 = vmatpush.msra.mxu0 %v2242
    %2832 = vmatmul.f32.gmra.mxu0 %v2814
    %v2833 = vpop.f32.mrf.mxu0
    %v2834 = vadd.f32 0.0, %v2833
    %2835 = vdwg.mxu0
    %v2837 = vsel %vm833, %v2674, 0
    %2839 = vmatpush.msra.mxu0 0.0
    %2840 = vmatpush.msra.mxu0 0.0
    %2841 = vmatpush.msra.mxu0 0.0
    %2842 = vmatpush.msra.mxu0 0.0
    %2843 = vmatpush.msra.mxu0 0.0
    %2844 = vmatpush.msra.mxu0 0.0
    %2845 = vmatpush.msra.mxu0 0.0
    %2846 = vmatpush.msra.mxu0 0.0
    %2847 = vmatpush.msra.mxu0 0.0
    %2848 = vmatpush.msra.mxu0 0.0
    %2849 = vmatpush.msra.mxu0 0.0
    %2850 = vmatpush.msra.mxu0 0.0
    %2851 = vmatpush.msra.mxu0 0.0
    %2852 = vmatpush.msra.mxu0 0.0
    %2853 = vmatpush.msra.mxu0 0.0
    %2854 = vmatpush.msra.mxu0 %v2265
    %2855 = vmatmul.f32.gmra.mxu0 %v2837
    %v2856 = vpop.f32.mrf.mxu0
    %v2857 = vadd.f32 0.0, %v2856
    %2858 = vdwg.mxu0
    %v2860 = vsel %vm833, %v2696, 0
    %2862 = vmatpush.msra.mxu0 0.0
    %2863 = vmatpush.msra.mxu0 0.0
    %2864 = vmatpush.msra.mxu0 0.0
    %2865 = vmatpush.msra.mxu0 0.0
    %2866 = vmatpush.msra.mxu0 0.0
    %2867 = vmatpush.msra.mxu0 0.0
    %2868 = vmatpush.msra.mxu0 0.0
    %2869 = vmatpush.msra.mxu0 0.0
    %2870 = vmatpush.msra.mxu0 0.0
    %2871 = vmatpush.msra.mxu0 0.0
    %2872 = vmatpush.msra.mxu0 0.0
    %2873 = vmatpush.msra.mxu0 0.0
    %2874 = vmatpush.msra.mxu0 0.0
    %2875 = vmatpush.msra.mxu0 0.0
    %2876 = vmatpush.msra.mxu0 0.0
    %2877 = vmatpush.msra.mxu0 %v168
    %2878 = vmatmul.f32.gmra.mxu0 %v2860
    %v2879 = vpop.f32.mrf.mxu0
    %v2880 = vadd.f32 0.0, %v2879
    %2881 = vdwg.mxu0
    %v2883 = vsel %vm833, %v2719, 0
    %2885 = vmatpush.msra.mxu0 0.0
    %2886 = vmatpush.msra.mxu0 0.0
    %2887 = vmatpush.msra.mxu0 0.0
    %2888 = vmatpush.msra.mxu0 0.0
    %2889 = vmatpush.msra.mxu0 0.0
    %2890 = vmatpush.msra.mxu0 0.0
    %2891 = vmatpush.msra.mxu0 0.0
    %2892 = vmatpush.msra.mxu0 0.0
    %2893 = vmatpush.msra.mxu0 0.0
    %2894 = vmatpush.msra.mxu0 0.0
    %2895 = vmatpush.msra.mxu0 0.0
    %2896 = vmatpush.msra.mxu0 0.0
    %2897 = vmatpush.msra.mxu0 0.0
    %2898 = vmatpush.msra.mxu0 0.0
    %2899 = vmatpush.msra.mxu0 0.0
    %2900 = vmatpush.msra.mxu0 %v169
    %2901 = vmatmul.f32.gmra.mxu0 %v2883
    %v2902 = vpop.f32.mrf.mxu0
    %v2903 = vadd.f32 0.0, %v2902
    %2904 = vdwg.mxu0
    %v2906 = vsel %vm833, %v2742, 0
    %2908 = vmatpush.msra.mxu0 0.0
    %2909 = vmatpush.msra.mxu0 0.0
    %2910 = vmatpush.msra.mxu0 0.0
    %2911 = vmatpush.msra.mxu0 0.0
    %2912 = vmatpush.msra.mxu0 0.0
    %2913 = vmatpush.msra.mxu0 0.0
    %2914 = vmatpush.msra.mxu0 0.0
    %2915 = vmatpush.msra.mxu0 0.0
    %2916 = vmatpush.msra.mxu0 0.0
    %2917 = vmatpush.msra.mxu0 0.0
    %2918 = vmatpush.msra.mxu0 0.0
    %2919 = vmatpush.msra.mxu0 0.0
    %2920 = vmatpush.msra.mxu0 0.0
    %2921 = vmatpush.msra.mxu0 0.0
    %2922 = vmatpush.msra.mxu0 0.0
    %2923 = vmatpush.msra.mxu0 %v170
    %2924 = vmatmul.f32.gmra.mxu0 %v2906
    %v2925 = vpop.f32.mrf.mxu0
    %v2926 = vadd.f32 0.0, %v2925
    %2927 = vdwg.mxu0
    %v2929 = vsel %vm833, %v2765, 0
    %2931 = vmatpush.msra.mxu0 0.0
    %2932 = vmatpush.msra.mxu0 0.0
    %2933 = vmatpush.msra.mxu0 0.0
    %2934 = vmatpush.msra.mxu0 0.0
    %2935 = vmatpush.msra.mxu0 0.0
    %2936 = vmatpush.msra.mxu0 0.0
    %2937 = vmatpush.msra.mxu0 0.0
    %2938 = vmatpush.msra.mxu0 0.0
    %2939 = vmatpush.msra.mxu0 0.0
    %2940 = vmatpush.msra.mxu0 0.0
    %2941 = vmatpush.msra.mxu0 0.0
    %2942 = vmatpush.msra.mxu0 0.0
    %2943 = vmatpush.msra.mxu0 0.0
    %2944 = vmatpush.msra.mxu0 0.0
    %2945 = vmatpush.msra.mxu0 0.0
    %2946 = vmatpush.msra.mxu0 %v171
    %2947 = vmatmul.f32.gmra.mxu0 %v2929
    %v2948 = vpop.f32.mrf.mxu0
    %v2949 = vadd.f32 0.0, %v2948
    %2950 = vdwg.mxu0
    %v2952 = vsel %vm833, %v2788, 0
    %2954 = vmatpush.msra.mxu0 0.0
    %2955 = vmatpush.msra.mxu0 0.0
    %2956 = vmatpush.msra.mxu0 0.0
    %2957 = vmatpush.msra.mxu0 0.0
    %2958 = vmatpush.msra.mxu0 0.0
    %2959 = vmatpush.msra.mxu0 0.0
    %2960 = vmatpush.msra.mxu0 0.0
    %2961 = vmatpush.msra.mxu0 0.0
    %2962 = vmatpush.msra.mxu0 0.0
    %2963 = vmatpush.msra.mxu0 0.0
    %2964 = vmatpush.msra.mxu0 0.0
    %2965 = vmatpush.msra.mxu0 0.0
    %2966 = vmatpush.msra.mxu0 0.0
    %2967 = vmatpush.msra.mxu0 0.0
    %2968 = vmatpush.msra.mxu0 0.0
    %2969 = vmatpush.msra.mxu0 %v172
    %2970 = vmatmul.f32.gmra.mxu0 %v2952
    %v2971 = vpop.f32.mrf.mxu0
    %v2972 = vadd.f32 0.0, %v2971
    %2973 = vdwg.mxu0
    %v2975 = vsel %vm833, %v2811, 0
    %2977 = vmatpush.msra.mxu0 0.0
    %2978 = vmatpush.msra.mxu0 0.0
    %2979 = vmatpush.msra.mxu0 0.0
    %2980 = vmatpush.msra.mxu0 0.0
    %2981 = vmatpush.msra.mxu0 0.0
    %2982 = vmatpush.msra.mxu0 0.0
    %2983 = vmatpush.msra.mxu0 0.0
    %2984 = vmatpush.msra.mxu0 0.0
    %2985 = vmatpush.msra.mxu0 0.0
    %2986 = vmatpush.msra.mxu0 0.0
    %2987 = vmatpush.msra.mxu0 0.0
    %2988 = vmatpush.msra.mxu0 0.0
    %2989 = vmatpush.msra.mxu0 0.0
    %2990 = vmatpush.msra.mxu0 0.0
    %2991 = vmatpush.msra.mxu0 0.0
    %2992 = vmatpush.msra.mxu0 %v173
    %2993 = vmatmul.f32.gmra.mxu0 %v2975
    %v2994 = vpop.f32.mrf.mxu0
    %v2995 = vadd.f32 0.0, %v2994
    %2996 = vdwg.mxu0
    %v2998 = vsel %vm833, %v2834, 0
    %3000 = vmatpush.msra.mxu0 0.0
    %3001 = vmatpush.msra.mxu0 0.0
    %3002 = vmatpush.msra.mxu0 0.0
    %3003 = vmatpush.msra.mxu0 0.0
    %3004 = vmatpush.msra.mxu0 0.0
    %3005 = vmatpush.msra.mxu0 0.0
    %3006 = vmatpush.msra.mxu0 0.0
    %3007 = vmatpush.msra.mxu0 0.0
    %3008 = vmatpush.msra.mxu0 0.0
    %3009 = vmatpush.msra.mxu0 0.0
    %3010 = vmatpush.msra.mxu0 0.0
    %3011 = vmatpush.msra.mxu0 0.0
    %3012 = vmatpush.msra.mxu0 0.0
    %3013 = vmatpush.msra.mxu0 0.0
    %3014 = vmatpush.msra.mxu0 0.0
    %3015 = vmatpush.msra.mxu0 %v174
    %3016 = vmatmul.f32.gmra.mxu0 %v2998
    %v3017 = vpop.f32.mrf.mxu0
    %v3018 = vadd.f32 0.0, %v3017
    %3019 = vdwg.mxu0
    %v3021 = vsel %vm833, %v2857, 0
    %3023 = vmatpush.msra.mxu0 0.0
    %3024 = vmatpush.msra.mxu0 0.0
    %3025 = vmatpush.msra.mxu0 0.0
    %3026 = vmatpush.msra.mxu0 0.0
    %3027 = vmatpush.msra.mxu0 0.0
    %3028 = vmatpush.msra.mxu0 0.0
    %3029 = vmatpush.msra.mxu0 0.0
    %3030 = vmatpush.msra.mxu0 0.0
    %3031 = vmatpush.msra.mxu0 0.0
    %3032 = vmatpush.msra.mxu0 0.0
    %3033 = vmatpush.msra.mxu0 0.0
    %3034 = vmatpush.msra.mxu0 0.0
    %3035 = vmatpush.msra.mxu0 0.0
    %3036 = vmatpush.msra.mxu0 0.0
    %3037 = vmatpush.msra.mxu0 0.0
    %3038 = vmatpush.msra.mxu0 %v175
    %3039 = vmatmul.f32.gmra.mxu0 %v3021
    %v3040 = vpop.f32.mrf.mxu0
    %v3041 = vadd.f32 0.0, %v3040
    %3042 = vdwg.mxu0
    %v3043 = vadd.f32 %v2880, %v2926
    %v3044 = vadd.f32 %v2903, %v2949
    %v3045 = vadd.f32 %v3043, %v2972
    %v3046 = vadd.f32 %v3044, %v2995
    %v3047 = vadd.f32 %v3045, %v3018
    %v3048 = vadd.f32 %v3046, %v3041
    %v3049 = vadd.f32 %v1619, %v3047
    %v3050 = vadd.f32 %v1620, %v3048
    %v3051 = vperm.slane %v110, 7
    %v3052 = vadd.f32 %v3049, %v3051
    %v3053 = vadd.f32 %v3050, %v3051
    %v3054 = vsel %vm192, %v3052, 0.0
    %3055 = vadd.xlane.f32.xlu0 %v3054
    %v3056 = vpop.xlane.xlu0 %3055
    %v3057 = vsel %vm192, %v3053, 0.0
    %3058 = vadd.xlane.f32.xlu0 %v3057
    %v3059 = vpop.xlane.xlu0 %3058
    %v3060 = vmul.f32 %v3056, 0.03125
    %v3061 = vmul.f32 %v3059, 0.03125
    %v3062 = vsub.f32 %v3052, %v3060
    %v3063 = vsub.f32 %v3053, %v3061
    %v3064 = vmul.f32 %v3062, %v3062
    %v3065 = vmul.f32 %v3063, %v3063
    %v3066 = vsel %vm192, %v3064, 0.0
    %3067 = vadd.xlane.f32.xlu0 %v3066
    %v3068 = vpop.xlane.xlu0 %3067
    %v3069 = vsel %vm192, %v3065, 0.0
    %3070 = vadd.xlane.f32.xlu0 %v3069
    %v3071 = vpop.xlane.xlu0 %3070
    %v3072 = vmul.f32 %v3068, 0.032258064
    %v3073 = vmul.f32 %v3071, 0.032258064
    %v3074 = vrsqrt.pop %v3072
    %v3075 = vmul.f32 %v3074, %v3072
    %v3076 = vmul.f32 %v3075, %v3074
    %v3077 = vmul.f32 0.5, %v3076
    %v3078 = vsub.f32 1.5, %v3077
    %v3079 = vmul.f32 %v3074, %v3078
    %v3080 = vmul.f32 %v3072, %v3079
    %vm3081 = vcmp.eq.f32.partialorder %v3072, inf
    %v3082 = vsel %vm3081, %v3072, %v3080
    %vm3083 = vcmp.eq.f32.partialorder %v3072, 0.0
    %v3084 = vand.u32 %v3072, 2147483648
    %v3085 = vsel %vm3083, %v3084, %v3082
    %v3086 = vrsqrt.pop %v3073
    %v3087 = vmul.f32 %v3086, %v3073
    %v3088 = vmul.f32 %v3087, %v3086
    %v3089 = vmul.f32 0.5, %v3088
    %v3090 = vsub.f32 1.5, %v3089
    %v3091 = vmul.f32 %v3086, %v3090
    %v3092 = vmul.f32 %v3073, %v3091
    %vm3093 = vcmp.eq.f32.partialorder %v3073, inf
    %v3094 = vsel %vm3093, %v3073, %v3092
    %vm3095 = vcmp.eq.f32.partialorder %v3073, 0.0
    %v3096 = vand.u32 %v3073, 2147483648
    %v3097 = vsel %vm3095, %v3096, %v3094
    %v3098 = vadd.f32 %v3085, 1e-06
    %v3099 = vadd.f32 %v3097, 1e-06
    %v3100 = vrcp.pop %v3098
    %v3101 = vmul.f32 %v3098, %v3100
    %v3102 = vsub.f32 1.0, %v3101
    %v3103 = vmul.f32 %v3100, %v3102
    %v3104 = vadd.f32 %v3100, %v3103
    %vm3105 = vweird.f32 %v3098
    %vm3106 = vweird.f32 %v3100
    %vm3107 = vmor %vm3105, %vm3106
    %v3108 = vsel %vm3107, %v3100, %v3104
    %v3109 = vand.u32 2147483647, %v3098
    %vm3110 = vcmp.eq.f32.partialorder %v3109, 8.507059e+37
    %v3111 = vand.u32 %v3098, 2147483648
    %v3112 = vor.u32 1.1754944e-38, %v3111
    %v3113 = vsel %vm3110, %v3112, %v3108
    %v3114 = vrcp.pop %v3099
    %v3115 = vmul.f32 %v3099, %v3114
    %v3116 = vsub.f32 1.0, %v3115
    %v3117 = vmul.f32 %v3114, %v3116
    %v3118 = vadd.f32 %v3114, %v3117
    %vm3119 = vweird.f32 %v3099
    %vm3120 = vweird.f32 %v3114
    %vm3121 = vmor %vm3119, %vm3120
    %v3122 = vsel %vm3121, %v3114, %v3118
    %v3123 = vand.u32 2147483647, %v3099
    %vm3124 = vcmp.eq.f32.partialorder %v3123, 8.507059e+37
    %v3125 = vand.u32 %v3099, 2147483648
    %v3126 = vor.u32 1.1754944e-38, %v3125
    %v3127 = vsel %vm3124, %v3126, %v3122
    %v3128 = vperm.slane %v110, 4
    %v3129 = vmul.f32 %v3128, %v3062
    %v3130 = vmul.f32 %v3128, %v3063
    %v3131 = vmul.f32 %v3129, %v3113
    %v3132 = vmul.f32 %v3130, %v3127
    %v3133 = vperm.slane %v110, 5
    %v3134 = vadd.f32 %v3131, %v3133
    %v3135 = vadd.f32 %v3132, %v3133
    %v3136 = vld [vmem:[#allocation8] sm:$0xff]
    %v3137 = vld [vmem:[#allocation8 + $0x8] sm:$0xff]
    %v3138 = vld [vmem:[#allocation8 + $0x10] sm:$0xff]
    %v3139 = vld [vmem:[#allocation8 + $0x18] sm:$0xff]
    %v3140 = vld [vmem:[#allocation8 + $0x20] sm:$0xff]
    %v3141 = vld [vmem:[#allocation8 + $0x28] sm:$0xff]
    %v3142 = vld [vmem:[#allocation8 + $0x30] sm:$0xff]
    %v3143 = vld [vmem:[#allocation8 + $0x38] sm:$0xff]
    %v3144 = vld [vmem:[#allocation8 + $0x40] sm:$0xff]
    %v3145 = vld [vmem:[#allocation8 + $0x48] sm:$0xff]
    %v3146 = vld [vmem:[#allocation8 + $0x50] sm:$0xff]
    %v3147 = vld [vmem:[#allocation8 + $0x58] sm:$0xff]
    %v3148 = vld [vmem:[#allocation8 + $0x60] sm:$0xff]
    %v3149 = vld [vmem:[#allocation8 + $0x68] sm:$0xff]
    %v3150 = vld [vmem:[#allocation8 + $0x70] sm:$0xff]
    %v3151 = vld [vmem:[#allocation8 + $0x78] sm:$0xff]
    %v3152 = vld [vmem:[#allocation10] sm:$0xf]
    %v3154 = vperm.slane %v3152, 0
    %v3155 = vperm.slane %v3152, 1
    %v3156 = vperm.slane %v3152, 2
    %v3157 = vperm.slane %v3152, 3
    %v3163 = vsel %vm192, %v3134, 0
    %v3166 = vsel %vm192, %v3135, 0
    %3168 = vmatpush.msra.mxu0 0.0
    %3169 = vmatpush.msra.mxu0 0.0
    %3170 = vmatpush.msra.mxu0 0.0
    %3171 = vmatpush.msra.mxu0 0.0
    %3172 = vmatpush.msra.mxu0 0.0
    %3173 = vmatpush.msra.mxu0 0.0
    %3174 = vmatpush.msra.mxu0 0.0
    %3175 = vmatpush.msra.mxu0 0.0
    %3176 = vmatpush.msra.mxu0 0.0
    %3177 = vmatpush.msra.mxu0 0.0
    %3178 = vmatpush.msra.mxu0 0.0
    %3179 = vmatpush.msra.mxu0 0.0
    %3180 = vmatpush.msra.mxu0 %v3148
    %3181 = vmatpush.msra.mxu0 %v3144
    %3182 = vmatpush.msra.mxu0 %v3140
    %3183 = vmatpush.msra.mxu0 %v3136
    %3184 = vmatmul.f32.gmra.mxu0 %v3163
    %v3185 = vpop.f32.mrf.mxu0
    %v3186 = vadd.f32 %v3154, %v3185
    %3187 = vmatmul.f32.gmra.mxu0 %v3166
    %v3188 = vpop.f32.mrf.mxu0
    %v3189 = vadd.f32 %v3154, %v3188
    %3190 = vdwg.mxu0
    %3191 = vmatpush.msra.mxu0 0.0
    %3192 = vmatpush.msra.mxu0 0.0
    %3193 = vmatpush.msra.mxu0 0.0
    %3194 = vmatpush.msra.mxu0 0.0
    %3195 = vmatpush.msra.mxu0 0.0
    %3196 = vmatpush.msra.mxu0 0.0
    %3197 = vmatpush.msra.mxu0 0.0
    %3198 = vmatpush.msra.mxu0 0.0
    %3199 = vmatpush.msra.mxu0 0.0
    %3200 = vmatpush.msra.mxu0 0.0
    %3201 = vmatpush.msra.mxu0 0.0
    %3202 = vmatpush.msra.mxu0 0.0
    %3203 = vmatpush.msra.mxu0 %v3149
    %3204 = vmatpush.msra.mxu0 %v3145
    %3205 = vmatpush.msra.mxu0 %v3141
    %3206 = vmatpush.msra.mxu0 %v3137
    %3207 = vmatmul.f32.gmra.mxu0 %v3163
    %v3208 = vpop.f32.mrf.mxu0
    %v3209 = vadd.f32 %v3155, %v3208
    %3210 = vmatmul.f32.gmra.mxu0 %v3166
    %v3211 = vpop.f32.mrf.mxu0
    %v3212 = vadd.f32 %v3155, %v3211
    %3213 = vdwg.mxu0
    %3214 = vmatpush.msra.mxu0 0.0
    %3215 = vmatpush.msra.mxu0 0.0
    %3216 = vmatpush.msra.mxu0 0.0
    %3217 = vmatpush.msra.mxu0 0.0
    %3218 = vmatpush.msra.mxu0 0.0
    %3219 = vmatpush.msra.mxu0 0.0
    %3220 = vmatpush.msra.mxu0 0.0
    %3221 = vmatpush.msra.mxu0 0.0
    %3222 = vmatpush.msra.mxu0 0.0
    %3223 = vmatpush.msra.mxu0 0.0
    %3224 = vmatpush.msra.mxu0 0.0
    %3225 = vmatpush.msra.mxu0 0.0
    %3226 = vmatpush.msra.mxu0 %v3150
    %3227 = vmatpush.msra.mxu0 %v3146
    %3228 = vmatpush.msra.mxu0 %v3142
    %3229 = vmatpush.msra.mxu0 %v3138
    %3230 = vmatmul.f32.gmra.mxu0 %v3163
    %v3231 = vpop.f32.mrf.mxu0
    %v3232 = vadd.f32 %v3156, %v3231
    %3233 = vmatmul.f32.gmra.mxu0 %v3166
    %v3234 = vpop.f32.mrf.mxu0
    %v3235 = vadd.f32 %v3156, %v3234
    %3236 = vdwg.mxu0
    %3237 = vmatpush.msra.mxu0 0.0
    %3238 = vmatpush.msra.mxu0 0.0
    %3239 = vmatpush.msra.mxu0 0.0
    %3240 = vmatpush.msra.mxu0 0.0
    %3241 = vmatpush.msra.mxu0 0.0
    %3242 = vmatpush.msra.mxu0 0.0
    %3243 = vmatpush.msra.mxu0 0.0
    %3244 = vmatpush.msra.mxu0 0.0
    %3245 = vmatpush.msra.mxu0 0.0
    %3246 = vmatpush.msra.mxu0 0.0
    %3247 = vmatpush.msra.mxu0 0.0
    %3248 = vmatpush.msra.mxu0 0.0
    %3249 = vmatpush.msra.mxu0 %v3151
    %3250 = vmatpush.msra.mxu0 %v3147
    %3251 = vmatpush.msra.mxu0 %v3143
    %3252 = vmatpush.msra.mxu0 %v3139
    %3253 = vmatmul.f32.gmra.mxu0 %v3163
    %v3254 = vpop.f32.mrf.mxu0
    %v3255 = vadd.f32 %v3157, %v3254
    %3256 = vmatmul.f32.gmra.mxu0 %v3166
    %v3257 = vpop.f32.mrf.mxu0
    %v3258 = vadd.f32 %v3157, %v3257
    %3259 = vdwg.mxu0
    %v3260 = vmax.f32 %v3186, 0.0
    %v3261 = vmax.f32 %v3209, 0.0
    %v3262 = vmax.f32 %v3232, 0.0
    %v3263 = vmax.f32 %v3255, 0.0
    %v3264 = vmax.f32 %v3189, 0.0
    %v3265 = vmax.f32 %v3212, 0.0
    %v3266 = vmax.f32 %v3235, 0.0
    %v3267 = vmax.f32 %v3258, 0.0
    %v3268 = vld [vmem:[%s7] sm:$0xff]
    %v3269 = vld [vmem:[%s7 + $0x8] sm:$0xff]
    %v3270 = vld [vmem:[%s7 + $0x10] sm:$0xff]
    %v3271 = vld [vmem:[%s7 + $0x18] sm:$0xff]
    %v3272 = vld [vmem:[%s7 + $0x20] sm:$0xff]
    %v3273 = vld [vmem:[%s7 + $0x28] sm:$0xff]
    %v3274 = vld [vmem:[%s7 + $0x30] sm:$0xff]
    %v3275 = vld [vmem:[%s7 + $0x38] sm:$0xff]
    %v3276 = vld [vmem:[%s7 + $0x40] sm:$0xff]
    %v3277 = vld [vmem:[%s7 + $0x48] sm:$0xff]
    %v3278 = vld [vmem:[%s7 + $0x50] sm:$0xff]
    %v3279 = vld [vmem:[%s7 + $0x58] sm:$0xff]
    %v3280 = vld [vmem:[%s7 + $0x60] sm:$0xff]
    %v3281 = vld [vmem:[%s7 + $0x68] sm:$0xff]
    %v3282 = vld [vmem:[%s7 + $0x70] sm:$0xff]
    %v3283 = vld [vmem:[%s7 + $0x78] sm:$0xff]
    %v3284 = vld [vmem:[%s7 + $0x80] sm:$0xff]
    %v3285 = vld [vmem:[%s7 + $0x88] sm:$0xff]
    %v3286 = vld [vmem:[%s7 + $0x90] sm:$0xff]
    %v3287 = vld [vmem:[%s7 + $0x98] sm:$0xff]
    %v3288 = vld [vmem:[%s7 + $0xa0] sm:$0xff]
    %v3289 = vld [vmem:[%s7 + $0xa8] sm:$0xff]
    %v3290 = vld [vmem:[%s7 + $0xb0] sm:$0xff]
    %v3291 = vld [vmem:[%s7 + $0xb8] sm:$0xff]
    %v3292 = vld [vmem:[%s7 + $0xc0] sm:$0xff]
    %v3293 = vld [vmem:[%s7 + $0xc8] sm:$0xff]
    %v3294 = vld [vmem:[%s7 + $0xd0] sm:$0xff]
    %v3295 = vld [vmem:[%s7 + $0xd8] sm:$0xff]
    %v3296 = vld [vmem:[%s7 + $0xe0] sm:$0xff]
    %v3297 = vld [vmem:[%s7 + $0xe8] sm:$0xff]
    %v3298 = vld [vmem:[%s7 + $0xf0] sm:$0xff]
    %v3299 = vld [vmem:[%s7 + $0xf8] sm:$0xff]
    %v3300 = vld [vmem:[%s7 + $0x100] sm:$0xff]
    %v3301 = vld [vmem:[%s7 + $0x108] sm:$0xff]
    %v3302 = vld [vmem:[%s7 + $0x110] sm:$0xff]
    %v3303 = vld [vmem:[%s7 + $0x118] sm:$0xff]
    %v3304 = vld [vmem:[%s7 + $0x120] sm:$0xff]
    %v3305 = vld [vmem:[%s7 + $0x128] sm:$0xff]
    %v3306 = vld [vmem:[%s7 + $0x130] sm:$0xff]
    %v3307 = vld [vmem:[%s7 + $0x138] sm:$0xff]
    %v3308 = vld [vmem:[%s7 + $0x140] sm:$0xff]
    %v3309 = vld [vmem:[%s7 + $0x148] sm:$0xff]
    %v3310 = vld [vmem:[%s7 + $0x150] sm:$0xff]
    %v3311 = vld [vmem:[%s7 + $0x158] sm:$0xff]
    %v3312 = vld [vmem:[%s7 + $0x160] sm:$0xff]
    %v3313 = vld [vmem:[%s7 + $0x168] sm:$0xff]
    %v3314 = vld [vmem:[%s7 + $0x170] sm:$0xff]
    %v3315 = vld [vmem:[%s7 + $0x178] sm:$0xff]
    %v3316 = vld [vmem:[%s7 + $0x180] sm:$0xff]
    %v3317 = vld [vmem:[%s7 + $0x188] sm:$0xff]
    %v3318 = vld [vmem:[%s7 + $0x190] sm:$0xff]
    %v3319 = vld [vmem:[%s7 + $0x198] sm:$0xff]
    %v3320 = vld [vmem:[%s7 + $0x1a0] sm:$0xff]
    %v3321 = vld [vmem:[%s7 + $0x1a8] sm:$0xff]
    %v3322 = vld [vmem:[%s7 + $0x1b0] sm:$0xff]
    %v3323 = vld [vmem:[%s7 + $0x1b8] sm:$0xff]
    %v3324 = vld [vmem:[%s7 + $0x1c0] sm:$0xff]
    %v3325 = vld [vmem:[%s7 + $0x1c8] sm:$0xff]
    %v3326 = vld [vmem:[%s7 + $0x1d0] sm:$0xff]
    %v3327 = vld [vmem:[%s7 + $0x1d8] sm:$0xff]
    %v3328 = vld [vmem:[%s7 + $0x1e0] sm:$0xff]
    %v3329 = vld [vmem:[%s7 + $0x1e8] sm:$0xff]
    %v3330 = vld [vmem:[%s7 + $0x1f0] sm:$0xff]
    %v3331 = vld [vmem:[%s7 + $0x1f8] sm:$0xff]
    %3332 = vmatpush.msra.mxu0 %v3283
    %3333 = vmatpush.msra.mxu0 %v3282
    %3334 = vmatpush.msra.mxu0 %v3281
    %3335 = vmatpush.msra.mxu0 %v3280
    %3336 = vmatpush.msra.mxu0 %v3279
    %3337 = vmatpush.msra.mxu0 %v3278
    %3338 = vmatpush.msra.mxu0 %v3277
    %3339 = vmatpush.msra.mxu0 %v3276
    %3340 = vmatpush.msra.mxu0 %v3275
    %3341 = vmatpush.msra.mxu0 %v3274
    %3342 = vmatpush.msra.mxu0 %v3273
    %3343 = vmatpush.msra.mxu0 %v3272
    %3344 = vmatpush.msra.mxu0 %v3271
    %3345 = vmatpush.msra.mxu0 %v3270
    %3346 = vmatpush.msra.mxu0 %v3269
    %3347 = vmatpush.msra.mxu0 %v3268
    %3348 = vmatmul.f32.gmra.mxu0 %v3260
    %v3349 = vpop.f32.mrf.mxu0
    %v3350 = vadd.f32 0.0, %v3349
    %3351 = vmatmul.f32.gmra.mxu0 %v3264
    %v3352 = vpop.f32.mrf.mxu0
    %v3353 = vadd.f32 0.0, %v3352
    %3354 = vdwg.mxu0
    %3355 = vmatpush.msra.mxu0 %v3299
    %3356 = vmatpush.msra.mxu0 %v3298
    %3357 = vmatpush.msra.mxu0 %v3297
    %3358 = vmatpush.msra.mxu0 %v3296
    %3359 = vmatpush.msra.mxu0 %v3295
    %3360 = vmatpush.msra.mxu0 %v3294
    %3361 = vmatpush.msra.mxu0 %v3293
    %3362 = vmatpush.msra.mxu0 %v3292
    %3363 = vmatpush.msra.mxu0 %v3291
    %3364 = vmatpush.msra.mxu0 %v3290
    %3365 = vmatpush.msra.mxu0 %v3289
    %3366 = vmatpush.msra.mxu0 %v3288
    %3367 = vmatpush.msra.mxu0 %v3287
    %3368 = vmatpush.msra.mxu0 %v3286
    %3369 = vmatpush.msra.mxu0 %v3285
    %3370 = vmatpush.msra.mxu0 %v3284
    %3371 = vmatmul.f32.gmra.mxu0 %v3261
    %v3372 = vpop.f32.mrf.mxu0
    %v3373 = vadd.f32 %v3350, %v3372
    %3374 = vmatmul.f32.gmra.mxu0 %v3265
    %v3375 = vpop.f32.mrf.mxu0
    %v3376 = vadd.f32 %v3353, %v3375
    %3377 = vdwg.mxu0
    %3378 = vmatpush.msra.mxu0 %v3315
    %3379 = vmatpush.msra.mxu0 %v3314
    %3380 = vmatpush.msra.mxu0 %v3313
    %3381 = vmatpush.msra.mxu0 %v3312
    %3382 = vmatpush.msra.mxu0 %v3311
    %3383 = vmatpush.msra.mxu0 %v3310
    %3384 = vmatpush.msra.mxu0 %v3309
    %3385 = vmatpush.msra.mxu0 %v3308
    %3386 = vmatpush.msra.mxu0 %v3307
    %3387 = vmatpush.msra.mxu0 %v3306
    %3388 = vmatpush.msra.mxu0 %v3305
    %3389 = vmatpush.msra.mxu0 %v3304
    %3390 = vmatpush.msra.mxu0 %v3303
    %3391 = vmatpush.msra.mxu0 %v3302
    %3392 = vmatpush.msra.mxu0 %v3301
    %3393 = vmatpush.msra.mxu0 %v3300
    %3394 = vmatmul.f32.gmra.mxu0 %v3262
    %v3395 = vpop.f32.mrf.mxu0
    %v3396 = vadd.f32 %v3373, %v3395
    %3397 = vmatmul.f32.gmra.mxu0 %v3266
    %v3398 = vpop.f32.mrf.mxu0
    %v3399 = vadd.f32 %v3376, %v3398
    %3400 = vdwg.mxu0
    %3401 = vmatpush.msra.mxu0 %v3331
    %3402 = vmatpush.msra.mxu0 %v3330
    %3403 = vmatpush.msra.mxu0 %v3329
    %3404 = vmatpush.msra.mxu0 %v3328
    %3405 = vmatpush.msra.mxu0 %v3327
    %3406 = vmatpush.msra.mxu0 %v3326
    %3407 = vmatpush.msra.mxu0 %v3325
    %3408 = vmatpush.msra.mxu0 %v3324
    %3409 = vmatpush.msra.mxu0 %v3323
    %3410 = vmatpush.msra.mxu0 %v3322
    %3411 = vmatpush.msra.mxu0 %v3321
    %3412 = vmatpush.msra.mxu0 %v3320
    %3413 = vmatpush.msra.mxu0 %v3319
    %3414 = vmatpush.msra.mxu0 %v3318
    %3415 = vmatpush.msra.mxu0 %v3317
    %3416 = vmatpush.msra.mxu0 %v3316
    %3417 = vmatmul.f32.gmra.mxu0 %v3263
    %v3418 = vpop.f32.mrf.mxu0
    %v3419 = vadd.f32 %v3396, %v3418
    %3420 = vmatmul.f32.gmra.mxu0 %v3267
    %v3421 = vpop.f32.mrf.mxu0
    %v3422 = vadd.f32 %v3399, %v3421
    %3423 = vdwg.mxu0
    %v3424 = vadd.f32 %v3052, %v3419
    %v3425 = vadd.f32 %v3053, %v3422
    %v3426 = vperm.slane %v111, 0
    %v3427 = vadd.f32 %v3424, %v3426
    %v3428 = vadd.f32 %v3425, %v3426
    %3429 = vst.msk [vmem:[#allocation11] sm:$0xff] %vm192, %v3427
    %3430 = vst.msk [vmem:[#allocation11 + $0x8] sm:$0xff] %vm192, %v3428
    // Predicated region
    $region54: #{tpu_custom_call.1} parent=1 // pred_check
      _
    $region55: #{tpu_custom_call.1} parent=1 // pred_check_branch
      %3432 = sbr.rel (0) target = $region57
    $region56: #{tpu_custom_call.1} parent=1 // pred_region
      %3434 = vsyncadd [#allocation4], 0
      %s3435 = sshll.u32 [#allocation11], 4
      %s3436 = int_to_ptr.vmem [resolvable:$true] %s3435
      %s3437 = sshll.u32 %s8, 4
      %s3438 = int_to_ptr.hbm [resolvable:$true] %s3437
      %3443 = dma.vmem_to_hbm [thread:$0]  %s3436, 256, %s3438, [#allocation4], 128, 128, 8
    $region57: #{tpu_custom_call.1} parent=1 // pred_fallthru
      _
    // Predicated region
    $region58: #{tpu_custom_call.1} parent=1 // pred_check
      _
    $region59: #{tpu_custom_call.1} parent=1 // pred_check_branch
      %3445 = sbr.rel (0) target = $region61
    $region60: #{tpu_custom_call.1} parent=1 // pred_region
      %3447 = dma.done [#allocation4], 256
    $region61: #{tpu_custom_call.1} parent=1 // pred_fallthru
      _
    %3448 = vsyncpa [#allocation3], 1
    %3449 = vsyncpa [#allocation6], 1
    %3450 = vsyncpa [#allocation9], 1
    %3451 = vsyncpa [#allocation4], 1

</llo_original>
